<compile_context>
chip_gen: v6e
topology: v6e:2x2x1
jax: 0.10.0
libtpu: 0.0.40
codegen_flags: <defaults>
</compile_context>

<pallas_src>
import functools

import jax
import jax.numpy as jnp
import numpy as np
from jax.experimental import pallas as pl
from jax.experimental.pallas import tpu as pltpu


def _round_up(v, m):
    return -(-v // m) * m


# ----------------------------------------------------------------------------------
# PyTorch-matching bilinear interpolation matrix (align_corners=False)
# ----------------------------------------------------------------------------------
def _interp_matrix(out_size, in_size):
    i = jnp.arange(out_size, dtype=jnp.float32)
    scale = in_size / out_size
    src = jnp.maximum((i + 0.5) * scale - 0.5, 0.0)
    i0 = jnp.clip(jnp.floor(src).astype(jnp.int32), 0, in_size - 1)
    i1 = jnp.minimum(i0 + 1, in_size - 1)
    w1 = src - i0.astype(jnp.float32)
    w0 = 1.0 - w1
    A = jnp.zeros((out_size, in_size), jnp.float32)
    A = A.at[jnp.arange(out_size), i0].add(w0)
    A = A.at[jnp.arange(out_size), i1].add(w1)
    return A


# ----------------------------------------------------------------------------------
# Fused kernel: one grid step == one batch element.
# ----------------------------------------------------------------------------------
def _fused_single_head_kernel(x_ref, cm_ref, d_ref, coords_ref, ay_ref, axT_ref, *rest,
                              num_layers, n_bufs, C, H, W, alpha, R, guard,
                              cin_pads, couts):
    f32 = jnp.float32
    bf16 = jnp.bfloat16
    HW = H * W
    WP = W + 2
    NPAD = (H + 2) * WP

    w_refs = [rest[2 * l] for l in range(num_layers)]
    b_refs = [rest[2 * l + 1] for l in range(num_layers)]
    o_ref = rest[2 * num_layers]
    sc_refs = list(rest[2 * num_layers + 1:])

    # Zero the activation scratch (border ring / guard lanes / zero-padded channel rows
    # must be zero every step; per-core scratch on megacore forbids a pid==0-only init).
    for sc in sc_refs:
        sc[...] = jnp.zeros(sc.shape, bf16)

    # ---- object-center selection.  sigmoid is monotonic, so argmax of the raw logits
    #      equals argmax of sigmoid(center_map); the transcendental is skipped. ----
    cm = cm_ref[0]                                                              # (C, HW)
    mval = jnp.max(jnp.max(cm, axis=1, keepdims=True), axis=0, keepdims=True)   # (1, 1)
    ci = jax.lax.broadcasted_iota(jnp.int32, (C, HW), 0).astype(f32)
    pi = jax.lax.broadcasted_iota(jnp.int32, (C, HW), 1).astype(f32)
    sel = jnp.where(cm == mval, ci * HW + pi, jnp.float32(C * HW))
    idx = jnp.min(jnp.min(sel, axis=1, keepdims=True), axis=0, keepdims=True)   # (1, 1)
    pix = idx - jnp.floor(idx / HW) * HW
    cy = jnp.floor(pix / W)
    cx = pix - cy * W                                          # (1, 1) float center coords

    # ---- depth/255 -> separable bilinear resize to (H, W): Ay @ D @ Ax^T ----
    t = jnp.dot(d_ref[0], axT_ref[...], preferred_element_type=f32)             # (Hf, W)
    dr = jnp.dot(ay_ref[...], t, preferred_element_type=f32)                    # (H, W)

    xx = coords_ref[0]            # pixel x coordinate, (H, W)
    yy = coords_ref[1]            # pixel y coordinate
    gx = coords_ref[2]            # linspace(-1, 1, W) grid
    gy = coords_ref[3]            # linspace(-1, 1, H) grid

    hit = jnp.where((xx == cx) & (yy == cy), dr, 0.0)
    dcen = jnp.sum(jnp.sum(hit, axis=1, keepdims=True), axis=0, keepdims=True)  # (1, 1)

    xr = (xx - cx) * (1.0 / R)
    yr = (yy - cy) * (1.0 / R)
    dd = alpha * (dr - dcen)
    f25 = jnp.sqrt(xr * xr + yr * yr + dd * dd)
    extra = jnp.clip(jnp.stack([gx, gy, xr, yr, dd, f25], axis=0), -1.0, 1.0)   # (6, H, W)

    # ---- layer-0 input = [feat ; extra ; zero-pad channels], scattered onto the
    #      zero-padded grid with H static row-wise stores ----
    cp0 = cin_pads[0]
    parts = [x_ref[0], extra]
    if cp0 > C + 6:
        parts.append(jnp.zeros((cp0 - (C + 6), H, W), f32))
    lay0 = jnp.concatenate(parts, axis=0).astype(bf16)                          # (cp0, H, W)

    sc0 = sc_refs[0]
    for r in range(H):
        base = guard + (r + 1) * WP + 1
        sc0[0:cp0, base:base + W] = lay0[:, r, :]

    # ---- conv3x3 + bias + ReLU stack: one im2col matmul per layer ----
    offs = [(dy - 1) * WP + (dx - 1) for dy in range(3) for dx in range(3)]
    act = None
    for l in range(num_layers):
        sc = sc_refs[l % n_bufs]
        if l > 0:
            act_b = act.astype(bf16)
            for r in range(H):
                base = guard + (r + 1) * WP + 1
                src = (r + 1) * WP + 1
                sc[0:couts[l - 1], base:base + W] = act_b[:, src:src + W]
        cp = cin_pads[l]
        slabs = [sc[0:cp, guard + o: guard + o + NPAD] for o in offs]           # 9 x (cp, NPAD) bf16
        big = jnp.concatenate(slabs, axis=0)                                    # (9*cp, NPAD) bf16
        acc = jnp.dot(w_refs[l][...], big, preferred_element_type=f32)          # (cout, NPAD) f32
        act = jnp.maximum(acc + b_refs[l][...], 0.0)

    # ---- gather the interior rows into a lane-dense (Cout, H*W) output store ----
    rows = [act[:, (r + 1) * WP + 1: (r + 1) * WP + 1 + W] for r in range(H)]
    o_ref[0] = jnp.concatenate(rows, axis=1)


# ----------------------------------------------------------------------------------
# Wrapper: SingleHead.forward (topk=False path)
# ----------------------------------------------------------------------------------
def single_head_forward(x, depth, center_map, weights, biases, alpha=1.0, R=10.0):
    # TODO(synk): topk=True (depth_aware_coord_conv_topk) is not implemented; SingleHead
    # defaults to topk=False, which is the path covered here.
    B, C, H, W = x.shape
    Hf, Wf = depth.shape[1], depth.shape[2]
    num_layers = len(weights)
    conv_dims = weights[-1].shape[3]
    couts = tuple(int(w.shape[3]) for w in weights)

    HW = H * W
    WP = W + 2
    NPAD = (H + 2) * WP
    GUARD = _round_up(WP + 1, 128)                       # left guard for negative tap offsets
    NTOT = GUARD + _round_up(NPAD + WP + 1, 128)         # lane width of the padded scratch

    # per-layer padded contraction depth (bf16 sublane packing -> round to 16)
    cins = [C + 6] + list(couts[:-1])
    cin_pads = tuple(_round_up(c, 16) for c in cins)
    CACT = max(cin_pads)
    n_bufs = 2 if num_layers > 1 else 1

    # ---- small constants (constant-folded under jit) ----
    Ay = _interp_matrix(H, Hf) / 255.0                   # /255 folded into the row resize
    AxT = _interp_matrix(W, Wf).T
    xs = jnp.arange(W, dtype=jnp.float32)
    ys = jnp.arange(H, dtype=jnp.float32)
    coords = jnp.stack([
        jnp.broadcast_to(xs[None, :], (H, W)),
        jnp.broadcast_to(ys[:, None], (H, W)),
        jnp.broadcast_to(jnp.linspace(-1.0, 1.0, W)[None, :], (H, W)),
        jnp.broadcast_to(jnp.linspace(-1.0, 1.0, H)[:, None], (H, W)),
    ], axis=0)                                                                  # (4, H, W)

    wmats, bcols = [], []
    for l, (wk, bk) in enumerate(zip(weights, biases)):
        cin, cout = wk.shape[2], wk.shape[3]
        cp = cin_pads[l]
        wfull = jnp.zeros((3, 3, cp, cout), jnp.float32).at[:, :, :cin, :].set(wk)
        wmats.append(wfull.reshape(9 * cp, cout).T.astype(jnp.bfloat16))        # (Cout, 9*cp)
        bcols.append(bk.reshape(cout, 1).astype(jnp.float32))

    kern = functools.partial(
        _fused_single_head_kernel, num_layers=num_layers, n_bufs=n_bufs, C=C, H=H, W=W,
        alpha=alpha, R=R, guard=GUARD, cin_pads=cin_pads, couts=couts)

    def const_spec(shape):
        zeros = (0,) * len(shape)
        return pl.BlockSpec(shape, lambda b, _z=zeros: _z)

    def batch_spec(shape):
        trailing = (0,) * (len(shape) - 1)
        return pl.BlockSpec(shape, lambda b, _t=trailing: (b,) + _t)

    in_specs = [
        batch_spec((1, C, H, W)),        # x (NCHW)
        batch_spec((1, C, HW)),          # center_map (spatial flattened onto lanes)
        batch_spec((1, Hf, Wf)),         # raw depth
        const_spec((4, H, W)),           # pixel coords + normalized grid
        const_spec((H, Hf)),             # Ay / 255
        const_spec((Wf, W)),             # Ax^T
    ]
    args = [x.astype(jnp.float32),
            center_map.reshape(B, C, HW).astype(jnp.float32),
            depth.astype(jnp.float32),
            coords, Ay, AxT]
    for wm, bc in zip(wmats, bcols):
        in_specs += [const_spec(wm.shape), const_spec(bc.shape)]
        args += [wm, bc]

    # ---- resident VMEM estimate (for the scoped limit) and advisory cost estimate ----
    bytes_in = 2 * 4 * (C * H * W + C * HW + Hf * Wf + 4 * HW + H * Hf + Wf * W)
    bytes_w = 2 * sum(2 * couts[l] * 9 * cin_pads[l] + 4 * couts[l] for l in range(num_layers))
    bytes_out = 2 * 4 * conv_dims * HW
    bytes_scratch = n_bufs * CACT * NTOT * 2
    vmem_limit = int(max(32 * 1024 * 1024, 2 * (bytes_in + bytes_w + bytes_out + bytes_scratch)))

    conv_flops = sum(2 * couts[l] * 9 * cin_pads[l] * NPAD for l in range(num_layers))
    cost = pl.CostEstimate(
        flops=int(B * (conv_flops + 2 * (Hf * Wf * W + H * Hf * W))),
        transcendentals=int(B * HW),
        bytes_accessed=int(4 * (B * C * HW * 2 + B * Hf * Wf + B * conv_dims * HW)))

    out_flat = pl.pallas_call(
        kern,
        out_shape=jax.ShapeDtypeStruct((B, conv_dims, HW), jnp.float32),
        grid=(B,),
        in_specs=in_specs,
        out_specs=pl.BlockSpec((1, conv_dims, HW), lambda b: (b, 0, 0)),
        scratch_shapes=[pltpu.VMEM((CACT, NTOT), jnp.bfloat16) for _ in range(n_bufs)],
        compiler_params=pltpu.CompilerParams(
            dimension_semantics=("parallel",),
            vmem_limit_bytes=vmem_limit),
        cost_estimate=cost,
    )(*args)

    return out_flat.reshape(B, conv_dims, H, W)


# ----------------------------------------------------------------------------------
# Pure-JAX reference of the PyTorch forward (conv operands cast to bf16 to mirror the
# kernel's MXU dtype; everything else in f32).
# ----------------------------------------------------------------------------------
def _reference_forward(x, depth, center_map, weights, biases, alpha, R):
    B, C, H, W = x.shape
    Hf, Wf = depth.shape[1], depth.shape[2]

    cm = jax.nn.sigmoid(center_map).reshape(B, C, H * W)
    top_vals = jnp.max(cm, axis=-1)
    top_idx = jnp.argmax(cm, axis=-1)
    best = jnp.argmax(top_vals, axis=-1)
    idx = top_idx[jnp.arange(B), best]
    cx = (idx % W).astype(jnp.float32)
    cy = (idx // W).astype(jnp.float32)

    Ay = _interp_matrix(H, Hf)
    Ax = _interp_matrix(W, Wf)
    dr = jnp.einsum("hi,bij,wj->bhw", Ay, depth / 255.0, Ax,
                    precision=jax.lax.Precision.HIGHEST)
    dcen = dr[jnp.arange(B), cy.astype(jnp.int32), cx.astype(jnp.int32)][:, None, None]

    yc = jnp.arange(H, dtype=jnp.float32)[None, :, None]
    xc = jnp.arange(W, dtype=jnp.float32)[None, None, :]
    gx = jnp.broadcast_to(jnp.linspace(-1.0, 1.0, W)[None, None, :], (B, H, W))
    gy = jnp.broadcast_to(jnp.linspace(-1.0, 1.0, H)[None, :, None], (B, H, W))
    xr = jnp.broadcast_to((xc - cx[:, None, None]) / R, (B, H, W))
    yr = jnp.broadcast_to((yc - cy[:, None, None]) / R, (B, H, W))
    dd = alpha * (dr - dcen)
    f25 = jnp.sqrt(xr ** 2 + yr ** 2 + dd ** 2)
    extra = jnp.clip(jnp.stack([gx, gy, xr, yr, dd, f25], axis=1), -1.0, 1.0)

    h = jnp.concatenate([x, extra], axis=1)
    for wk, bk in zip(weights, biases):
        h = jax.lax.conv_general_dilated(
            h.astype(jnp.bfloat16), wk.astype(jnp.bfloat16),
            window_strides=(1, 1), padding="SAME",
            dimension_numbers=("NCHW", "HWIO", "NCHW"),
            preferred_element_type=jnp.float32)
        h = jax.nn.relu(h + bk[None, :, None, None])
    return h


# ----------------------------------------------------------------------------------
if __name__ == "__main__":
    B, C, H, W = 2, 4, 16, 16
    Hf, Wf = 32, 32            # raw depth resolution
    conv_dims = 32
    num_convs = 2
    in_channel = C + 6         # SingleHead expects feat channels + 6 coordconv channels

    key = jax.random.PRNGKey(0)
    kx, kd, kc, kp = jax.random.split(key, 4)

    x = jax.random.normal(kx, (B, C, H, W), jnp.float32)
    depth = jax.random.uniform(kd, (B, Hf, Wf), jnp.float32) * 255.0
    center_map = jax.random.normal(kc, (B, C, H, W), jnp.float32)

    # deterministic parameter init (Conv2d with bias=True since norm='', activation=relu)
    dims = [in_channel] + [conv_dims] * num_convs
    weights, biases = [], []
    for k in range(num_convs):
        kp, k1, k2 = jax.random.split(kp, 3)
        fan_in = dims[k] * 9
        weights.append(jax.random.normal(k1, (3, 3, dims[k], dims[k + 1]),
                                         jnp.float32) / jnp.sqrt(fan_in))
        biases.append(jax.random.normal(k2, (dims[k + 1],), jnp.float32) * 0.01)

    fwd = jax.jit(functools.partial(single_head_forward, alpha=1.0, R=10.0))
    out = fwd(x, depth, center_map, weights, biases)
    jax.block_until_ready(out)
    assert out.shape == (B, conv_dims, H, W)

    ref = _reference_forward(x, depth, center_map, weights, biases, 1.0, 10.0)
    np.testing.assert_allclose(np.asarray(out), np.asarray(ref), rtol=5e-2, atol=5e-2)
    print("KERNEL_OK")
</pallas_src>

<mosaic_0001>
module attributes {stable_mosaic.version = 11 : i64} {
  func.func private @main(%arg0: i32) attributes {dimension_semantics = [#tpu.dimension_semantics<core_parallel>], iteration_bounds = array<i64: 2>, tpu.core_type = #tpu.core_type<sc_scalar_subcore>, window_params = []} {
    return
  }
}

module attributes {stable_mosaic.version = 11 : i64} {
  func.func private @main(%arg0: i32) attributes {dimension_semantics = [#tpu.dimension_semantics<core_parallel>], iteration_bounds = array<i64: 2>, tpu.core_type = #tpu.core_type<sc_scalar_subcore>, window_params = []} {
    return
  }
}

module attributes {stable_mosaic.version = 11 : i64} {
  func.func @_fused_single_head_kernel(%arg0: i32, %arg1: memref<1x4x16x16xf32, #tpu.memory_space<vmem>>, %arg2: memref<1x4x256xf32, #tpu.memory_space<vmem>>, %arg3: memref<1x32x32xf32, #tpu.memory_space<vmem>>, %arg4: memref<4x16x16xf32, #tpu.memory_space<vmem>>, %arg5: memref<16x32xf32, #tpu.memory_space<vmem>>, %arg6: memref<32x16xf32, #tpu.memory_space<vmem>>, %arg7: memref<32x144xbf16, #tpu.memory_space<vmem>>, %arg8: memref<32x1xf32, #tpu.memory_space<vmem>>, %arg9: memref<32x288xbf16, #tpu.memory_space<vmem>>, %arg10: memref<32x1xf32, #tpu.memory_space<vmem>>, %arg11: memref<1x32x256xf32, #tpu.memory_space<vmem>>, %arg12: memref<32x512xbf16, #tpu.memory_space<vmem>>, %arg13: memref<32x512xbf16, #tpu.memory_space<vmem>>) attributes {dimension_semantics = [#tpu.dimension_semantics<parallel>], iteration_bounds = array<i64: 2>, scalar_prefetch = 0 : i64, scratch_operands = 2 : i64, tpu.core_type = #tpu.core_type<tc>, window_params = [{transform_indices = @transform_0, window_bounds = array<i64: 1, 4, 16, 16>}, {transform_indices = @transform_1, window_bounds = array<i64: 1, 4, 256>}, {transform_indices = @transform_2, window_bounds = array<i64: 1, 32, 32>}, {pipeline_mode = #tpu.pipeline_mode<synchronous>, transform_indices = @transform_3, window_bounds = array<i64: 4, 16, 16>}, {pipeline_mode = #tpu.pipeline_mode<synchronous>, transform_indices = @transform_4, window_bounds = array<i64: 16, 32>}, {pipeline_mode = #tpu.pipeline_mode<synchronous>, transform_indices = @transform_5, window_bounds = array<i64: 32, 16>}, {pipeline_mode = #tpu.pipeline_mode<synchronous>, transform_indices = @transform_6, window_bounds = array<i64: 32, 144>}, {pipeline_mode = #tpu.pipeline_mode<synchronous>, transform_indices = @transform_7, window_bounds = array<i64: 32, 1>}, {pipeline_mode = #tpu.pipeline_mode<synchronous>, transform_indices = @transform_8, window_bounds = array<i64: 32, 288>}, {pipeline_mode = #tpu.pipeline_mode<synchronous>, transform_indices = @transform_9, window_bounds = array<i64: 32, 1>}, {transform_indices = @transform_10, window_bounds = array<i64: 1, 32, 256>}]} {
    %cst = arith.constant 0.000000e+00 : bf16
    %0 = vector.broadcast %cst : bf16 to vector<32x512xbf16>
    %c0 = arith.constant 0 : index
    %c0_0 = arith.constant 0 : index
    %1 = vector.load %arg12[%c0, %c0_0] : memref<32x512xbf16, #tpu.memory_space<vmem>>, vector<32x512xbf16>
    tpu.vector_store %arg12[%c0, %c0_0], %0 {strides = array<i32>} : memref<32x512xbf16, #tpu.memory_space<vmem>>, vector<32x512xbf16>,
    %cst_1 = arith.constant 0.000000e+00 : bf16
    %2 = vector.broadcast %cst_1 : bf16 to vector<32x512xbf16>
    %c0_2 = arith.constant 0 : index
    %c0_3 = arith.constant 0 : index
    %3 = vector.load %arg13[%c0_2, %c0_3] : memref<32x512xbf16, #tpu.memory_space<vmem>>, vector<32x512xbf16>
    tpu.vector_store %arg13[%c0_2, %c0_3], %2 {strides = array<i32>} : memref<32x512xbf16, #tpu.memory_space<vmem>>, vector<32x512xbf16>,
    %c0_4 = arith.constant 0 : index
    %c0_5 = arith.constant 0 : index
    %c0_6 = arith.constant 0 : index
    %4 = vector.load %arg2[%c0_4, %c0_5, %c0_6] : memref<1x4x256xf32, #tpu.memory_space<vmem>>, vector<1x4x256xf32>
    %5 = vector.shape_cast %4 : vector<1x4x256xf32> to vector<4x256xf32>
    %cst_7 = arith.constant dense<0xFF800000> : vector<4xf32>
    %6 = vector.multi_reduction <maximumf>, %5, %cst_7 [1] : vector<4x256xf32> to vector<4xf32>
    %7 = vector.shape_cast %6 : vector<4xf32> to vector<4x1xf32>
    %cst_8 = arith.constant dense<0xFF800000> : vector<1xf32>
    %8 = vector.multi_reduction <maximumf>, %7, %cst_8 [0] : vector<4x1xf32> to vector<1xf32>
    %9 = vector.shape_cast %8 : vector<1xf32> to vector<1x1xf32>
    %10 = tpu.iota {dimensions = array<i32: 0>} : vector<4x256xi32>
    %11 = arith.sitofp %10 : vector<4x256xi32> to vector<4x256xf32>
    %12 = tpu.iota {dimensions = array<i32: 1>} : vector<4x256xi32>
    %13 = arith.sitofp %12 : vector<4x256xi32> to vector<4x256xf32>
    %14 = vector.broadcast %9 : vector<1x1xf32> to vector<4x256xf32>
    %15 = arith.cmpf oeq, %5, %14 : vector<4x256xf32>
    %cst_9 = arith.constant 2.560000e+02 : f32
    %16 = vector.broadcast %cst_9 : f32 to vector<4x256xf32>
    %17 = arith.mulf %11, %16 : vector<4x256xf32>
    %18 = arith.addf %17, %13 : vector<4x256xf32>
    %cst_10 = arith.constant 1.024000e+03 : f32
    %19 = vector.broadcast %cst_10 : f32 to vector<4x256xf32>
    %20 = arith.select %15, %18, %19 : vector<4x256xi1>, vector<4x256xf32>
    %cst_11 = arith.constant dense<0x7F800000> : vector<4xf32>
    %21 = vector.multi_reduction <minimumf>, %20, %cst_11 [1] : vector<4x256xf32> to vector<4xf32>
    %22 = vector.shape_cast %21 : vector<4xf32> to vector<4x1xf32>
    %cst_12 = arith.constant dense<0x7F800000> : vector<1xf32>
    %23 = vector.multi_reduction <minimumf>, %22, %cst_12 [0] : vector<4x1xf32> to vector<1xf32>
    %24 = vector.shape_cast %23 : vector<1xf32> to vector<1x1xf32>
    %cst_13 = arith.constant 2.560000e+02 : f32
    %25 = vector.broadcast %cst_13 : f32 to vector<1x1xf32>
    %26 = arith.divf %24, %25 : vector<1x1xf32>
    %27 = math.floor %26 : vector<1x1xf32>
    %cst_14 = arith.constant 2.560000e+02 : f32
    %28 = vector.broadcast %cst_14 : f32 to vector<1x1xf32>
    %29 = arith.mulf %27, %28 : vector<1x1xf32>
    %30 = arith.subf %24, %29 : vector<1x1xf32>
    %cst_15 = arith.constant 1.600000e+01 : f32
    %31 = vector.broadcast %cst_15 : f32 to vector<1x1xf32>
    %32 = arith.divf %30, %31 : vector<1x1xf32>
    %33 = math.floor %32 : vector<1x1xf32>
    %cst_16 = arith.constant 1.600000e+01 : f32
    %34 = vector.broadcast %cst_16 : f32 to vector<1x1xf32>
    %35 = arith.mulf %33, %34 : vector<1x1xf32>
    %36 = arith.subf %30, %35 : vector<1x1xf32>
    %c0_17 = arith.constant 0 : index
    %c0_18 = arith.constant 0 : index
    %c0_19 = arith.constant 0 : index
    %37 = vector.load %arg3[%c0_17, %c0_18, %c0_19] : memref<1x32x32xf32, #tpu.memory_space<vmem>>, vector<1x32x32xf32>
    %38 = vector.shape_cast %37 : vector<1x32x32xf32> to vector<32x32xf32>
    %c0_20 = arith.constant 0 : index
    %c0_21 = arith.constant 0 : index
    %39 = vector.load %arg6[%c0_20, %c0_21] : memref<32x16xf32, #tpu.memory_space<vmem>>, vector<32x16xf32>
    %cst_22 = arith.constant dense<0.000000e+00> : vector<32x16xf32>
    %40 = tpu.matmul %38, %39, %cst_22 {dimension_numbers = #tpu.dot_dimension_numbers<[1], [0], [0], [1], [0, 0, 1, 1], [], []>} : vector<32x32xf32>, vector<32x16xf32>, vector<32x16xf32> -> vector<32x16xf32>
    %c0_23 = arith.constant 0 : index
    %c0_24 = arith.constant 0 : index
    %41 = vector.load %arg5[%c0_23, %c0_24] : memref<16x32xf32, #tpu.memory_space<vmem>>, vector<16x32xf32>
    %cst_25 = arith.constant dense<0.000000e+00> : vector<16x16xf32>
    %42 = tpu.matmul %41, %40, %cst_25 {dimension_numbers = #tpu.dot_dimension_numbers<[1], [0], [0], [1], [0, 0, 1, 1], [], []>} : vector<16x32xf32>, vector<32x16xf32>, vector<16x16xf32> -> vector<16x16xf32>
    %c0_26 = arith.constant 0 : index
    %c0_27 = arith.constant 0 : index
    %c0_28 = arith.constant 0 : index
    %43 = vector.load %arg4[%c0_26, %c0_27, %c0_28] : memref<4x16x16xf32, #tpu.memory_space<vmem>>, vector<1x16x16xf32>
    %44 = vector.shape_cast %43 : vector<1x16x16xf32> to vector<16x16xf32>
    %c1 = arith.constant 1 : index
    %c0_29 = arith.constant 0 : index
    %c0_30 = arith.constant 0 : index
    %45 = vector.load %arg4[%c1, %c0_29, %c0_30] : memref<4x16x16xf32, #tpu.memory_space<vmem>>, vector<1x16x16xf32>
    %46 = vector.shape_cast %45 : vector<1x16x16xf32> to vector<16x16xf32>
    %c2 = arith.constant 2 : index
    %c0_31 = arith.constant 0 : index
    %c0_32 = arith.constant 0 : index
    %47 = vector.load %arg4[%c2, %c0_31, %c0_32] : memref<4x16x16xf32, #tpu.memory_space<vmem>>, vector<1x16x16xf32>
    %48 = vector.shape_cast %47 : vector<1x16x16xf32> to vector<16x16xf32>
    %c3 = arith.constant 3 : index
    %c0_33 = arith.constant 0 : index
    %c0_34 = arith.constant 0 : index
    %49 = vector.load %arg4[%c3, %c0_33, %c0_34] : memref<4x16x16xf32, #tpu.memory_space<vmem>>, vector<1x16x16xf32>
    %50 = vector.shape_cast %49 : vector<1x16x16xf32> to vector<16x16xf32>
    %51 = vector.broadcast %36 : vector<1x1xf32> to vector<16x16xf32>
    %52 = arith.cmpf oeq, %44, %51 : vector<16x16xf32>
    %53 = vector.broadcast %33 : vector<1x1xf32> to vector<16x16xf32>
    %54 = arith.cmpf oeq, %46, %53 : vector<16x16xf32>
    %55 = arith.andi %52, %54 : vector<16x16xi1>
    %cst_35 = arith.constant 0.000000e+00 : f32
    %56 = vector.broadcast %cst_35 : f32 to vector<16x16xf32>
    %57 = arith.select %55, %42, %56 : vector<16x16xi1>, vector<16x16xf32>
    %cst_36 = arith.constant dense<0.000000e+00> : vector<16xf32>
    %58 = vector.multi_reduction <add>, %57, %cst_36 [1] : vector<16x16xf32> to vector<16xf32>
    %59 = vector.shape_cast %58 : vector<16xf32> to vector<16x1xf32>
    %cst_37 = arith.constant dense<0.000000e+00> : vector<1xf32>
    %60 = vector.multi_reduction <add>, %59, %cst_37 [0] : vector<16x1xf32> to vector<1xf32>
    %61 = vector.shape_cast %60 : vector<1xf32> to vector<1x1xf32>
    %62 = vector.broadcast %36 : vector<1x1xf32> to vector<16x16xf32>
    %63 = arith.subf %44, %62 : vector<16x16xf32>
    %cst_38 = arith.constant 1.000000e-01 : f32
    %64 = vector.broadcast %cst_38 : f32 to vector<16x16xf32>
    %65 = arith.mulf %63, %64 : vector<16x16xf32>
    %66 = vector.broadcast %33 : vector<1x1xf32> to vector<16x16xf32>
    %67 = arith.subf %46, %66 : vector<16x16xf32>
    %cst_39 = arith.constant 1.000000e-01 : f32
    %68 = vector.broadcast %cst_39 : f32 to vector<16x16xf32>
    %69 = arith.mulf %67, %68 : vector<16x16xf32>
    %70 = vector.broadcast %61 : vector<1x1xf32> to vector<16x16xf32>
    %71 = arith.subf %42, %70 : vector<16x16xf32>
    %cst_40 = arith.constant 1.000000e+00 : f32
    %72 = vector.broadcast %cst_40 : f32 to vector<16x16xf32>
    %73 = arith.mulf %72, %71 : vector<16x16xf32>
    %74 = arith.mulf %65, %65 : vector<16x16xf32>
    %75 = arith.mulf %69, %69 : vector<16x16xf32>
    %76 = arith.addf %74, %75 : vector<16x16xf32>
    %77 = arith.mulf %73, %73 : vector<16x16xf32>
    %78 = arith.addf %76, %77 : vector<16x16xf32>
    %79 = math.sqrt %78 : vector<16x16xf32>
    %80 = vector.shape_cast %48 : vector<16x16xf32> to vector<1x16x16xf32>
    %81 = vector.shape_cast %50 : vector<16x16xf32> to vector<1x16x16xf32>
    %82 = vector.shape_cast %65 : vector<16x16xf32> to vector<1x16x16xf32>
    %83 = vector.shape_cast %69 : vector<16x16xf32> to vector<1x16x16xf32>
    %84 = vector.shape_cast %73 : vector<16x16xf32> to vector<1x16x16xf32>
    %85 = vector.shape_cast %79 : vector<16x16xf32> to vector<1x16x16xf32>
    %86 = tpu.concatenate %80, %81, %82, %83, %84, %85 in 0 : vector<1x16x16xf32>, vector<1x16x16xf32>, vector<1x16x16xf32>, vector<1x16x16xf32>, vector<1x16x16xf32>, vector<1x16x16xf32> -> vector<6x16x16xf32>
    %cst_41 = arith.constant -1.000000e+00 : f32
    %cst_42 = arith.constant 1.000000e+00 : f32
    %87 = vector.broadcast %cst_41 : f32 to vector<6x16x16xf32>
    %88 = arith.maximumf %87, %86 : vector<6x16x16xf32>
    %89 = vector.broadcast %cst_42 : f32 to vector<6x16x16xf32>
    %90 = arith.minimumf %89, %88 : vector<6x16x16xf32>
    %c0_43 = arith.constant 0 : index
    %c0_44 = arith.constant 0 : index
    %c0_45 = arith.constant 0 : index
    %c0_46 = arith.constant 0 : index
    %91 = vector.load %arg1[%c0_43, %c0_44, %c0_45, %c0_46] : memref<1x4x16x16xf32, #tpu.memory_space<vmem>>, vector<1x4x16x16xf32>
    %92 = vector.shape_cast %91 : vector<1x4x16x16xf32> to vector<4x16x16xf32>
    %cst_47 = arith.constant 0.000000e+00 : f32
    %93 = vector.broadcast %cst_47 : f32 to vector<6x16x16xf32>
    %94 = tpu.concatenate %92, %90, %93 in 0 : vector<4x16x16xf32>, vector<6x16x16xf32>, vector<6x16x16xf32> -> vector<16x16x16xf32>
    %95 = arith.truncf %94 : vector<16x16x16xf32> to vector<16x16x16xbf16>
    %96 = vector.extract_strided_slice %95 {offsets = [0, 0, 0], sizes = [16, 1, 16], strides = [1, 1, 1]} : vector<16x16x16xbf16> to vector<16x1x16xbf16>
    %97 = vector.shape_cast %96 : vector<16x1x16xbf16> to vector<16x16xbf16>
    %c0_48 = arith.constant 0 : index
    %c147 = arith.constant 147 : index
    %98 = vector.load %arg12[%c0_48, %c147] : memref<32x512xbf16, #tpu.memory_space<vmem>>, vector<16x16xbf16>
    tpu.vector_store %arg12[%c0_48, %c147], %97 {strides = array<i32>} : memref<32x512xbf16, #tpu.memory_space<vmem>>, vector<16x16xbf16>,
    %99 = vector.extract_strided_slice %95 {offsets = [0, 1, 0], sizes = [16, 1, 16], strides = [1, 1, 1]} : vector<16x16x16xbf16> to vector<16x1x16xbf16>
    %100 = vector.shape_cast %99 : vector<16x1x16xbf16> to vector<16x16xbf16>
    %c0_49 = arith.constant 0 : index
    %c165 = arith.constant 165 : index
    %101 = vector.load %arg12[%c0_49, %c165] : memref<32x512xbf16, #tpu.memory_space<vmem>>, vector<16x16xbf16>
    tpu.vector_store %arg12[%c0_49, %c165], %100 {strides = array<i32>} : memref<32x512xbf16, #tpu.memory_space<vmem>>, vector<16x16xbf16>,
    %102 = vector.extract_strided_slice %95 {offsets = [0, 2, 0], sizes = [16, 1, 16], strides = [1, 1, 1]} : vector<16x16x16xbf16> to vector<16x1x16xbf16>
    %103 = vector.shape_cast %102 : vector<16x1x16xbf16> to vector<16x16xbf16>
    %c0_50 = arith.constant 0 : index
    %c183 = arith.constant 183 : index
    %104 = vector.load %arg12[%c0_50, %c183] : memref<32x512xbf16, #tpu.memory_space<vmem>>, vector<16x16xbf16>
    tpu.vector_store %arg12[%c0_50, %c183], %103 {strides = array<i32>} : memref<32x512xbf16, #tpu.memory_space<vmem>>, vector<16x16xbf16>,
    %105 = vector.extract_strided_slice %95 {offsets = [0, 3, 0], sizes = [16, 1, 16], strides = [1, 1, 1]} : vector<16x16x16xbf16> to vector<16x1x16xbf16>
    %106 = vector.shape_cast %105 : vector<16x1x16xbf16> to vector<16x16xbf16>
    %c0_51 = arith.constant 0 : index
    %c201 = arith.constant 201 : index
    %107 = vector.load %arg12[%c0_51, %c201] : memref<32x512xbf16, #tpu.memory_space<vmem>>, vector<16x16xbf16>
    tpu.vector_store %arg12[%c0_51, %c201], %106 {strides = array<i32>} : memref<32x512xbf16, #tpu.memory_space<vmem>>, vector<16x16xbf16>,
    %108 = vector.extract_strided_slice %95 {offsets = [0, 4, 0], sizes = [16, 1, 16], strides = [1, 1, 1]} : vector<16x16x16xbf16> to vector<16x1x16xbf16>
    %109 = vector.shape_cast %108 : vector<16x1x16xbf16> to vector<16x16xbf16>
    %c0_52 = arith.constant 0 : index
    %c219 = arith.constant 219 : index
    %110 = vector.load %arg12[%c0_52, %c219] : memref<32x512xbf16, #tpu.memory_space<vmem>>, vector<16x16xbf16>
    tpu.vector_store %arg12[%c0_52, %c219], %109 {strides = array<i32>} : memref<32x512xbf16, #tpu.memory_space<vmem>>, vector<16x16xbf16>,
    %111 = vector.extract_strided_slice %95 {offsets = [0, 5, 0], sizes = [16, 1, 16], strides = [1, 1, 1]} : vector<16x16x16xbf16> to vector<16x1x16xbf16>
    %112 = vector.shape_cast %111 : vector<16x1x16xbf16> to vector<16x16xbf16>
    %c0_53 = arith.constant 0 : index
    %c237 = arith.constant 237 : index
    %113 = vector.load %arg12[%c0_53, %c237] : memref<32x512xbf16, #tpu.memory_space<vmem>>, vector<16x16xbf16>
    tpu.vector_store %arg12[%c0_53, %c237], %112 {strides = array<i32>} : memref<32x512xbf16, #tpu.memory_space<vmem>>, vector<16x16xbf16>,
    %114 = vector.extract_strided_slice %95 {offsets = [0, 6, 0], sizes = [16, 1, 16], strides = [1, 1, 1]} : vector<16x16x16xbf16> to vector<16x1x16xbf16>
    %115 = vector.shape_cast %114 : vector<16x1x16xbf16> to vector<16x16xbf16>
    %c0_54 = arith.constant 0 : index
    %c255 = arith.constant 255 : index
    %116 = vector.load %arg12[%c0_54, %c255] : memref<32x512xbf16, #tpu.memory_space<vmem>>, vector<16x16xbf16>
    tpu.vector_store %arg12[%c0_54, %c255], %115 {strides = array<i32>} : memref<32x512xbf16, #tpu.memory_space<vmem>>, vector<16x16xbf16>,
    %117 = vector.extract_strided_slice %95 {offsets = [0, 7, 0], sizes = [16, 1, 16], strides = [1, 1, 1]} : vector<16x16x16xbf16> to vector<16x1x16xbf16>
    %118 = vector.shape_cast %117 : vector<16x1x16xbf16> to vector<16x16xbf16>
    %c0_55 = arith.constant 0 : index
    %c273 = arith.constant 273 : index
    %119 = vector.load %arg12[%c0_55, %c273] : memref<32x512xbf16, #tpu.memory_space<vmem>>, vector<16x16xbf16>
    tpu.vector_store %arg12[%c0_55, %c273], %118 {strides = array<i32>} : memref<32x512xbf16, #tpu.memory_space<vmem>>, vector<16x16xbf16>,
    %120 = vector.extract_strided_slice %95 {offsets = [0, 8, 0], sizes = [16, 1, 16], strides = [1, 1, 1]} : vector<16x16x16xbf16> to vector<16x1x16xbf16>
    %121 = vector.shape_cast %120 : vector<16x1x16xbf16> to vector<16x16xbf16>
    %c0_56 = arith.constant 0 : index
    %c291 = arith.constant 291 : index
    %122 = vector.load %arg12[%c0_56, %c291] : memref<32x512xbf16, #tpu.memory_space<vmem>>, vector<16x16xbf16>
    tpu.vector_store %arg12[%c0_56, %c291], %121 {strides = array<i32>} : memref<32x512xbf16, #tpu.memory_space<vmem>>, vector<16x16xbf16>,
    %123 = vector.extract_strided_slice %95 {offsets = [0, 9, 0], sizes = [16, 1, 16], strides = [1, 1, 1]} : vector<16x16x16xbf16> to vector<16x1x16xbf16>
    %124 = vector.shape_cast %123 : vector<16x1x16xbf16> to vector<16x16xbf16>
    %c0_57 = arith.constant 0 : index
    %c309 = arith.constant 309 : index
    %125 = vector.load %arg12[%c0_57, %c309] : memref<32x512xbf16, #tpu.memory_space<vmem>>, vector<16x16xbf16>
    tpu.vector_store %arg12[%c0_57, %c309], %124 {strides = array<i32>} : memref<32x512xbf16, #tpu.memory_space<vmem>>, vector<16x16xbf16>,
    %126 = vector.extract_strided_slice %95 {offsets = [0, 10, 0], sizes = [16, 1, 16], strides = [1, 1, 1]} : vector<16x16x16xbf16> to vector<16x1x16xbf16>
    %127 = vector.shape_cast %126 : vector<16x1x16xbf16> to vector<16x16xbf16>
    %c0_58 = arith.constant 0 : index
    %c327 = arith.constant 327 : index
    %128 = vector.load %arg12[%c0_58, %c327] : memref<32x512xbf16, #tpu.memory_space<vmem>>, vector<16x16xbf16>
    tpu.vector_store %arg12[%c0_58, %c327], %127 {strides = array<i32>} : memref<32x512xbf16, #tpu.memory_space<vmem>>, vector<16x16xbf16>,
    %129 = vector.extract_strided_slice %95 {offsets = [0, 11, 0], sizes = [16, 1, 16], strides = [1, 1, 1]} : vector<16x16x16xbf16> to vector<16x1x16xbf16>
    %130 = vector.shape_cast %129 : vector<16x1x16xbf16> to vector<16x16xbf16>
    %c0_59 = arith.constant 0 : index
    %c345 = arith.constant 345 : index
    %131 = vector.load %arg12[%c0_59, %c345] : memref<32x512xbf16, #tpu.memory_space<vmem>>, vector<16x16xbf16>
    tpu.vector_store %arg12[%c0_59, %c345], %130 {strides = array<i32>} : memref<32x512xbf16, #tpu.memory_space<vmem>>, vector<16x16xbf16>,
    %132 = vector.extract_strided_slice %95 {offsets = [0, 12, 0], sizes = [16, 1, 16], strides = [1, 1, 1]} : vector<16x16x16xbf16> to vector<16x1x16xbf16>
    %133 = vector.shape_cast %132 : vector<16x1x16xbf16> to vector<16x16xbf16>
    %c0_60 = arith.constant 0 : index
    %c363 = arith.constant 363 : index
    %134 = vector.load %arg12[%c0_60, %c363] : memref<32x512xbf16, #tpu.memory_space<vmem>>, vector<16x16xbf16>
    tpu.vector_store %arg12[%c0_60, %c363], %133 {strides = array<i32>} : memref<32x512xbf16, #tpu.memory_space<vmem>>, vector<16x16xbf16>,
    %135 = vector.extract_strided_slice %95 {offsets = [0, 13, 0], sizes = [16, 1, 16], strides = [1, 1, 1]} : vector<16x16x16xbf16> to vector<16x1x16xbf16>
    %136 = vector.shape_cast %135 : vector<16x1x16xbf16> to vector<16x16xbf16>
    %c0_61 = arith.constant 0 : index
    %c381 = arith.constant 381 : index
    %137 = vector.load %arg12[%c0_61, %c381] : memref<32x512xbf16, #tpu.memory_space<vmem>>, vector<16x16xbf16>
    tpu.vector_store %arg12[%c0_61, %c381], %136 {strides = array<i32>} : memref<32x512xbf16, #tpu.memory_space<vmem>>, vector<16x16xbf16>,
    %138 = vector.extract_strided_slice %95 {offsets = [0, 14, 0], sizes = [16, 1, 16], strides = [1, 1, 1]} : vector<16x16x16xbf16> to vector<16x1x16xbf16>
    %139 = vector.shape_cast %138 : vector<16x1x16xbf16> to vector<16x16xbf16>
    %c0_62 = arith.constant 0 : index
    %c399 = arith.constant 399 : index
    %140 = vector.load %arg12[%c0_62, %c399] : memref<32x512xbf16, #tpu.memory_space<vmem>>, vector<16x16xbf16>
    tpu.vector_store %arg12[%c0_62, %c399], %139 {strides = array<i32>} : memref<32x512xbf16, #tpu.memory_space<vmem>>, vector<16x16xbf16>,
    %141 = vector.extract_strided_slice %95 {offsets = [0, 15, 0], sizes = [16, 1, 16], strides = [1, 1, 1]} : vector<16x16x16xbf16> to vector<16x1x16xbf16>
    %142 = vector.shape_cast %141 : vector<16x1x16xbf16> to vector<16x16xbf16>
    %c0_63 = arith.constant 0 : index
    %c417 = arith.constant 417 : index
    %143 = vector.load %arg12[%c0_63, %c417] : memref<32x512xbf16, #tpu.memory_space<vmem>>, vector<16x16xbf16>
    tpu.vector_store %arg12[%c0_63, %c417], %142 {strides = array<i32>} : memref<32x512xbf16, #tpu.memory_space<vmem>>, vector<16x16xbf16>,
    %c0_64 = arith.constant 0 : index
    %c109 = arith.constant 109 : index
    %144 = vector.load %arg12[%c0_64, %c109] : memref<32x512xbf16, #tpu.memory_space<vmem>>, vector<16x324xbf16>
    %c0_65 = arith.constant 0 : index
    %c110 = arith.constant 110 : index
    %145 = vector.load %arg12[%c0_65, %c110] : memref<32x512xbf16, #tpu.memory_space<vmem>>, vector<16x324xbf16>
    %c0_66 = arith.constant 0 : index
    %c111 = arith.constant 111 : index
    %146 = vector.load %arg12[%c0_66, %c111] : memref<32x512xbf16, #tpu.memory_space<vmem>>, vector<16x324xbf16>
    %c0_67 = arith.constant 0 : index
    %c127 = arith.constant 127 : index
    %147 = vector.load %arg12[%c0_67, %c127] : memref<32x512xbf16, #tpu.memory_space<vmem>>, vector<16x324xbf16>
    %c0_68 = arith.constant 0 : index
    %c128 = arith.constant 128 : index
    %148 = vector.load %arg12[%c0_68, %c128] : memref<32x512xbf16, #tpu.memory_space<vmem>>, vector<16x324xbf16>
    %c0_69 = arith.constant 0 : index
    %c129 = arith.constant 129 : index
    %149 = vector.load %arg12[%c0_69, %c129] : memref<32x512xbf16, #tpu.memory_space<vmem>>, vector<16x324xbf16>
    %c0_70 = arith.constant 0 : index
    %c145 = arith.constant 145 : index
    %150 = vector.load %arg12[%c0_70, %c145] : memref<32x512xbf16, #tpu.memory_space<vmem>>, vector<16x324xbf16>
    %c0_71 = arith.constant 0 : index
    %c146 = arith.constant 146 : index
    %151 = vector.load %arg12[%c0_71, %c146] : memref<32x512xbf16, #tpu.memory_space<vmem>>, vector<16x324xbf16>
    %c0_72 = arith.constant 0 : index
    %c147_73 = arith.constant 147 : index
    %152 = vector.load %arg12[%c0_72, %c147_73] : memref<32x512xbf16, #tpu.memory_space<vmem>>, vector<16x324xbf16>
    %153 = tpu.concatenate %144, %145, %146, %147, %148, %149, %150, %151, %152 in 0 : vector<16x324xbf16>, vector<16x324xbf16>, vector<16x324xbf16>, vector<16x324xbf16>, vector<16x324xbf16>, vector<16x324xbf16>, vector<16x324xbf16>, vector<16x324xbf16>, vector<16x324xbf16> -> vector<144x324xbf16>
    %c0_74 = arith.constant 0 : index
    %c0_75 = arith.constant 0 : index
    %154 = vector.load %arg7[%c0_74, %c0_75] : memref<32x144xbf16, #tpu.memory_space<vmem>>, vector<32x144xbf16>
    %cst_76 = arith.constant dense<0.000000e+00> : vector<32x324xf32>
    %155 = tpu.matmul %154, %153, %cst_76 {dimension_numbers = #tpu.dot_dimension_numbers<[1], [0], [0], [1], [0, 0, 1, 1], [], []>} : vector<32x144xbf16>, vector<144x324xbf16>, vector<32x324xf32> -> vector<32x324xf32>
    %c0_77 = arith.constant 0 : index
    %c0_78 = arith.constant 0 : index
    %156 = vector.load %arg8[%c0_77, %c0_78] : memref<32x1xf32, #tpu.memory_space<vmem>>, vector<32x1xf32>
    %157 = vector.broadcast %156 : vector<32x1xf32> to vector<32x324xf32>
    %158 = arith.addf %155, %157 : vector<32x324xf32>
    %cst_79 = arith.constant 0.000000e+00 : f32
    %159 = vector.broadcast %cst_79 : f32 to vector<32x324xf32>
    %160 = arith.maximumf %158, %159 : vector<32x324xf32>
    %161 = arith.truncf %160 : vector<32x324xf32> to vector<32x324xbf16>
    %162 = vector.extract_strided_slice %161 {offsets = [0, 19], sizes = [32, 16], strides = [1, 1]} : vector<32x324xbf16> to vector<32x16xbf16>
    %c0_80 = arith.constant 0 : index
    %c147_81 = arith.constant 147 : index
    %163 = vector.load %arg13[%c0_80, %c147_81] : memref<32x512xbf16, #tpu.memory_space<vmem>>, vector<32x16xbf16>
    tpu.vector_store %arg13[%c0_80, %c147_81], %162 {strides = array<i32>} : memref<32x512xbf16, #tpu.memory_space<vmem>>, vector<32x16xbf16>,
    %164 = vector.extract_strided_slice %161 {offsets = [0, 37], sizes = [32, 16], strides = [1, 1]} : vector<32x324xbf16> to vector<32x16xbf16>
    %c0_82 = arith.constant 0 : index
    %c165_83 = arith.constant 165 : index
    %165 = vector.load %arg13[%c0_82, %c165_83] : memref<32x512xbf16, #tpu.memory_space<vmem>>, vector<32x16xbf16>
    tpu.vector_store %arg13[%c0_82, %c165_83], %164 {strides = array<i32>} : memref<32x512xbf16, #tpu.memory_space<vmem>>, vector<32x16xbf16>,
    %166 = vector.extract_strided_slice %161 {offsets = [0, 55], sizes = [32, 16], strides = [1, 1]} : vector<32x324xbf16> to vector<32x16xbf16>
    %c0_84 = arith.constant 0 : index
    %c183_85 = arith.constant 183 : index
    %167 = vector.load %arg13[%c0_84, %c183_85] : memref<32x512xbf16, #tpu.memory_space<vmem>>, vector<32x16xbf16>
    tpu.vector_store %arg13[%c0_84, %c183_85], %166 {strides = array<i32>} : memref<32x512xbf16, #tpu.memory_space<vmem>>, vector<32x16xbf16>,
    %168 = vector.extract_strided_slice %161 {offsets = [0, 73], sizes = [32, 16], strides = [1, 1]} : vector<32x324xbf16> to vector<32x16xbf16>
    %c0_86 = arith.constant 0 : index
    %c201_87 = arith.constant 201 : index
    %169 = vector.load %arg13[%c0_86, %c201_87] : memref<32x512xbf16, #tpu.memory_space<vmem>>, vector<32x16xbf16>
    tpu.vector_store %arg13[%c0_86, %c201_87], %168 {strides = array<i32>} : memref<32x512xbf16, #tpu.memory_space<vmem>>, vector<32x16xbf16>,
    %170 = vector.extract_strided_slice %161 {offsets = [0, 91], sizes = [32, 16], strides = [1, 1]} : vector<32x324xbf16> to vector<32x16xbf16>
    %c0_88 = arith.constant 0 : index
    %c219_89 = arith.constant 219 : index
    %171 = vector.load %arg13[%c0_88, %c219_89] : memref<32x512xbf16, #tpu.memory_space<vmem>>, vector<32x16xbf16>
    tpu.vector_store %arg13[%c0_88, %c219_89], %170 {strides = array<i32>} : memref<32x512xbf16, #tpu.memory_space<vmem>>, vector<32x16xbf16>,
    %172 = vector.extract_strided_slice %161 {offsets = [0, 109], sizes = [32, 16], strides = [1, 1]} : vector<32x324xbf16> to vector<32x16xbf16>
    %c0_90 = arith.constant 0 : index
    %c237_91 = arith.constant 237 : index
    %173 = vector.load %arg13[%c0_90, %c237_91] : memref<32x512xbf16, #tpu.memory_space<vmem>>, vector<32x16xbf16>
    tpu.vector_store %arg13[%c0_90, %c237_91], %172 {strides = array<i32>} : memref<32x512xbf16, #tpu.memory_space<vmem>>, vector<32x16xbf16>,
    %174 = vector.extract_strided_slice %161 {offsets = [0, 127], sizes = [32, 16], strides = [1, 1]} : vector<32x324xbf16> to vector<32x16xbf16>
    %c0_92 = arith.constant 0 : index
    %c255_93 = arith.constant 255 : index
    %175 = vector.load %arg13[%c0_92, %c255_93] : memref<32x512xbf16, #tpu.memory_space<vmem>>, vector<32x16xbf16>
    tpu.vector_store %arg13[%c0_92, %c255_93], %174 {strides = array<i32>} : memref<32x512xbf16, #tpu.memory_space<vmem>>, vector<32x16xbf16>,
    %176 = vector.extract_strided_slice %161 {offsets = [0, 145], sizes = [32, 16], strides = [1, 1]} : vector<32x324xbf16> to vector<32x16xbf16>
    %c0_94 = arith.constant 0 : index
    %c273_95 = arith.constant 273 : index
    %177 = vector.load %arg13[%c0_94, %c273_95] : memref<32x512xbf16, #tpu.memory_space<vmem>>, vector<32x16xbf16>
    tpu.vector_store %arg13[%c0_94, %c273_95], %176 {strides = array<i32>} : memref<32x512xbf16, #tpu.memory_space<vmem>>, vector<32x16xbf16>,
    %178 = vector.extract_strided_slice %161 {offsets = [0, 163], sizes = [32, 16], strides = [1, 1]} : vector<32x324xbf16> to vector<32x16xbf16>
    %c0_96 = arith.constant 0 : index
    %c291_97 = arith.constant 291 : index
    %179 = vector.load %arg13[%c0_96, %c291_97] : memref<32x512xbf16, #tpu.memory_space<vmem>>, vector<32x16xbf16>
    tpu.vector_store %arg13[%c0_96, %c291_97], %178 {strides = array<i32>} : memref<32x512xbf16, #tpu.memory_space<vmem>>, vector<32x16xbf16>,
    %180 = vector.extract_strided_slice %161 {offsets = [0, 181], sizes = [32, 16], strides = [1, 1]} : vector<32x324xbf16> to vector<32x16xbf16>
    %c0_98 = arith.constant 0 : index
    %c309_99 = arith.constant 309 : index
    %181 = vector.load %arg13[%c0_98, %c309_99] : memref<32x512xbf16, #tpu.memory_space<vmem>>, vector<32x16xbf16>
    tpu.vector_store %arg13[%c0_98, %c309_99], %180 {strides = array<i32>} : memref<32x512xbf16, #tpu.memory_space<vmem>>, vector<32x16xbf16>,
    %182 = vector.extract_strided_slice %161 {offsets = [0, 199], sizes = [32, 16], strides = [1, 1]} : vector<32x324xbf16> to vector<32x16xbf16>
    %c0_100 = arith.constant 0 : index
    %c327_101 = arith.constant 327 : index
    %183 = vector.load %arg13[%c0_100, %c327_101] : memref<32x512xbf16, #tpu.memory_space<vmem>>, vector<32x16xbf16>
    tpu.vector_store %arg13[%c0_100, %c327_101], %182 {strides = array<i32>} : memref<32x512xbf16, #tpu.memory_space<vmem>>, vector<32x16xbf16>,
    %184 = vector.extract_strided_slice %161 {offsets = [0, 217], sizes = [32, 16], strides = [1, 1]} : vector<32x324xbf16> to vector<32x16xbf16>
    %c0_102 = arith.constant 0 : index
    %c345_103 = arith.constant 345 : index
    %185 = vector.load %arg13[%c0_102, %c345_103] : memref<32x512xbf16, #tpu.memory_space<vmem>>, vector<32x16xbf16>
    tpu.vector_store %arg13[%c0_102, %c345_103], %184 {strides = array<i32>} : memref<32x512xbf16, #tpu.memory_space<vmem>>, vector<32x16xbf16>,
    %186 = vector.extract_strided_slice %161 {offsets = [0, 235], sizes = [32, 16], strides = [1, 1]} : vector<32x324xbf16> to vector<32x16xbf16>
    %c0_104 = arith.constant 0 : index
    %c363_105 = arith.constant 363 : index
    %187 = vector.load %arg13[%c0_104, %c363_105] : memref<32x512xbf16, #tpu.memory_space<vmem>>, vector<32x16xbf16>
    tpu.vector_store %arg13[%c0_104, %c363_105], %186 {strides = array<i32>} : memref<32x512xbf16, #tpu.memory_space<vmem>>, vector<32x16xbf16>,
    %188 = vector.extract_strided_slice %161 {offsets = [0, 253], sizes = [32, 16], strides = [1, 1]} : vector<32x324xbf16> to vector<32x16xbf16>
    %c0_106 = arith.constant 0 : index
    %c381_107 = arith.constant 381 : index
    %189 = vector.load %arg13[%c0_106, %c381_107] : memref<32x512xbf16, #tpu.memory_space<vmem>>, vector<32x16xbf16>
    tpu.vector_store %arg13[%c0_106, %c381_107], %188 {strides = array<i32>} : memref<32x512xbf16, #tpu.memory_space<vmem>>, vector<32x16xbf16>,
    %190 = vector.extract_strided_slice %161 {offsets = [0, 271], sizes = [32, 16], strides = [1, 1]} : vector<32x324xbf16> to vector<32x16xbf16>
    %c0_108 = arith.constant 0 : index
    %c399_109 = arith.constant 399 : index
    %191 = vector.load %arg13[%c0_108, %c399_109] : memref<32x512xbf16, #tpu.memory_space<vmem>>, vector<32x16xbf16>
    tpu.vector_store %arg13[%c0_108, %c399_109], %190 {strides = array<i32>} : memref<32x512xbf16, #tpu.memory_space<vmem>>, vector<32x16xbf16>,
    %192 = vector.extract_strided_slice %161 {offsets = [0, 289], sizes = [32, 16], strides = [1, 1]} : vector<32x324xbf16> to vector<32x16xbf16>
    %c0_110 = arith.constant 0 : index
    %c417_111 = arith.constant 417 : index
    %193 = vector.load %arg13[%c0_110, %c417_111] : memref<32x512xbf16, #tpu.memory_space<vmem>>, vector<32x16xbf16>
    tpu.vector_store %arg13[%c0_110, %c417_111], %192 {strides = array<i32>} : memref<32x512xbf16, #tpu.memory_space<vmem>>, vector<32x16xbf16>,
    %c0_112 = arith.constant 0 : index
    %c109_113 = arith.constant 109 : index
    %194 = vector.load %arg13[%c0_112, %c109_113] : memref<32x512xbf16, #tpu.memory_space<vmem>>, vector<32x324xbf16>
    %c0_114 = arith.constant 0 : index
    %c110_115 = arith.constant 110 : index
    %195 = vector.load %arg13[%c0_114, %c110_115] : memref<32x512xbf16, #tpu.memory_space<vmem>>, vector<32x324xbf16>
    %c0_116 = arith.constant 0 : index
    %c111_117 = arith.constant 111 : index
    %196 = vector.load %arg13[%c0_116, %c111_117] : memref<32x512xbf16, #tpu.memory_space<vmem>>, vector<32x324xbf16>
    %c0_118 = arith.constant 0 : index
    %c127_119 = arith.constant 127 : index
    %197 = vector.load %arg13[%c0_118, %c127_119] : memref<32x512xbf16, #tpu.memory_space<vmem>>, vector<32x324xbf16>
    %c0_120 = arith.constant 0 : index
    %c128_121 = arith.constant 128 : index
    %198 = vector.load %arg13[%c0_120, %c128_121] : memref<32x512xbf16, #tpu.memory_space<vmem>>, vector<32x324xbf16>
    %c0_122 = arith.constant 0 : index
    %c129_123 = arith.constant 129 : index
    %199 = vector.load %arg13[%c0_122, %c129_123] : memref<32x512xbf16, #tpu.memory_space<vmem>>, vector<32x324xbf16>
    %c0_124 = arith.constant 0 : index
    %c145_125 = arith.constant 145 : index
    %200 = vector.load %arg13[%c0_124, %c145_125] : memref<32x512xbf16, #tpu.memory_space<vmem>>, vector<32x324xbf16>
    %c0_126 = arith.constant 0 : index
    %c146_127 = arith.constant 146 : index
    %201 = vector.load %arg13[%c0_126, %c146_127] : memref<32x512xbf16, #tpu.memory_space<vmem>>, vector<32x324xbf16>
    %c0_128 = arith.constant 0 : index
    %c147_129 = arith.constant 147 : index
    %202 = vector.load %arg13[%c0_128, %c147_129] : memref<32x512xbf16, #tpu.memory_space<vmem>>, vector<32x324xbf16>
    %203 = tpu.concatenate %194, %195, %196, %197, %198, %199, %200, %201, %202 in 0 : vector<32x324xbf16>, vector<32x324xbf16>, vector<32x324xbf16>, vector<32x324xbf16>, vector<32x324xbf16>, vector<32x324xbf16>, vector<32x324xbf16>, vector<32x324xbf16>, vector<32x324xbf16> -> vector<288x324xbf16>
    %c0_130 = arith.constant 0 : index
    %c0_131 = arith.constant 0 : index
    %204 = vector.load %arg9[%c0_130, %c0_131] : memref<32x288xbf16, #tpu.memory_space<vmem>>, vector<32x288xbf16>
    %cst_132 = arith.constant dense<0.000000e+00> : vector<32x324xf32>
    %205 = tpu.matmul %204, %203, %cst_132 {dimension_numbers = #tpu.dot_dimension_numbers<[1], [0], [0], [1], [0, 0, 1, 1], [], []>} : vector<32x288xbf16>, vector<288x324xbf16>, vector<32x324xf32> -> vector<32x324xf32>
    %c0_133 = arith.constant 0 : index
    %c0_134 = arith.constant 0 : index
    %206 = vector.load %arg10[%c0_133, %c0_134] : memref<32x1xf32, #tpu.memory_space<vmem>>, vector<32x1xf32>
    %207 = vector.broadcast %206 : vector<32x1xf32> to vector<32x324xf32>
    %208 = arith.addf %205, %207 : vector<32x324xf32>
    %cst_135 = arith.constant 0.000000e+00 : f32
    %209 = vector.broadcast %cst_135 : f32 to vector<32x324xf32>
    %210 = arith.maximumf %208, %209 : vector<32x324xf32>
    %211 = vector.extract_strided_slice %210 {offsets = [0, 19], sizes = [32, 16], strides = [1, 1]} : vector<32x324xf32> to vector<32x16xf32>
    %212 = vector.extract_strided_slice %210 {offsets = [0, 37], sizes = [32, 16], strides = [1, 1]} : vector<32x324xf32> to vector<32x16xf32>
    %213 = vector.extract_strided_slice %210 {offsets = [0, 55], sizes = [32, 16], strides = [1, 1]} : vector<32x324xf32> to vector<32x16xf32>
    %214 = vector.extract_strided_slice %210 {offsets = [0, 73], sizes = [32, 16], strides = [1, 1]} : vector<32x324xf32> to vector<32x16xf32>
    %215 = vector.extract_strided_slice %210 {offsets = [0, 91], sizes = [32, 16], strides = [1, 1]} : vector<32x324xf32> to vector<32x16xf32>
    %216 = vector.extract_strided_slice %210 {offsets = [0, 109], sizes = [32, 16], strides = [1, 1]} : vector<32x324xf32> to vector<32x16xf32>
    %217 = vector.extract_strided_slice %210 {offsets = [0, 127], sizes = [32, 16], strides = [1, 1]} : vector<32x324xf32> to vector<32x16xf32>
    %218 = vector.extract_strided_slice %210 {offsets = [0, 145], sizes = [32, 16], strides = [1, 1]} : vector<32x324xf32> to vector<32x16xf32>
    %219 = vector.extract_strided_slice %210 {offsets = [0, 163], sizes = [32, 16], strides = [1, 1]} : vector<32x324xf32> to vector<32x16xf32>
    %220 = vector.extract_strided_slice %210 {offsets = [0, 181], sizes = [32, 16], strides = [1, 1]} : vector<32x324xf32> to vector<32x16xf32>
    %221 = vector.extract_strided_slice %210 {offsets = [0, 199], sizes = [32, 16], strides = [1, 1]} : vector<32x324xf32> to vector<32x16xf32>
    %222 = vector.extract_strided_slice %210 {offsets = [0, 217], sizes = [32, 16], strides = [1, 1]} : vector<32x324xf32> to vector<32x16xf32>
    %223 = vector.extract_strided_slice %210 {offsets = [0, 235], sizes = [32, 16], strides = [1, 1]} : vector<32x324xf32> to vector<32x16xf32>
    %224 = vector.extract_strided_slice %210 {offsets = [0, 253], sizes = [32, 16], strides = [1, 1]} : vector<32x324xf32> to vector<32x16xf32>
    %225 = vector.extract_strided_slice %210 {offsets = [0, 271], sizes = [32, 16], strides = [1, 1]} : vector<32x324xf32> to vector<32x16xf32>
    %226 = vector.extract_strided_slice %210 {offsets = [0, 289], sizes = [32, 16], strides = [1, 1]} : vector<32x324xf32> to vector<32x16xf32>
    %227 = tpu.concatenate %211, %212, %213, %214, %215, %216, %217, %218, %219, %220, %221, %222, %223, %224, %225, %226 in 1 : vector<32x16xf32>, vector<32x16xf32>, vector<32x16xf32>, vector<32x16xf32>, vector<32x16xf32>, vector<32x16xf32>, vector<32x16xf32>, vector<32x16xf32>, vector<32x16xf32>, vector<32x16xf32>, vector<32x16xf32>, vector<32x16xf32>, vector<32x16xf32>, vector<32x16xf32>, vector<32x16xf32>, vector<32x16xf32> -> vector<32x256xf32>
    %c0_136 = arith.constant 0 : index
    %c0_137 = arith.constant 0 : index
    %c0_138 = arith.constant 0 : index
    %228 = vector.load %arg11[%c0_136, %c0_137, %c0_138] : memref<1x32x256xf32, #tpu.memory_space<vmem>>, vector<1x32x256xf32>
    %229 = vector.shape_cast %228 : vector<1x32x256xf32> to vector<32x256xf32>
    %230 = vector.shape_cast %227 : vector<32x256xf32> to vector<1x32x256xf32>
    tpu.vector_store %arg11[%c0_136, %c0_137, %c0_138], %230 {strides = array<i32>} : memref<1x32x256xf32, #tpu.memory_space<vmem>>, vector<1x32x256xf32>,
    return
  }
  func.func @transform_0(%arg0: i32) -> (i32, i32, i32, i32) {
    %c0_i32 = arith.constant 0 : i32
    %c0_i32_0 = arith.constant 0 : i32
    %c0_i32_1 = arith.constant 0 : i32
    %c0_i32_2 = arith.constant 0 : i32
    return %arg0, %c0_i32, %c0_i32_0, %c0_i32_1 : i32, i32, i32, i32
  }
  func.func @transform_1(%arg0: i32) -> (i32, i32, i32) {
    %c0_i32 = arith.constant 0 : i32
    %c0_i32_0 = arith.constant 0 : i32
    %c0_i32_1 = arith.constant 0 : i32
    return %arg0, %c0_i32, %c0_i32_0 : i32, i32, i32
  }
  func.func @transform_2(%arg0: i32) -> (i32, i32, i32) {
    %c0_i32 = arith.constant 0 : i32
    %c0_i32_0 = arith.constant 0 : i32
    %c0_i32_1 = arith.constant 0 : i32
    return %arg0, %c0_i32, %c0_i32_0 : i32, i32, i32
  }
  func.func @transform_3(%arg0: i32) -> (i32, i32, i32) {
    %c0_i32 = arith.constant 0 : i32
    %c0_i32_0 = arith.constant 0 : i32
    %c0_i32_1 = arith.constant 0 : i32
    %c0_i32_2 = arith.constant 0 : i32
    return %c0_i32, %c0_i32_0, %c0_i32_1 : i32, i32, i32
  }
  func.func @transform_4(%arg0: i32) -> (i32, i32) {
    %c0_i32 = arith.constant 0 : i32
    %c0_i32_0 = arith.constant 0 : i32
    %c0_i32_1 = arith.constant 0 : i32
    return %c0_i32, %c0_i32_0 : i32, i32
  }
  func.func @transform_5(%arg0: i32) -> (i32, i32) {
    %c0_i32 = arith.constant 0 : i32
    %c0_i32_0 = arith.constant 0 : i32
    %c0_i32_1 = arith.constant 0 : i32
    return %c0_i32, %c0_i32_0 : i32, i32
  }
  func.func @transform_6(%arg0: i32) -> (i32, i32) {
    %c0_i32 = arith.constant 0 : i32
    %c0_i32_0 = arith.constant 0 : i32
    %c0_i32_1 = arith.constant 0 : i32
    return %c0_i32, %c0_i32_0 : i32, i32
  }
  func.func @transform_7(%arg0: i32) -> (i32, i32) {
    %c0_i32 = arith.constant 0 : i32
    %c0_i32_0 = arith.constant 0 : i32
    %c0_i32_1 = arith.constant 0 : i32
    return %c0_i32, %c0_i32_0 : i32, i32
  }
  func.func @transform_8(%arg0: i32) -> (i32, i32) {
    %c0_i32 = arith.constant 0 : i32
    %c0_i32_0 = arith.constant 0 : i32
    %c0_i32_1 = arith.constant 0 : i32
    return %c0_i32, %c0_i32_0 : i32, i32
  }
  func.func @transform_9(%arg0: i32) -> (i32, i32) {
    %c0_i32 = arith.constant 0 : i32
    %c0_i32_0 = arith.constant 0 : i32
    %c0_i32_1 = arith.constant 0 : i32
    return %c0_i32, %c0_i32_0 : i32, i32
  }
  func.func @transform_10(%arg0: i32) -> (i32, i32, i32) {
    %c0_i32 = arith.constant 0 : i32
    %c0_i32_0 = arith.constant 0 : i32
    %c0_i32_1 = arith.constant 0 : i32
    return %arg0, %c0_i32, %c0_i32_0 : i32, i32, i32
  }
}

</mosaic_0001>

<llo_original>
// kernel: single_head_forward.1
$region0: #{single_head_forward.1}
  #allocation0 [shape = 'u32[]', space=smem, size = 0x4, offset = 0x4, fixed_abs, tag = 'smem constant byte address 0x4 - core index']
  #allocation1 [shape = 'u32[144,128]{1,0:T(1,128)}', space=vmem, size = 0x12000, scoped, tag = 'internal scratch']
  #allocation2 [shape = 'bf16[32,512]{1,0:T(8,128)(2,1)}', space=vmem, size = 0x8000, scoped, tag = 'scratch operand']
  #allocation3 [shape = 'bf16[32,512]{1,0:T(8,128)(2,1)}', space=vmem, size = 0x8000, scoped, tag = 'scratch operand']
  %s0 = inlined_call_operand.vmem [shape: f32[2,4,16,16], index: 0, kind: input, shape index: {}]
  %s1 = inlined_call_operand.vmem [shape: f32[2,4,256], index: 1, kind: input, shape index: {}]
  %s2 = inlined_call_operand.vmem [shape: f32[2,32,32], index: 2, kind: input, shape index: {}]
  %s3 = inlined_call_operand.vmem [shape: f32[4,16,16], index: 3, kind: input, shape index: {}]
  %s4 = inlined_call_operand.vmem [shape: f32[16,32], index: 4, kind: input, shape index: {}]
  %s5 = inlined_call_operand.vmem [shape: f32[32,16], index: 5, kind: input, shape index: {}]
  %s6 = inlined_call_operand.vmem [shape: bf16[32,144], index: 6, kind: input, shape index: {}]
  %s7 = inlined_call_operand.vmem [shape: f32[32,1], index: 7, kind: input, shape index: {}]
  %s8 = inlined_call_operand.vmem [shape: bf16[32,288], index: 8, kind: input, shape index: {}]
  %s9 = inlined_call_operand.vmem [shape: f32[32,1], index: 9, kind: input, shape index: {}]
  %s10 = inlined_call_operand.vmem [shape: f32[2,32,256], index: 10, kind: output, shape index: {}]
  %s11 = sld [smem:[#allocation0]]
  $region73: #{single_head_forward.1} parent=0
    _
  %s13 = ssub.s32 1, %s11
  %s14 = scalar_select 0, %s13, %s11
  loop: start=0, step=1, limit=4
  $region2: #{single_head_forward.1} parent=0 // loop_pre_header
    _
  $region3: #{single_head_forward.1} parent=0 // loop_header
    %s16 = sphi 0, %s20
    %p17 = scmp.ge.s32.totalorder %s16, 4
    %s26 = sphi 0, %s28
    %s29 = sphi 0, %s26
    %s30 = sphi 0, %s29
    %s46 = sphi 0, %s30
    %s52 = sphi 0, %s54
    %s55 = sphi 0, %s52
    %s56 = sphi 0, %s55
    %s72 = sphi 0, %s56
    %s78 = sphi 0, %s80
    %s81 = sphi 0, %s78
    %s82 = sphi 0, %s81
    %s98 = sphi 0, %s82
    %s102 = sphi 0, %s102
    %s104 = sphi 0, %s102
    %s105 = sphi 0, %s104
    %s119 = sphi 0, %s105
    %s123 = sphi 0, %s123
    %s125 = sphi 0, %s123
    %s126 = sphi 0, %s125
    %s140 = sphi 0, %s126
    %s144 = sphi 0, %s144
    %s146 = sphi 0, %s144
    %s147 = sphi 0, %s146
    %s161 = sphi 0, %s147
    %s165 = sphi 0, %s165
    %s167 = sphi 0, %s165
    %s168 = sphi 0, %s167
    %s182 = sphi 0, %s168
    %s186 = sphi 0, %s186
    %s188 = sphi 0, %s186
    %s189 = sphi 0, %s188
    %s203 = sphi 0, %s189
    %s207 = sphi 0, %s207
    %s209 = sphi 0, %s207
    %s210 = sphi 0, %s209
    %s224 = sphi 0, %s210
    %s228 = sphi 0, %s228
    %s230 = sphi 0, %s228
    %s231 = sphi 0, %s230
    %s245 = sphi 0, %s231
    %s251 = sphi 0, %s253
    %s254 = sphi 0, %s251
    %s255 = sphi 0, %s254
    %s271 = sphi 0, %s255
  $region4: #{single_head_forward.1} parent=0 // loop_header_branch
    %19 = sbr.rel (%p17) target = $region8
  $region5: #{single_head_forward.1} parent=0 // loop_body
    %s21 = ssub.s32 %s16, 1
    %s22 = ssub.s32 %s16, 2
    %s23 = sadd.s32 %s16, 1
    %s24 = ssub.s32 %s16, %s23
    %p25 = scmp.eq.s32.totalorder %s24, 0
    %s27 = sadd.s32 %s26, 1
    %s28 = scalar_select %p25, %s26, %s27
    %p31 = pneg %p25
    %p32 = scmp.eq.s32.totalorder %s16, 1
    %p33 = por %p31, %p32
    %p34 = scmp.ne.s32.totalorder %s26, %s29
    %p35 = scmp.eq.s32.totalorder %s16, 0
    %p36 = por %p34, %p35
    %p37 = scmp.ne.s32.totalorder %s26, %s29
    %p38 = scmp.eq.s32.totalorder %s21, 1
    %p39 = por %p37, %p38
    %p40 = scmp.ne.s32.totalorder %s29, %s30
    %p41 = scmp.eq.s32.totalorder %s21, 0
    %p42 = por %p40, %p41
    %p43 = scmp.ne.s32.totalorder %s29, %s30
    %p44 = scmp.eq.s32.totalorder %s22, 1
    %p45 = por %p43, %p44
    %p47 = scmp.ne.s32.totalorder %s30, %s46
    %p48 = scmp.eq.s32.totalorder %s22, 0
    %p49 = por %p47, %p48
    %s50 = ssub.s32 %s16, %s23
    %p51 = scmp.eq.s32.totalorder %s50, 0
    %s53 = sadd.s32 %s52, 1
    %s54 = scalar_select %p51, %s52, %s53
    %p57 = pneg %p51
    %p58 = scmp.eq.s32.totalorder %s16, 1
    %p59 = por %p57, %p58
    %p60 = scmp.ne.s32.totalorder %s52, %s55
    %p61 = scmp.eq.s32.totalorder %s16, 0
    %p62 = por %p60, %p61
    %p63 = scmp.ne.s32.totalorder %s52, %s55
    %p64 = scmp.eq.s32.totalorder %s21, 1
    %p65 = por %p63, %p64
    %p66 = scmp.ne.s32.totalorder %s55, %s56
    %p67 = scmp.eq.s32.totalorder %s21, 0
    %p68 = por %p66, %p67
    %p69 = scmp.ne.s32.totalorder %s55, %s56
    %p70 = scmp.eq.s32.totalorder %s22, 1
    %p71 = por %p69, %p70
    %p73 = scmp.ne.s32.totalorder %s56, %s72
    %p74 = scmp.eq.s32.totalorder %s22, 0
    %p75 = por %p73, %p74
    %s76 = ssub.s32 %s16, %s23
    %p77 = scmp.eq.s32.totalorder %s76, 0
    %s79 = sadd.s32 %s78, 1
    %s80 = scalar_select %p77, %s78, %s79
    %p83 = pneg %p77
    %p84 = scmp.eq.s32.totalorder %s16, 1
    %p85 = por %p83, %p84
    %p86 = scmp.ne.s32.totalorder %s78, %s81
    %p87 = scmp.eq.s32.totalorder %s16, 0
    %p88 = por %p86, %p87
    %p89 = scmp.ne.s32.totalorder %s78, %s81
    %p90 = scmp.eq.s32.totalorder %s21, 1
    %p91 = por %p89, %p90
    %p92 = scmp.ne.s32.totalorder %s81, %s82
    %p93 = scmp.eq.s32.totalorder %s21, 0
    %p94 = por %p92, %p93
    %p95 = scmp.ne.s32.totalorder %s81, %s82
    %p96 = scmp.eq.s32.totalorder %s22, 1
    %p97 = por %p95, %p96
    %p99 = scmp.ne.s32.totalorder %s82, %s98
    %p100 = scmp.eq.s32.totalorder %s22, 0
    %p101 = por %p99, %p100
    %s103 = sadd.s32 %s102, 1
    %p106 = scmp.eq.s32.totalorder %s16, 1
    %p107 = scmp.ne.s32.totalorder %s102, %s104
    %p108 = scmp.eq.s32.totalorder %s16, 0
    %p109 = por %p107, %p108
    %p110 = scmp.ne.s32.totalorder %s102, %s104
    %p111 = scmp.eq.s32.totalorder %s21, 1
    %p112 = por %p110, %p111
    %p113 = scmp.ne.s32.totalorder %s104, %s105
    %p114 = scmp.eq.s32.totalorder %s21, 0
    %p115 = por %p113, %p114
    %p116 = scmp.ne.s32.totalorder %s104, %s105
    %p117 = scmp.eq.s32.totalorder %s22, 1
    %p118 = por %p116, %p117
    %p120 = scmp.ne.s32.totalorder %s105, %s119
    %p121 = scmp.eq.s32.totalorder %s22, 0
    %p122 = por %p120, %p121
    %s124 = sadd.s32 %s123, 1
    %p127 = scmp.eq.s32.totalorder %s16, 1
    %p128 = scmp.ne.s32.totalorder %s123, %s125
    %p129 = scmp.eq.s32.totalorder %s16, 0
    %p130 = por %p128, %p129
    %p131 = scmp.ne.s32.totalorder %s123, %s125
    %p132 = scmp.eq.s32.totalorder %s21, 1
    %p133 = por %p131, %p132
    %p134 = scmp.ne.s32.totalorder %s125, %s126
    %p135 = scmp.eq.s32.totalorder %s21, 0
    %p136 = por %p134, %p135
    %p137 = scmp.ne.s32.totalorder %s125, %s126
    %p138 = scmp.eq.s32.totalorder %s22, 1
    %p139 = por %p137, %p138
    %p141 = scmp.ne.s32.totalorder %s126, %s140
    %p142 = scmp.eq.s32.totalorder %s22, 0
    %p143 = por %p141, %p142
    %s145 = sadd.s32 %s144, 1
    %p148 = scmp.eq.s32.totalorder %s16, 1
    %p149 = scmp.ne.s32.totalorder %s144, %s146
    %p150 = scmp.eq.s32.totalorder %s16, 0
    %p151 = por %p149, %p150
    %p152 = scmp.ne.s32.totalorder %s144, %s146
    %p153 = scmp.eq.s32.totalorder %s21, 1
    %p154 = por %p152, %p153
    %p155 = scmp.ne.s32.totalorder %s146, %s147
    %p156 = scmp.eq.s32.totalorder %s21, 0
    %p157 = por %p155, %p156
    %p158 = scmp.ne.s32.totalorder %s146, %s147
    %p159 = scmp.eq.s32.totalorder %s22, 1
    %p160 = por %p158, %p159
    %p162 = scmp.ne.s32.totalorder %s147, %s161
    %p163 = scmp.eq.s32.totalorder %s22, 0
    %p164 = por %p162, %p163
    %s166 = sadd.s32 %s165, 1
    %p169 = scmp.eq.s32.totalorder %s16, 1
    %p170 = scmp.ne.s32.totalorder %s165, %s167
    %p171 = scmp.eq.s32.totalorder %s16, 0
    %p172 = por %p170, %p171
    %p173 = scmp.ne.s32.totalorder %s165, %s167
    %p174 = scmp.eq.s32.totalorder %s21, 1
    %p175 = por %p173, %p174
    %p176 = scmp.ne.s32.totalorder %s167, %s168
    %p177 = scmp.eq.s32.totalorder %s21, 0
    %p178 = por %p176, %p177
    %p179 = scmp.ne.s32.totalorder %s167, %s168
    %p180 = scmp.eq.s32.totalorder %s22, 1
    %p181 = por %p179, %p180
    %p183 = scmp.ne.s32.totalorder %s168, %s182
    %p184 = scmp.eq.s32.totalorder %s22, 0
    %p185 = por %p183, %p184
    %s187 = sadd.s32 %s186, 1
    %p190 = scmp.eq.s32.totalorder %s16, 1
    %p191 = scmp.ne.s32.totalorder %s186, %s188
    %p192 = scmp.eq.s32.totalorder %s16, 0
    %p193 = por %p191, %p192
    %p194 = scmp.ne.s32.totalorder %s186, %s188
    %p195 = scmp.eq.s32.totalorder %s21, 1
    %p196 = por %p194, %p195
    %p197 = scmp.ne.s32.totalorder %s188, %s189
    %p198 = scmp.eq.s32.totalorder %s21, 0
    %p199 = por %p197, %p198
    %p200 = scmp.ne.s32.totalorder %s188, %s189
    %p201 = scmp.eq.s32.totalorder %s22, 1
    %p202 = por %p200, %p201
    %p204 = scmp.ne.s32.totalorder %s189, %s203
    %p205 = scmp.eq.s32.totalorder %s22, 0
    %p206 = por %p204, %p205
    %s208 = sadd.s32 %s207, 1
    %p211 = scmp.eq.s32.totalorder %s16, 1
    %p212 = scmp.ne.s32.totalorder %s207, %s209
    %p213 = scmp.eq.s32.totalorder %s16, 0
    %p214 = por %p212, %p213
    %p215 = scmp.ne.s32.totalorder %s207, %s209
    %p216 = scmp.eq.s32.totalorder %s21, 1
    %p217 = por %p215, %p216
    %p218 = scmp.ne.s32.totalorder %s209, %s210
    %p219 = scmp.eq.s32.totalorder %s21, 0
    %p220 = por %p218, %p219
    %p221 = scmp.ne.s32.totalorder %s209, %s210
    %p222 = scmp.eq.s32.totalorder %s22, 1
    %p223 = por %p221, %p222
    %p225 = scmp.ne.s32.totalorder %s210, %s224
    %p226 = scmp.eq.s32.totalorder %s22, 0
    %p227 = por %p225, %p226
    %s229 = sadd.s32 %s228, 1
    %p232 = scmp.eq.s32.totalorder %s16, 1
    %p233 = scmp.ne.s32.totalorder %s228, %s230
    %p234 = scmp.eq.s32.totalorder %s16, 0
    %p235 = por %p233, %p234
    %p236 = scmp.ne.s32.totalorder %s228, %s230
    %p237 = scmp.eq.s32.totalorder %s21, 1
    %p238 = por %p236, %p237
    %p239 = scmp.ne.s32.totalorder %s230, %s231
    %p240 = scmp.eq.s32.totalorder %s21, 0
    %p241 = por %p239, %p240
    %p242 = scmp.ne.s32.totalorder %s230, %s231
    %p243 = scmp.eq.s32.totalorder %s22, 1
    %p244 = por %p242, %p243
    %p246 = scmp.ne.s32.totalorder %s231, %s245
    %p247 = scmp.eq.s32.totalorder %s22, 0
    %p248 = por %p246, %p247
    %s249 = ssub.s32 %s16, %s23
    %p250 = scmp.eq.s32.totalorder %s249, 0
    %s252 = sadd.s32 %s251, 1
    %s253 = scalar_select %p250, %s251, %s252
    %p256 = pneg %p250
    %p257 = scmp.eq.s32.totalorder %s16, 1
    %p258 = por %p256, %p257
    %p259 = scmp.ne.s32.totalorder %s251, %s254
    %p260 = scmp.eq.s32.totalorder %s16, 0
    %p261 = por %p259, %p260
    %p262 = scmp.ne.s32.totalorder %s251, %s254
    %p263 = scmp.eq.s32.totalorder %s21, 1
    %p264 = por %p262, %p263
    %p265 = scmp.ne.s32.totalorder %s254, %s255
    %p266 = scmp.eq.s32.totalorder %s21, 0
    %p267 = por %p265, %p266
    %p268 = scmp.ne.s32.totalorder %s254, %s255
    %p269 = scmp.eq.s32.totalorder %s22, 1
    %p270 = por %p268, %p269
    %p272 = scmp.ne.s32.totalorder %s255, %s271
    %p273 = scmp.eq.s32.totalorder %s22, 0
    %p274 = por %p272, %p273
    %p275 = scmp.le.s32.totalorder 1, %s16
    %p276 = scmp.lt.s32.totalorder %s16, 3
    %p277 = pnand %p275, %p276
    %p278 = pneg %p277
    // Predicated region
    $region9: #{single_head_forward.1} parent=5 // pred_check
      _
    $region10: #{single_head_forward.1} parent=5 // pred_check_branch
      %280 = sbr.rel (%p277) target = $region12
    $region11: #{single_head_forward.1} parent=5 // pred_region
      %s281 = ssub.s32 %s16, 1
      // Predicated region
      $region13: #{single_head_forward.1} parent=11 // pred_check
        %p282 = pneg %p115
      $region14: #{single_head_forward.1} parent=11 // pred_check_branch
        %284 = sbr.rel (%p282) target = $region16
      $region15: #{single_head_forward.1} parent=11 // pred_region
        _
      $region16: #{single_head_forward.1} parent=11 // pred_fallthru
        _
      // Predicated region
      $region17: #{single_head_forward.1} parent=11 // pred_check
        %p285 = pneg %p136
      $region18: #{single_head_forward.1} parent=11 // pred_check_branch
        %287 = sbr.rel (%p285) target = $region20
      $region19: #{single_head_forward.1} parent=11 // pred_region
        _
      $region20: #{single_head_forward.1} parent=11 // pred_fallthru
        _
      // Predicated region
      $region21: #{single_head_forward.1} parent=11 // pred_check
        %p288 = pneg %p157
      $region22: #{single_head_forward.1} parent=11 // pred_check_branch
        %290 = sbr.rel (%p288) target = $region24
      $region23: #{single_head_forward.1} parent=11 // pred_region
        _
      $region24: #{single_head_forward.1} parent=11 // pred_fallthru
        _
      // Predicated region
      $region25: #{single_head_forward.1} parent=11 // pred_check
        %p291 = pneg %p178
      $region26: #{single_head_forward.1} parent=11 // pred_check_branch
        %293 = sbr.rel (%p291) target = $region28
      $region27: #{single_head_forward.1} parent=11 // pred_region
        _
      $region28: #{single_head_forward.1} parent=11 // pred_fallthru
        _
      // Predicated region
      $region29: #{single_head_forward.1} parent=11 // pred_check
        %p294 = pneg %p199
      $region30: #{single_head_forward.1} parent=11 // pred_check_branch
        %296 = sbr.rel (%p294) target = $region32
      $region31: #{single_head_forward.1} parent=11 // pred_region
        _
      $region32: #{single_head_forward.1} parent=11 // pred_fallthru
        _
      // Predicated region
      $region33: #{single_head_forward.1} parent=11 // pred_check
        %p297 = pneg %p220
      $region34: #{single_head_forward.1} parent=11 // pred_check_branch
        %299 = sbr.rel (%p297) target = $region36
      $region35: #{single_head_forward.1} parent=11 // pred_region
        _
      $region36: #{single_head_forward.1} parent=11 // pred_fallthru
        _
      // Predicated region
      $region37: #{single_head_forward.1} parent=11 // pred_check
        %p300 = pneg %p241
      $region38: #{single_head_forward.1} parent=11 // pred_check_branch
        %302 = sbr.rel (%p300) target = $region40
      $region39: #{single_head_forward.1} parent=11 // pred_region
        _
      $region40: #{single_head_forward.1} parent=11 // pred_fallthru
        _
    $region12: #{single_head_forward.1} parent=5 // pred_fallthru
      _
    %p303 = scmp.lt.s32.totalorder %s16, 2
    // Predicated region
    $region41: #{single_head_forward.1} parent=5 // pred_check
      %p304 = pneg %p303
    $region42: #{single_head_forward.1} parent=5 // pred_check_branch
      %306 = sbr.rel (%p304) target = $region44
    $region43: #{single_head_forward.1} parent=5 // pred_region
      // Predicated region
      $region45: #{single_head_forward.1} parent=43 // pred_check
        %p307 = pneg %p36
      $region46: #{single_head_forward.1} parent=43 // pred_check_branch
        %309 = sbr.rel (%p307) target = $region48
      $region47: #{single_head_forward.1} parent=43 // pred_region
        %p310 = scmp.lt.s32.totalorder %s16, 1
        %s311 = scalar_select %p310, %s16, 1
        %s312 = smul.addr %s311, 8
        %s313 = smul.addr %s312, 8
        %s314 = scalar_lea.vmem %s0, %s313
      $region48: #{single_head_forward.1} parent=43 // pred_fallthru
        _
      // Predicated region
      $region49: #{single_head_forward.1} parent=43 // pred_check
        %p315 = pneg %p62
      $region50: #{single_head_forward.1} parent=43 // pred_check_branch
        %317 = sbr.rel (%p315) target = $region52
      $region51: #{single_head_forward.1} parent=43 // pred_region
        %p318 = scmp.lt.s32.totalorder %s16, 1
        %s319 = scalar_select %p318, %s16, 1
        %s320 = smul.addr %s319, 2
        %s321 = smul.addr %s320, 4
        %s322 = scalar_lea.vmem %s1, %s321
      $region52: #{single_head_forward.1} parent=43 // pred_fallthru
        _
      // Predicated region
      $region53: #{single_head_forward.1} parent=43 // pred_check
        %p323 = pneg %p88
      $region54: #{single_head_forward.1} parent=43 // pred_check_branch
        %325 = sbr.rel (%p323) target = $region56
      $region55: #{single_head_forward.1} parent=43 // pred_region
        %p326 = scmp.lt.s32.totalorder %s16, 1
        %s327 = scalar_select %p326, %s16, 1
        %s328 = smul.addr %s327, 4
        %s329 = smul.addr %s328, 8
        %s330 = scalar_lea.vmem %s2, %s329
      $region56: #{single_head_forward.1} parent=43 // pred_fallthru
        _
    $region44: #{single_head_forward.1} parent=5 // pred_fallthru
      _
    %p331 = scmp.le.s32.totalorder 1, %s16
    %p332 = scmp.lt.s32.totalorder %s16, 3
    %p333 = pnand %p331, %p332
    %p334 = pneg %p333
    // Predicated region
    $region57: #{single_head_forward.1} parent=5 // pred_check
      _
    $region58: #{single_head_forward.1} parent=5 // pred_check_branch
      %336 = sbr.rel (%p333) target = $region60
    $region59: #{single_head_forward.1} parent=5 // pred_region
      %s337 = ssub.s32 %s16, 1
      %p338 = scmp.lt.s32.totalorder %s21, 1
      %s339 = scalar_select %p338, %s21, 1
      %s340 = smul.addr %s339, 8
      %s341 = smul.addr %s340, 8
      %s342 = scalar_lea.vmem %s0, %s341
      %p343 = pneg %p42
      %p344 = pneg %p39
      %p345 = scmp.lt.s32.totalorder %s21, 1
      %s346 = scalar_select %p345, %s21, 1
      %s347 = smul.addr %s346, 2
      %s348 = smul.addr %s347, 4
      %s349 = scalar_lea.vmem %s1, %s348
      %p350 = pneg %p68
      %p351 = pneg %p65
      %p352 = scmp.lt.s32.totalorder %s21, 1
      %s353 = scalar_select %p352, %s21, 1
      %s354 = smul.addr %s353, 4
      %s355 = smul.addr %s354, 8
      %s356 = scalar_lea.vmem %s2, %s355
      %p357 = pneg %p94
      %p358 = pneg %p91
      %p359 = pneg %p115
      %p360 = pneg %p112
      %p361 = pneg %p136
      %p362 = pneg %p133
      %p363 = pneg %p157
      %p364 = pneg %p154
      %p365 = pneg %p178
      %p366 = pneg %p175
      %p367 = pneg %p199
      %p368 = pneg %p196
      %p369 = pneg %p220
      %p370 = pneg %p217
      %p371 = pneg %p241
      %p372 = pneg %p238
      %p373 = pneg %p267
      %p374 = pneg %p264
      %p375 = scmp.lt.s32.totalorder %s21, 1
      %s376 = scalar_select %p375, %s21, 1
      %s377 = smul.addr %s376, 8
      %s378 = smul.addr %s377, 8
      %s379 = scalar_lea.vmem %s10, %s378
      %p380 = scmp.lt.s32.totalorder %s21, 1
      %s381 = scalar_select %p380, %s21, 1
      %s382 = smul.addr %s381, 8
      %s383 = smul.addr %s382, 8
      %s384 = scalar_lea.vmem %s0, %s383
      %p385 = scmp.lt.s32.totalorder %s21, 1
      %s386 = scalar_select %p385, %s21, 1
      %s387 = smul.addr %s386, 2
      %s388 = smul.addr %s387, 4
      %s389 = scalar_lea.vmem %s1, %s388
      %p390 = scmp.lt.s32.totalorder %s21, 1
      %s391 = scalar_select %p390, %s21, 1
      %s392 = smul.addr %s391, 4
      %s393 = smul.addr %s392, 8
      %s394 = scalar_lea.vmem %s2, %s393
      %p395 = scmp.lt.s32.totalorder %s21, 1
      %s396 = scalar_select %p395, %s21, 1
      %s397 = smul.addr %s396, 8
      %s398 = smul.addr %s397, 8
      %s399 = scalar_lea.vmem %s10, %s398
      %401 = vst [vmem:[#allocation2] sm:$0xff] 0
      %402 = vst [vmem:[#allocation2 + $0x8] sm:$0xff] 0
      %403 = vst [vmem:[#allocation2 + $0x10] sm:$0xff] 0
      %404 = vst [vmem:[#allocation2 + $0x18] sm:$0xff] 0
      %405 = vst [vmem:[#allocation2 + $0x20] sm:$0xff] 0
      %406 = vst [vmem:[#allocation2 + $0x28] sm:$0xff] 0
      %407 = vst [vmem:[#allocation2 + $0x30] sm:$0xff] 0
      %408 = vst [vmem:[#allocation2 + $0x38] sm:$0xff] 0
      %409 = vst [vmem:[#allocation3] sm:$0xff] 0
      %410 = vst [vmem:[#allocation3 + $0x8] sm:$0xff] 0
      %411 = vst [vmem:[#allocation3 + $0x10] sm:$0xff] 0
      %412 = vst [vmem:[#allocation3 + $0x18] sm:$0xff] 0
      %413 = vst [vmem:[#allocation3 + $0x20] sm:$0xff] 0
      %414 = vst [vmem:[#allocation3 + $0x28] sm:$0xff] 0
      %415 = vst [vmem:[#allocation3 + $0x30] sm:$0xff] 0
      %416 = vst [vmem:[#allocation3 + $0x38] sm:$0xff] 0
      %v417 = vld [vmem:[%s389] sm:$0xff]
      %v419 = vcombine.high %v417, %v417
      %vm421 = vcmask 1043456
      %v422 = vsel %vm421, %v417, -inf
      %v423 = vsel %vm421, %v419, -inf
      %v424 = vmax.f32 %v422, %v423
      %425 = vmax.xlane.f32.xlu0 %v424
      %v426 = vpop.xlane.xlu0 %425
      %v427 = vsel %vm421, %v426, -inf
      %v428 = vrot.slane %v427, 4
      %v429 = vmax.f32 %v427, %v428
      %v430 = vrot.slane %v429, 2
      %v431 = vmax.f32 %v429, %v430
      %v432 = vrot.slane %v431, 1
      %v433 = vmax.f32 %v431, %v432
      %v434 = vlaneseq
      %v435 = vshrl.u32 %v434, 7
      %v436 = vcvt.s32.f32 %v435
      %v437 = vlaneseq
      %v438 = vand.u32 %v437, 127
      %v439 = vadd.s32 %v438, 128
      %v440 = vcvt.s32.f32 %v438
      %v441 = vcvt.s32.f32 %v439
      %vm442 = vcmp.eq.f32.partialorder %v417, %v433
      %v443 = vmul.f32 %v436, 256.0
      %v444 = vadd.f32 %v443, %v440
      %v445 = vadd.f32 %v443, %v441
      %v448 = vcombine.low %v444, %v445
      %v450 = vsel %vm442, %v448, 1024.0
      %v452 = vcombine.high %v450, %v450
      %v454 = vsel %vm421, %v450, inf
      %v455 = vsel %vm421, %v452, inf
      %v456 = vmin.f32 %v454, %v455
      %457 = vmin.xlane.f32.xlu0 %v456
      %v458 = vpop.xlane.xlu0 %457
      %v459 = vsel %vm421, %v458, inf
      %v460 = vrot.slane %v459, 4
      %v461 = vmin.f32 %v459, %v460
      %v462 = vrot.slane %v461, 2
      %v463 = vmin.f32 %v461, %v462
      %v464 = vrot.slane %v463, 1
      %v465 = vmin.f32 %v463, %v464
      %v466 = vrcp.pop 256.0
      %v467 = vmul.f32 %v465, %v466
      %v468 = vfloor.f32 %v467
      %v469 = vmul.f32 %v468, 256.0
      %v470 = vsub.f32 %v465, %v469
      %v471 = vrcp.pop 16.0
      %v472 = vmul.f32 %v470, %v471
      %v473 = vfloor.f32 %v472
      %v474 = vmul.f32 %v473, 16.0
      %v475 = vsub.f32 %v470, %v474
      %v476 = vld [vmem:[%s394] sm:$0xff]
      %v477 = vld [vmem:[%s394 + $0x8] sm:$0xff]
      %v478 = vld [vmem:[%s394 + $0x10] sm:$0xff]
      %v479 = vld [vmem:[%s394 + $0x18] sm:$0xff]
      %v480 = vld [vmem:[%s5] sm:$0xff]
      %v481 = vld [vmem:[%s5 + $0x8] sm:$0xff]
      %v482 = vld [vmem:[%s5 + $0x10] sm:$0xff]
      %v483 = vld [vmem:[%s5 + $0x18] sm:$0xff]
      %vm484 = vcmask 261120
      %v486 = vsel %vm484, %v476, 0
      %v489 = vsel %vm484, %v477, 0
      %v492 = vsel %vm484, %v478, 0
      %v495 = vsel %vm484, %v479, 0
      %497 = vmatprep.subr.mxu0 0.0
      %498 = vmatpush1.msra.mxu0 0.0
      %499 = vmatprep.subr.mxu0 0.0
      %500 = vmatpush1.msra.mxu0 0.0
      %501 = vmatprep.subr.mxu0 0.0
      %502 = vmatpush1.msra.mxu0 0.0
      %503 = vmatprep.subr.mxu0 0.0
      %504 = vmatpush1.msra.mxu0 0.0
      %505 = vmatprep.subr.mxu0 0.0
      %506 = vmatpush1.msra.mxu0 0.0
      %507 = vmatprep.subr.mxu0 0.0
      %508 = vmatpush1.msra.mxu0 0.0
      %509 = vmatprep.subr.mxu0 0.0
      %510 = vmatpush1.msra.mxu0 0.0
      %511 = vmatprep.subr.mxu0 0.0
      %512 = vmatpush1.msra.mxu0 0.0
      %513 = vmatprep.subr.mxu0 0.0
      %514 = vmatpush1.msra.mxu0 0.0
      %515 = vmatprep.subr.mxu0 0.0
      %516 = vmatpush1.msra.mxu0 0.0
      %517 = vmatprep.subr.mxu0 0.0
      %518 = vmatpush1.msra.mxu0 0.0
      %519 = vmatprep.subr.mxu0 0.0
      %520 = vmatpush1.msra.mxu0 0.0
      %521 = vmatprep.subr.mxu0 0.0
      %522 = vmatpush1.msra.mxu0 %v483
      %523 = vmatprep.subr.mxu0 0.0
      %524 = vmatpush1.msra.mxu0 %v482
      %525 = vmatprep.subr.mxu0 0.0
      %526 = vmatpush1.msra.mxu0 %v481
      %527 = vmatprep.subr.mxu0 0.0
      %528 = vmatpush1.msra.mxu0 %v480
      %529 = vmatprep.subr.mxu0 0.0
      %530 = vmatpush2.msra.mxu0 0.0
      %531 = vmatprep.subr.mxu0 0.0
      %532 = vmatpush2.msra.mxu0 0.0
      %533 = vmatprep.subr.mxu0 0.0
      %534 = vmatpush2.msra.mxu0 0.0
      %535 = vmatprep.subr.mxu0 0.0
      %536 = vmatpush2.msra.mxu0 0.0
      %537 = vmatprep.subr.mxu0 0.0
      %538 = vmatpush2.msra.mxu0 0.0
      %539 = vmatprep.subr.mxu0 0.0
      %540 = vmatpush2.msra.mxu0 0.0
      %541 = vmatprep.subr.mxu0 0.0
      %542 = vmatpush2.msra.mxu0 0.0
      %543 = vmatprep.subr.mxu0 0.0
      %544 = vmatpush2.msra.mxu0 0.0
      %545 = vmatprep.subr.mxu0 0.0
      %546 = vmatpush2.msra.mxu0 0.0
      %547 = vmatprep.subr.mxu0 0.0
      %548 = vmatpush2.msra.mxu0 0.0
      %549 = vmatprep.subr.mxu0 0.0
      %550 = vmatpush2.msra.mxu0 0.0
      %551 = vmatprep.subr.mxu0 0.0
      %552 = vmatpush2.msra.mxu0 0.0
      %553 = vmatprep.subr.mxu0 0.0
      %554 = vmatpush2.msra.mxu0 0.0
      %555 = vmatprep.subr.mxu0 0.0
      %556 = vmatpush2.msra.mxu0 0.0
      %557 = vmatprep.subr.mxu0 0.0
      %558 = vmatpush2.msra.mxu0 0.0
      %559 = vmatprep.subr.mxu0 0.0
      %560 = vmatpush2.msra.mxu0 0.0
      %561 = vmatprep.mubr.f32.mxu0 0.0
      %562 = vmatmul.mubr.f32.gmra.mxu0 %v486
      %v563 = vpop.f32.mrf.mxu0
      %v564 = vadd.f32 0.0, %v563
      %v565 = vpop.f32.mrf.mxu0
      %566 = vmatprep.mubr.f32.mxu0 0.0
      %567 = vmatmul.mubr.f32.gmra.mxu0 %v489
      %v568 = vpop.f32.mrf.mxu0
      %v569 = vadd.f32 0.0, %v568
      %v570 = vpop.f32.mrf.mxu0
      %571 = vmatprep.mubr.f32.mxu0 0.0
      %572 = vmatmul.mubr.f32.gmra.mxu0 %v492
      %v573 = vpop.f32.mrf.mxu0
      %v574 = vadd.f32 0.0, %v573
      %v575 = vpop.f32.mrf.mxu0
      %576 = vmatprep.mubr.f32.mxu0 0.0
      %577 = vmatmul.mubr.f32.gmra.mxu0 %v495
      %v578 = vpop.f32.mrf.mxu0
      %v579 = vadd.f32 0.0, %v578
      %v580 = vpop.f32.mrf.mxu0
      %581 = vdwg.mxu0
      %v582 = vld [vmem:[%s4] sm:$0xff]
      %v583 = vld [vmem:[%s4 + $0x8] sm:$0xff]
      %v585 = vsel %vm484, %v582, 0
      %v588 = vsel %vm484, %v583, 0
      %590 = vmatprep.subr.mxu0 0.0
      %591 = vmatpush1.msra.mxu0 0.0
      %592 = vmatprep.subr.mxu0 0.0
      %593 = vmatpush1.msra.mxu0 0.0
      %594 = vmatprep.subr.mxu0 0.0
      %595 = vmatpush1.msra.mxu0 0.0
      %596 = vmatprep.subr.mxu0 0.0
      %597 = vmatpush1.msra.mxu0 0.0
      %598 = vmatprep.subr.mxu0 0.0
      %599 = vmatpush1.msra.mxu0 0.0
      %600 = vmatprep.subr.mxu0 0.0
      %601 = vmatpush1.msra.mxu0 0.0
      %602 = vmatprep.subr.mxu0 0.0
      %603 = vmatpush1.msra.mxu0 0.0
      %604 = vmatprep.subr.mxu0 0.0
      %605 = vmatpush1.msra.mxu0 0.0
      %606 = vmatprep.subr.mxu0 0.0
      %607 = vmatpush1.msra.mxu0 0.0
      %608 = vmatprep.subr.mxu0 0.0
      %609 = vmatpush1.msra.mxu0 0.0
      %610 = vmatprep.subr.mxu0 0.0
      %611 = vmatpush1.msra.mxu0 0.0
      %612 = vmatprep.subr.mxu0 0.0
      %613 = vmatpush1.msra.mxu0 0.0
      %614 = vmatprep.subr.mxu0 0.0
      %615 = vmatpush1.msra.mxu0 %v579
      %616 = vmatprep.subr.mxu0 0.0
      %617 = vmatpush1.msra.mxu0 %v574
      %618 = vmatprep.subr.mxu0 0.0
      %619 = vmatpush1.msra.mxu0 %v569
      %620 = vmatprep.subr.mxu0 0.0
      %621 = vmatpush1.msra.mxu0 %v564
      %622 = vmatprep.subr.mxu0 0.0
      %623 = vmatpush2.msra.mxu0 0.0
      %624 = vmatprep.subr.mxu0 0.0
      %625 = vmatpush2.msra.mxu0 0.0
      %626 = vmatprep.subr.mxu0 0.0
      %627 = vmatpush2.msra.mxu0 0.0
      %628 = vmatprep.subr.mxu0 0.0
      %629 = vmatpush2.msra.mxu0 0.0
      %630 = vmatprep.subr.mxu0 0.0
      %631 = vmatpush2.msra.mxu0 0.0
      %632 = vmatprep.subr.mxu0 0.0
      %633 = vmatpush2.msra.mxu0 0.0
      %634 = vmatprep.subr.mxu0 0.0
      %635 = vmatpush2.msra.mxu0 0.0
      %636 = vmatprep.subr.mxu0 0.0
      %637 = vmatpush2.msra.mxu0 0.0
      %638 = vmatprep.subr.mxu0 0.0
      %639 = vmatpush2.msra.mxu0 0.0
      %640 = vmatprep.subr.mxu0 0.0
      %641 = vmatpush2.msra.mxu0 0.0
      %642 = vmatprep.subr.mxu0 0.0
      %643 = vmatpush2.msra.mxu0 0.0
      %644 = vmatprep.subr.mxu0 0.0
      %645 = vmatpush2.msra.mxu0 0.0
      %646 = vmatprep.subr.mxu0 0.0
      %647 = vmatpush2.msra.mxu0 0.0
      %648 = vmatprep.subr.mxu0 0.0
      %649 = vmatpush2.msra.mxu0 0.0
      %650 = vmatprep.subr.mxu0 0.0
      %651 = vmatpush2.msra.mxu0 0.0
      %652 = vmatprep.subr.mxu0 0.0
      %653 = vmatpush2.msra.mxu0 0.0
      %654 = vmatprep.mubr.f32.mxu0 0.0
      %655 = vmatmul.mubr.f32.gmra.mxu0 %v585
      %v656 = vpop.f32.mrf.mxu0
      %v657 = vadd.f32 0.0, %v656
      %v658 = vpop.f32.mrf.mxu0
      %659 = vmatprep.mubr.f32.mxu0 0.0
      %660 = vmatmul.mubr.f32.gmra.mxu0 %v588
      %v661 = vpop.f32.mrf.mxu0
      %v662 = vadd.f32 0.0, %v661
      %v663 = vpop.f32.mrf.mxu0
      %664 = vdwg.mxu0
      %v665 = vld [vmem:[%s3] sm:$0xff]
      %v666 = vld [vmem:[%s3 + $0x8] sm:$0xff]
      %s667 = scalar_lea.vmem %s3, 16
      %v668 = vld [vmem:[%s667] sm:$0xff]
      %v669 = vld [vmem:[%s667 + $0x8] sm:$0xff]
      %s670 = scalar_lea.vmem %s3, 32
      %v671 = vld [vmem:[%s670] sm:$0xff]
      %v672 = vld [vmem:[%s670 + $0x8] sm:$0xff]
      %s673 = scalar_lea.vmem %s3, 48
      %v674 = vld [vmem:[%s673] sm:$0xff]
      %v675 = vld [vmem:[%s673 + $0x8] sm:$0xff]
      %vm676 = vcmp.eq.f32.partialorder %v665, %v475
      %vm677 = vcmp.eq.f32.partialorder %v666, %v475
      %vm678 = vcmp.eq.f32.partialorder %v668, %v473
      %vm679 = vcmp.eq.f32.partialorder %v669, %v473
      %vm680 = vmand %vm676, %vm678
      %vm681 = vmand %vm677, %vm679
      %v682 = vsel %vm680, %v657, 0.0
      %v683 = vsel %vm681, %v662, 0.0
      %vm684 = vcmask 130048
      %v685 = vsel %vm684, %v682, 0.0
      %686 = vadd.xlane.f32.xlu0 %v685
      %v687 = vpop.xlane.xlu0 %686
      %v688 = vsel %vm684, %v683, 0.0
      %689 = vadd.xlane.f32.xlu0 %v688
      %v690 = vpop.xlane.xlu0 %689
      %v691 = vadd.f32 %v687, %v690
      %v692 = vrot.slane %v691, 4
      %v693 = vadd.f32 %v691, %v692
      %v694 = vrot.slane %v693, 2
      %v695 = vadd.f32 %v693, %v694
      %v696 = vrot.slane %v695, 1
      %v697 = vadd.f32 %v695, %v696
      %v698 = vsub.f32 %v665, %v475
      %v699 = vsub.f32 %v666, %v475
      %v700 = vmul.f32 %v698, 0.1
      %v701 = vmul.f32 %v699, 0.1
      %v702 = vsub.f32 %v668, %v473
      %v703 = vsub.f32 %v669, %v473
      %v704 = vmul.f32 %v702, 0.1
      %v705 = vmul.f32 %v703, 0.1
      %v706 = vsub.f32 %v657, %v697
      %v707 = vsub.f32 %v662, %v697
      %v708 = vmul.f32 %v700, %v700
      %v709 = vmul.f32 %v701, %v701
      %v710 = vmul.f32 %v704, %v704
      %v711 = vmul.f32 %v705, %v705
      %v712 = vadd.f32 %v708, %v710
      %v713 = vadd.f32 %v709, %v711
      %v714 = vmul.f32 %v706, %v706
      %v715 = vmul.f32 %v707, %v707
      %v716 = vadd.f32 %v712, %v714
      %v717 = vadd.f32 %v713, %v715
      %v718 = vrsqrt.pop %v716
      %v719 = vmul.f32 %v716, %v718
      %vm720 = vcmp.eq.f32.partialorder %v716, inf
      %v721 = vsel %vm720, %v716, %v719
      %vm722 = vcmp.eq.f32.partialorder %v716, 0.0
      %v723 = vand.u32 %v716, 2147483648
      %v724 = vsel %vm722, %v723, %v721
      %v725 = vrsqrt.pop %v717
      %v726 = vmul.f32 %v717, %v725
      %vm727 = vcmp.eq.f32.partialorder %v717, inf
      %v728 = vsel %vm727, %v717, %v726
      %vm729 = vcmp.eq.f32.partialorder %v717, 0.0
      %v730 = vand.u32 %v717, 2147483648
      %v731 = vsel %vm729, %v730, %v728
      %v732 = vmax.f32 %v671, -1.0
      %v733 = vmax.f32 %v672, -1.0
      %v734 = vmax.f32 %v674, -1.0
      %v735 = vmax.f32 %v675, -1.0
      %v736 = vmax.f32 %v700, -1.0
      %v737 = vmax.f32 %v701, -1.0
      %v738 = vmax.f32 %v704, -1.0
      %v739 = vmax.f32 %v705, -1.0
      %v740 = vmax.f32 %v706, -1.0
      %v741 = vmax.f32 %v707, -1.0
      %v742 = vmax.f32 %v724, -1.0
      %v743 = vmax.f32 %v731, -1.0
      %v744 = vmin.f32 %v732, 1.0
      %v745 = vmin.f32 %v733, 1.0
      %v746 = vmin.f32 %v734, 1.0
      %v747 = vmin.f32 %v735, 1.0
      %v748 = vmin.f32 %v736, 1.0
      %v749 = vmin.f32 %v737, 1.0
      %v750 = vmin.f32 %v738, 1.0
      %v751 = vmin.f32 %v739, 1.0
      %v752 = vmin.f32 %v740, 1.0
      %v753 = vmin.f32 %v741, 1.0
      %v754 = vmin.f32 %v742, 1.0
      %v755 = vmin.f32 %v743, 1.0
      %v756 = vld [vmem:[%s384] sm:$0xff]
      %v757 = vld [vmem:[%s384 + $0x8] sm:$0xff]
      %v758 = vld [vmem:[%s384 + $0x10] sm:$0xff]
      %v759 = vld [vmem:[%s384 + $0x18] sm:$0xff]
      %v760 = vld [vmem:[%s384 + $0x20] sm:$0xff]
      %v761 = vld [vmem:[%s384 + $0x28] sm:$0xff]
      %v762 = vld [vmem:[%s384 + $0x30] sm:$0xff]
      %v763 = vld [vmem:[%s384 + $0x38] sm:$0xff]
      %v764 = vpack.c.bf16 %v757, %v756
      %v765 = vpack.c.bf16 %v759, %v758
      %v766 = vpack.c.bf16 %v761, %v760
      %v767 = vpack.c.bf16 %v763, %v762
      %v768 = vpack.c.bf16 %v745, %v744
      %v769 = vpack.c.bf16 %v747, %v746
      %v770 = vpack.c.bf16 %v749, %v748
      %v771 = vpack.c.bf16 %v751, %v750
      %v772 = vpack.c.bf16 %v753, %v752
      %v773 = vpack.c.bf16 %v755, %v754
      %v774 = vpack.c.bf16 0.0, 0.0
      %v786 = vunpack.c.l.b16 %v764
      %v787 = vunpack.c.l.b16 %v765
      %v788 = vunpack.c.l.b16 %v766
      %v789 = vunpack.c.l.b16 %v767
      %v790 = vunpack.c.l.b16 %v768
      %v791 = vunpack.c.l.b16 %v769
      %v792 = vunpack.c.l.b16 %v770
      %v793 = vunpack.c.l.b16 %v771
      %v794 = vunpack.c.l.b16 %v772
      %v795 = vunpack.c.l.b16 %v773
      %v796 = vunpack.c.l.b16 %v774
      %v797 = vpack.c.b16 %v786, %v786
      %v798 = vpack.c.b16 %v787, %v787
      %v799 = vpack.c.b16 %v788, %v788
      %v800 = vpack.c.b16 %v789, %v789
      %v801 = vpack.c.b16 %v790, %v790
      %v802 = vpack.c.b16 %v791, %v791
      %v803 = vpack.c.b16 %v792, %v792
      %v804 = vpack.c.b16 %v793, %v793
      %v805 = vpack.c.b16 %v794, %v794
      %v806 = vpack.c.b16 %v795, %v795
      %v807 = vpack.c.b16 %v796, %v796
      %v808 = vunpack.c.l.b16 %v797
      %v809 = vunpack.c.l.b16 %v798
      %v810 = vunpack.c.l.b16 %v799
      %v811 = vunpack.c.l.b16 %v800
      %v812 = vunpack.c.l.b16 %v801
      %v813 = vunpack.c.l.b16 %v802
      %v814 = vunpack.c.l.b16 %v803
      %v815 = vunpack.c.l.b16 %v804
      %v816 = vunpack.c.l.b16 %v805
      %v817 = vunpack.c.l.b16 %v806
      %v818 = vunpack.c.l.b16 %v807
      %v819 = vrot.slane %v809, 7
      %vm820 = vcmask 1041409
      %v821 = vsel %vm820, %v819, %v808
      %v822 = vrot.slane %v810, 6
      %vm823 = vcmask 1042434
      %v824 = vsel %vm823, %v822, %v821
      %v825 = vrot.slane %v811, 5
      %vm826 = vcmask 1043459
      %v827 = vsel %vm826, %v825, %v824
      %v828 = vrot.slane %v812, 4
      %vm829 = vcmask 1044484
      %v830 = vsel %vm829, %v828, %v827
      %v831 = vrot.slane %v813, 3
      %vm832 = vcmask 1045509
      %v833 = vsel %vm832, %v831, %v830
      %v834 = vrot.slane %v814, 2
      %vm835 = vcmask 1046534
      %v836 = vsel %vm835, %v834, %v833
      %v837 = vrot.slane %v815, 1
      %vm838 = vcmask 1047559
      %v839 = vsel %vm838, %v837, %v836
      %v840 = vrot.slane %v817, 7
      %v841 = vsel %vm820, %v840, %v816
      %v842 = vrot.slane %v818, 6
      %v843 = vsel %vm823, %v842, %v841
      %v844 = vrot.slane %v818, 5
      %v845 = vsel %vm826, %v844, %v843
      %v846 = vrot.slane %v818, 4
      %v847 = vsel %vm829, %v846, %v845
      %v848 = vrot.slane %v818, 3
      %v849 = vsel %vm832, %v848, %v847
      %v850 = vrot.slane %v818, 2
      %v851 = vsel %vm835, %v850, %v849
      %v852 = vrot.slane %v818, 1
      %v853 = vsel %vm838, %v852, %v851
      %v854 = vpack.c.b16 %v839, %v839
      %v855 = vpack.c.b16 %v853, %v853
      %856 = vrot.lane.b32.xlu0 %v854, 19
      %v857 = vpop.permute.xlu0 %856
      %858 = vrot.lane.b32.xlu0 %v855, 19
      %v859 = vpop.permute.xlu0 %858
      %vm862 = vcmask 281752
      %863 = vst.msk [vmem:[#allocation2 + $0x4] sm:$0xf] %vm862, %v857
      %864 = vst.msk [vmem:[#allocation2 + $0x14] sm:$0xf] %vm862, %v859
      %v865 = vrot.slane %v808, 1
      %v866 = vsel %vm820, %v809, %v865
      %v867 = vrot.slane %v810, 7
      %v868 = vsel %vm823, %v867, %v866
      %v869 = vrot.slane %v811, 6
      %v870 = vsel %vm826, %v869, %v868
      %v871 = vrot.slane %v812, 5
      %v872 = vsel %vm829, %v871, %v870
      %v873 = vrot.slane %v813, 4
      %v874 = vsel %vm832, %v873, %v872
      %v875 = vrot.slane %v814, 3
      %v876 = vsel %vm835, %v875, %v874
      %v877 = vrot.slane %v815, 2
      %v878 = vsel %vm838, %v877, %v876
      %v879 = vrot.slane %v816, 1
      %v880 = vsel %vm820, %v817, %v879
      %v881 = vrot.slane %v818, 7
      %v882 = vsel %vm823, %v881, %v880
      %v883 = vsel %vm826, %v842, %v882
      %v884 = vsel %vm829, %v844, %v883
      %v885 = vsel %vm832, %v846, %v884
      %v886 = vsel %vm835, %v848, %v885
      %v887 = vsel %vm838, %v850, %v886
      %v888 = vpack.c.b16 %v878, %v878
      %v889 = vpack.c.b16 %v887, %v887
      %890 = vrot.lane.b32.xlu0 %v888, 37
      %v891 = vpop.permute.xlu0 %890
      %892 = vrot.lane.b32.xlu0 %v889, 37
      %v893 = vpop.permute.xlu0 %892
      %vm896 = vcmask 429352
      %897 = vst.msk [vmem:[#allocation2 + $0x4] sm:$0xf] %vm896, %v891
      %898 = vst.msk [vmem:[#allocation2 + $0x14] sm:$0xf] %vm896, %v893
      %v899 = vrot.slane %v808, 2
      %v900 = vrot.slane %v809, 1
      %v901 = vsel %vm820, %v900, %v899
      %v902 = vsel %vm823, %v810, %v901
      %v903 = vrot.slane %v811, 7
      %v904 = vsel %vm826, %v903, %v902
      %v905 = vrot.slane %v812, 6
      %v906 = vsel %vm829, %v905, %v904
      %v907 = vrot.slane %v813, 5
      %v908 = vsel %vm832, %v907, %v906
      %v909 = vrot.slane %v814, 4
      %v910 = vsel %vm835, %v909, %v908
      %v911 = vrot.slane %v815, 3
      %v912 = vsel %vm838, %v911, %v910
      %v913 = vrot.slane %v816, 2
      %v914 = vrot.slane %v817, 1
      %v915 = vsel %vm820, %v914, %v913
      %v916 = vsel %vm823, %v818, %v915
      %v917 = vsel %vm826, %v881, %v916
      %v918 = vsel %vm829, %v842, %v917
      %v919 = vsel %vm832, %v844, %v918
      %v920 = vsel %vm835, %v846, %v919
      %v921 = vsel %vm838, %v848, %v920
      %v922 = vpack.c.b16 %v912, %v912
      %v923 = vpack.c.b16 %v921, %v921
      %924 = vrot.lane.b32.xlu0 %v922, 55
      %v925 = vpop.permute.xlu0 %924
      %926 = vrot.lane.b32.xlu0 %v923, 55
      %v927 = vpop.permute.xlu0 %926
      %vm930 = vcmask 576952
      %931 = vst.msk [vmem:[#allocation2 + $0x4] sm:$0xf] %vm930, %v925
      %932 = vst.msk [vmem:[#allocation2 + $0x14] sm:$0xf] %vm930, %v927
      %v933 = vrot.slane %v808, 3
      %v934 = vrot.slane %v809, 2
      %v935 = vsel %vm820, %v934, %v933
      %v936 = vrot.slane %v810, 1
      %v937 = vsel %vm823, %v936, %v935
      %v938 = vsel %vm826, %v811, %v937
      %v939 = vrot.slane %v812, 7
      %v940 = vsel %vm829, %v939, %v938
      %v941 = vrot.slane %v813, 6
      %v942 = vsel %vm832, %v941, %v940
      %v943 = vrot.slane %v814, 5
      %v944 = vsel %vm835, %v943, %v942
      %v945 = vrot.slane %v815, 4
      %v946 = vsel %vm838, %v945, %v944
      %v947 = vrot.slane %v816, 3
      %v948 = vrot.slane %v817, 2
      %v949 = vsel %vm820, %v948, %v947
      %v950 = vsel %vm823, %v852, %v949
      %v951 = vsel %vm826, %v818, %v950
      %v952 = vsel %vm829, %v881, %v951
      %v953 = vsel %vm832, %v842, %v952
      %v954 = vsel %vm835, %v844, %v953
      %v955 = vsel %vm838, %v846, %v954
      %v956 = vpack.c.b16 %v946, %v946
      %v957 = vpack.c.b16 %v955, %v955
      %958 = vrot.lane.b32.xlu0 %v956, 73
      %v959 = vpop.permute.xlu0 %958
      %960 = vrot.lane.b32.xlu0 %v957, 73
      %v961 = vpop.permute.xlu0 %960
      %vm964 = vcmask 724552
      %965 = vst.msk [vmem:[#allocation2 + $0x4] sm:$0xf] %vm964, %v959
      %966 = vst.msk [vmem:[#allocation2 + $0x14] sm:$0xf] %vm964, %v961
      %v967 = vrot.slane %v808, 4
      %v968 = vrot.slane %v809, 3
      %v969 = vsel %vm820, %v968, %v967
      %v970 = vrot.slane %v810, 2
      %v971 = vsel %vm823, %v970, %v969
      %v972 = vrot.slane %v811, 1
      %v973 = vsel %vm826, %v972, %v971
      %v974 = vsel %vm829, %v812, %v973
      %v975 = vrot.slane %v813, 7
      %v976 = vsel %vm832, %v975, %v974
      %v977 = vrot.slane %v814, 6
      %v978 = vsel %vm835, %v977, %v976
      %v979 = vrot.slane %v815, 5
      %v980 = vsel %vm838, %v979, %v978
      %v981 = vrot.slane %v816, 4
      %v982 = vrot.slane %v817, 3
      %v983 = vsel %vm820, %v982, %v981
      %v984 = vsel %vm823, %v850, %v983
      %v985 = vsel %vm826, %v852, %v984
      %v986 = vsel %vm829, %v818, %v985
      %v987 = vsel %vm832, %v881, %v986
      %v988 = vsel %vm835, %v842, %v987
      %v989 = vsel %vm838, %v844, %v988
      %v990 = vpack.c.b16 %v980, %v980
      %v991 = vpack.c.b16 %v989, %v989
      %992 = vrot.lane.b32.xlu0 %v990, 91
      %v993 = vpop.permute.xlu0 %992
      %994 = vrot.lane.b32.xlu0 %v991, 91
      %v995 = vpop.permute.xlu0 %994
      %vm998 = vcmask 872152
      %999 = vst.msk [vmem:[#allocation2 + $0x4] sm:$0xf] %vm998, %v993
      %1000 = vst.msk [vmem:[#allocation2 + $0x14] sm:$0xf] %vm998, %v995
      %v1001 = vrot.slane %v808, 5
      %v1002 = vrot.slane %v809, 4
      %v1003 = vsel %vm820, %v1002, %v1001
      %v1004 = vrot.slane %v810, 3
      %v1005 = vsel %vm823, %v1004, %v1003
      %v1006 = vrot.slane %v811, 2
      %v1007 = vsel %vm826, %v1006, %v1005
      %v1008 = vrot.slane %v812, 1
      %v1009 = vsel %vm829, %v1008, %v1007
      %v1010 = vsel %vm832, %v813, %v1009
      %v1011 = vrot.slane %v814, 7
      %v1012 = vsel %vm835, %v1011, %v1010
      %v1013 = vrot.slane %v815, 6
      %v1014 = vsel %vm838, %v1013, %v1012
      %v1015 = vrot.slane %v816, 5
      %v1016 = vrot.slane %v817, 4
      %v1017 = vsel %vm820, %v1016, %v1015
      %v1018 = vsel %vm823, %v848, %v1017
      %v1019 = vsel %vm826, %v850, %v1018
      %v1020 = vsel %vm829, %v852, %v1019
      %v1021 = vsel %vm832, %v818, %v1020
      %v1022 = vsel %vm835, %v881, %v1021
      %v1023 = vsel %vm838, %v842, %v1022
      %v1024 = vpack.c.b16 %v1014, %v1014
      %v1025 = vpack.c.b16 %v1023, %v1023
      %1026 = vrot.lane.b32.xlu0 %v1024, 109
      %v1027 = vpop.permute.xlu0 %1026
      %1028 = vrot.lane.b32.xlu0 %v1025, 109
      %v1029 = vpop.permute.xlu0 %1028
      %vm1032 = vcmask 1019752
      %1033 = vst.msk [vmem:[#allocation2 + $0x4] sm:$0xf] %vm1032, %v1027
      %1034 = vst.msk [vmem:[#allocation2 + $0x14] sm:$0xf] %vm1032, %v1029
      %v1035 = vrot.slane %v808, 6
      %v1036 = vrot.slane %v809, 5
      %v1037 = vsel %vm820, %v1036, %v1035
      %v1038 = vrot.slane %v810, 4
      %v1039 = vsel %vm823, %v1038, %v1037
      %v1040 = vrot.slane %v811, 3
      %v1041 = vsel %vm826, %v1040, %v1039
      %v1042 = vrot.slane %v812, 2
      %v1043 = vsel %vm829, %v1042, %v1041
      %v1044 = vrot.slane %v813, 1
      %v1045 = vsel %vm832, %v1044, %v1043
      %v1046 = vsel %vm835, %v814, %v1045
      %v1047 = vrot.slane %v815, 7
      %v1048 = vsel %vm838, %v1047, %v1046
      %v1049 = vrot.slane %v816, 6
      %v1050 = vrot.slane %v817, 5
      %v1051 = vsel %vm820, %v1050, %v1049
      %v1052 = vsel %vm823, %v846, %v1051
      %v1053 = vsel %vm826, %v848, %v1052
      %v1054 = vsel %vm829, %v850, %v1053
      %v1055 = vsel %vm832, %v852, %v1054
      %v1056 = vsel %vm835, %v818, %v1055
      %v1057 = vsel %vm838, %v881, %v1056
      %v1058 = vpack.c.b16 %v1048, %v1048
      %v1059 = vpack.c.b16 %v1057, %v1057
      %1060 = vrot.lane.b32.xlu0 %v1058, 127
      %v1061 = vpop.permute.xlu0 %1060
      %1062 = vrot.lane.b32.xlu0 %v1059, 127
      %v1063 = vpop.permute.xlu0 %1062
      %v1064 = vrot.slane %v1061, 4
      %v1065 = vrot.slane %v1063, 4
      %vm1066 = vcmask 1039360
      %v1067 = vsel %vm1066, %v1064, %v1061
      %v1068 = vsel %vm1066, %v1065, %v1063
      %vm1071 = vcmask 1044472
      %vm1072 = vcmask 121860
      %vm1073 = vmor %vm1072, %vm1071
      %1074 = vst.msk [vmem:[#allocation2 + $0x4] sm:$0xff] %vm1073, %v1067
      %1075 = vst.msk [vmem:[#allocation2 + $0x14] sm:$0xff] %vm1073, %v1068
      %v1076 = vrot.slane %v808, 7
      %v1077 = vrot.slane %v809, 6
      %v1078 = vsel %vm820, %v1077, %v1076
      %v1079 = vrot.slane %v810, 5
      %v1080 = vsel %vm823, %v1079, %v1078
      %v1081 = vrot.slane %v811, 4
      %v1082 = vsel %vm826, %v1081, %v1080
      %v1083 = vrot.slane %v812, 3
      %v1084 = vsel %vm829, %v1083, %v1082
      %v1085 = vrot.slane %v813, 2
      %v1086 = vsel %vm832, %v1085, %v1084
      %v1087 = vrot.slane %v814, 1
      %v1088 = vsel %vm835, %v1087, %v1086
      %v1089 = vsel %vm838, %v815, %v1088
      %v1090 = vrot.slane %v816, 7
      %v1091 = vrot.slane %v817, 6
      %v1092 = vsel %vm820, %v1091, %v1090
      %v1093 = vsel %vm823, %v844, %v1092
      %v1094 = vsel %vm826, %v846, %v1093
      %v1095 = vsel %vm829, %v848, %v1094
      %v1096 = vsel %vm832, %v850, %v1095
      %v1097 = vsel %vm835, %v852, %v1096
      %v1098 = vsel %vm838, %v818, %v1097
      %v1099 = vpack.c.b16 %v1089, %v1089
      %v1100 = vpack.c.b16 %v1098, %v1098
      %1101 = vrot.lane.b32.xlu0 %v1099, 17
      %v1102 = vpop.permute.xlu0 %1101
      %1103 = vrot.lane.b32.xlu0 %v1100, 17
      %v1104 = vpop.permute.xlu0 %1103
      %vm1107 = vcmask 265352
      %1108 = vst.msk [vmem:[#allocation2 + $0x8] sm:$0xf] %vm1107, %v1102
      %1109 = vst.msk [vmem:[#allocation2 + $0x18] sm:$0xf] %vm1107, %v1104
      %v1110 = vunpack.c.h.b16 %v764
      %v1111 = vunpack.c.h.b16 %v765
      %v1112 = vunpack.c.h.b16 %v766
      %v1113 = vunpack.c.h.b16 %v767
      %v1114 = vunpack.c.h.b16 %v768
      %v1115 = vunpack.c.h.b16 %v769
      %v1116 = vunpack.c.h.b16 %v770
      %v1117 = vunpack.c.h.b16 %v771
      %v1118 = vunpack.c.h.b16 %v772
      %v1119 = vunpack.c.h.b16 %v773
      %v1120 = vunpack.c.h.b16 %v774
      %v1121 = vpack.c.b16 %v1110, %v1110
      %v1122 = vpack.c.b16 %v1111, %v1111
      %v1123 = vpack.c.b16 %v1112, %v1112
      %v1124 = vpack.c.b16 %v1113, %v1113
      %v1125 = vpack.c.b16 %v1114, %v1114
      %v1126 = vpack.c.b16 %v1115, %v1115
      %v1127 = vpack.c.b16 %v1116, %v1116
      %v1128 = vpack.c.b16 %v1117, %v1117
      %v1129 = vpack.c.b16 %v1118, %v1118
      %v1130 = vpack.c.b16 %v1119, %v1119
      %v1131 = vpack.c.b16 %v1120, %v1120
      %v1132 = vunpack.c.l.b16 %v1121
      %v1133 = vunpack.c.l.b16 %v1122
      %v1134 = vunpack.c.l.b16 %v1123
      %v1135 = vunpack.c.l.b16 %v1124
      %v1136 = vunpack.c.l.b16 %v1125
      %v1137 = vunpack.c.l.b16 %v1126
      %v1138 = vunpack.c.l.b16 %v1127
      %v1139 = vunpack.c.l.b16 %v1128
      %v1140 = vunpack.c.l.b16 %v1129
      %v1141 = vunpack.c.l.b16 %v1130
      %v1142 = vunpack.c.l.b16 %v1131
      %v1143 = vrot.slane %v1133, 7
      %v1144 = vsel %vm820, %v1143, %v1132
      %v1145 = vrot.slane %v1134, 6
      %v1146 = vsel %vm823, %v1145, %v1144
      %v1147 = vrot.slane %v1135, 5
      %v1148 = vsel %vm826, %v1147, %v1146
      %v1149 = vrot.slane %v1136, 4
      %v1150 = vsel %vm829, %v1149, %v1148
      %v1151 = vrot.slane %v1137, 3
      %v1152 = vsel %vm832, %v1151, %v1150
      %v1153 = vrot.slane %v1138, 2
      %v1154 = vsel %vm835, %v1153, %v1152
      %v1155 = vrot.slane %v1139, 1
      %v1156 = vsel %vm838, %v1155, %v1154
      %v1157 = vrot.slane %v1141, 7
      %v1158 = vsel %vm820, %v1157, %v1140
      %v1159 = vrot.slane %v1142, 6
      %v1160 = vsel %vm823, %v1159, %v1158
      %v1161 = vrot.slane %v1142, 5
      %v1162 = vsel %vm826, %v1161, %v1160
      %v1163 = vrot.slane %v1142, 4
      %v1164 = vsel %vm829, %v1163, %v1162
      %v1165 = vrot.slane %v1142, 3
      %v1166 = vsel %vm832, %v1165, %v1164
      %v1167 = vrot.slane %v1142, 2
      %v1168 = vsel %vm835, %v1167, %v1166
      %v1169 = vrot.slane %v1142, 1
      %v1170 = vsel %vm838, %v1169, %v1168
      %v1171 = vpack.c.b16 %v1156, %v1156
      %v1172 = vpack.c.b16 %v1170, %v1170
      %1173 = vrot.lane.b32.xlu0 %v1171, 35
      %v1174 = vpop.permute.xlu0 %1173
      %1175 = vrot.lane.b32.xlu0 %v1172, 35
      %v1176 = vpop.permute.xlu0 %1175
      %vm1179 = vcmask 412952
      %1180 = vst.msk [vmem:[#allocation2 + $0x8] sm:$0xf] %vm1179, %v1174
      %1181 = vst.msk [vmem:[#allocation2 + $0x18] sm:$0xf] %vm1179, %v1176
      %v1182 = vrot.slane %v1132, 1
      %v1183 = vsel %vm820, %v1133, %v1182
      %v1184 = vrot.slane %v1134, 7
      %v1185 = vsel %vm823, %v1184, %v1183
      %v1186 = vrot.slane %v1135, 6
      %v1187 = vsel %vm826, %v1186, %v1185
      %v1188 = vrot.slane %v1136, 5
      %v1189 = vsel %vm829, %v1188, %v1187
      %v1190 = vrot.slane %v1137, 4
      %v1191 = vsel %vm832, %v1190, %v1189
      %v1192 = vrot.slane %v1138, 3
      %v1193 = vsel %vm835, %v1192, %v1191
      %v1194 = vrot.slane %v1139, 2
      %v1195 = vsel %vm838, %v1194, %v1193
      %v1196 = vrot.slane %v1140, 1
      %v1197 = vsel %vm820, %v1141, %v1196
      %v1198 = vrot.slane %v1142, 7
      %v1199 = vsel %vm823, %v1198, %v1197
      %v1200 = vsel %vm826, %v1159, %v1199
      %v1201 = vsel %vm829, %v1161, %v1200
      %v1202 = vsel %vm832, %v1163, %v1201
      %v1203 = vsel %vm835, %v1165, %v1202
      %v1204 = vsel %vm838, %v1167, %v1203
      %v1205 = vpack.c.b16 %v1195, %v1195
      %v1206 = vpack.c.b16 %v1204, %v1204
      %1207 = vrot.lane.b32.xlu0 %v1205, 53
      %v1208 = vpop.permute.xlu0 %1207
      %1209 = vrot.lane.b32.xlu0 %v1206, 53
      %v1210 = vpop.permute.xlu0 %1209
      %vm1213 = vcmask 560552
      %1214 = vst.msk [vmem:[#allocation2 + $0x8] sm:$0xf] %vm1213, %v1208
      %1215 = vst.msk [vmem:[#allocation2 + $0x18] sm:$0xf] %vm1213, %v1210
      %v1216 = vrot.slane %v1132, 2
      %v1217 = vrot.slane %v1133, 1
      %v1218 = vsel %vm820, %v1217, %v1216
      %v1219 = vsel %vm823, %v1134, %v1218
      %v1220 = vrot.slane %v1135, 7
      %v1221 = vsel %vm826, %v1220, %v1219
      %v1222 = vrot.slane %v1136, 6
      %v1223 = vsel %vm829, %v1222, %v1221
      %v1224 = vrot.slane %v1137, 5
      %v1225 = vsel %vm832, %v1224, %v1223
      %v1226 = vrot.slane %v1138, 4
      %v1227 = vsel %vm835, %v1226, %v1225
      %v1228 = vrot.slane %v1139, 3
      %v1229 = vsel %vm838, %v1228, %v1227
      %v1230 = vrot.slane %v1140, 2
      %v1231 = vrot.slane %v1141, 1
      %v1232 = vsel %vm820, %v1231, %v1230
      %v1233 = vsel %vm823, %v1142, %v1232
      %v1234 = vsel %vm826, %v1198, %v1233
      %v1235 = vsel %vm829, %v1159, %v1234
      %v1236 = vsel %vm832, %v1161, %v1235
      %v1237 = vsel %vm835, %v1163, %v1236
      %v1238 = vsel %vm838, %v1165, %v1237
      %v1239 = vpack.c.b16 %v1229, %v1229
      %v1240 = vpack.c.b16 %v1238, %v1238
      %1241 = vrot.lane.b32.xlu0 %v1239, 71
      %v1242 = vpop.permute.xlu0 %1241
      %1243 = vrot.lane.b32.xlu0 %v1240, 71
      %v1244 = vpop.permute.xlu0 %1243
      %vm1247 = vcmask 708152
      %1248 = vst.msk [vmem:[#allocation2 + $0x8] sm:$0xf] %vm1247, %v1242
      %1249 = vst.msk [vmem:[#allocation2 + $0x18] sm:$0xf] %vm1247, %v1244
      %v1250 = vrot.slane %v1132, 3
      %v1251 = vrot.slane %v1133, 2
      %v1252 = vsel %vm820, %v1251, %v1250
      %v1253 = vrot.slane %v1134, 1
      %v1254 = vsel %vm823, %v1253, %v1252
      %v1255 = vsel %vm826, %v1135, %v1254
      %v1256 = vrot.slane %v1136, 7
      %v1257 = vsel %vm829, %v1256, %v1255
      %v1258 = vrot.slane %v1137, 6
      %v1259 = vsel %vm832, %v1258, %v1257
      %v1260 = vrot.slane %v1138, 5
      %v1261 = vsel %vm835, %v1260, %v1259
      %v1262 = vrot.slane %v1139, 4
      %v1263 = vsel %vm838, %v1262, %v1261
      %v1264 = vrot.slane %v1140, 3
      %v1265 = vrot.slane %v1141, 2
      %v1266 = vsel %vm820, %v1265, %v1264
      %v1267 = vsel %vm823, %v1169, %v1266
      %v1268 = vsel %vm826, %v1142, %v1267
      %v1269 = vsel %vm829, %v1198, %v1268
      %v1270 = vsel %vm832, %v1159, %v1269
      %v1271 = vsel %vm835, %v1161, %v1270
      %v1272 = vsel %vm838, %v1163, %v1271
      %v1273 = vpack.c.b16 %v1263, %v1263
      %v1274 = vpack.c.b16 %v1272, %v1272
      %1275 = vrot.lane.b32.xlu0 %v1273, 89
      %v1276 = vpop.permute.xlu0 %1275
      %1277 = vrot.lane.b32.xlu0 %v1274, 89
      %v1278 = vpop.permute.xlu0 %1277
      %vm1281 = vcmask 855752
      %1282 = vst.msk [vmem:[#allocation2 + $0x8] sm:$0xf] %vm1281, %v1276
      %1283 = vst.msk [vmem:[#allocation2 + $0x18] sm:$0xf] %vm1281, %v1278
      %v1284 = vrot.slane %v1132, 4
      %v1285 = vrot.slane %v1133, 3
      %v1286 = vsel %vm820, %v1285, %v1284
      %v1287 = vrot.slane %v1134, 2
      %v1288 = vsel %vm823, %v1287, %v1286
      %v1289 = vrot.slane %v1135, 1
      %v1290 = vsel %vm826, %v1289, %v1288
      %v1291 = vsel %vm829, %v1136, %v1290
      %v1292 = vrot.slane %v1137, 7
      %v1293 = vsel %vm832, %v1292, %v1291
      %v1294 = vrot.slane %v1138, 6
      %v1295 = vsel %vm835, %v1294, %v1293
      %v1296 = vrot.slane %v1139, 5
      %v1297 = vsel %vm838, %v1296, %v1295
      %v1298 = vrot.slane %v1140, 4
      %v1299 = vrot.slane %v1141, 3
      %v1300 = vsel %vm820, %v1299, %v1298
      %v1301 = vsel %vm823, %v1167, %v1300
      %v1302 = vsel %vm826, %v1169, %v1301
      %v1303 = vsel %vm829, %v1142, %v1302
      %v1304 = vsel %vm832, %v1198, %v1303
      %v1305 = vsel %vm835, %v1159, %v1304
      %v1306 = vsel %vm838, %v1161, %v1305
      %v1307 = vpack.c.b16 %v1297, %v1297
      %v1308 = vpack.c.b16 %v1306, %v1306
      %1309 = vrot.lane.b32.xlu0 %v1307, 107
      %v1310 = vpop.permute.xlu0 %1309
      %1311 = vrot.lane.b32.xlu0 %v1308, 107
      %v1312 = vpop.permute.xlu0 %1311
      %vm1315 = vcmask 1003352
      %1316 = vst.msk [vmem:[#allocation2 + $0x8] sm:$0xf] %vm1315, %v1310
      %1317 = vst.msk [vmem:[#allocation2 + $0x18] sm:$0xf] %vm1315, %v1312
      %v1318 = vrot.slane %v1132, 5
      %v1319 = vrot.slane %v1133, 4
      %v1320 = vsel %vm820, %v1319, %v1318
      %v1321 = vrot.slane %v1134, 3
      %v1322 = vsel %vm823, %v1321, %v1320
      %v1323 = vrot.slane %v1135, 2
      %v1324 = vsel %vm826, %v1323, %v1322
      %v1325 = vrot.slane %v1136, 1
      %v1326 = vsel %vm829, %v1325, %v1324
      %v1327 = vsel %vm832, %v1137, %v1326
      %v1328 = vrot.slane %v1138, 7
      %v1329 = vsel %vm835, %v1328, %v1327
      %v1330 = vrot.slane %v1139, 6
      %v1331 = vsel %vm838, %v1330, %v1329
      %v1332 = vrot.slane %v1140, 5
      %v1333 = vrot.slane %v1141, 4
      %v1334 = vsel %vm820, %v1333, %v1332
      %v1335 = vsel %vm823, %v1165, %v1334
      %v1336 = vsel %vm826, %v1167, %v1335
      %v1337 = vsel %vm829, %v1169, %v1336
      %v1338 = vsel %vm832, %v1142, %v1337
      %v1339 = vsel %vm835, %v1198, %v1338
      %v1340 = vsel %vm838, %v1159, %v1339
      %v1341 = vpack.c.b16 %v1331, %v1331
      %v1342 = vpack.c.b16 %v1340, %v1340
      %1343 = vrot.lane.b32.xlu0 %v1341, 125
      %v1344 = vpop.permute.xlu0 %1343
      %1345 = vrot.lane.b32.xlu0 %v1342, 125
      %v1346 = vpop.permute.xlu0 %1345
      %v1347 = vrot.slane %v1344, 4
      %v1348 = vrot.slane %v1346, 4
      %vm1349 = vcmask 1022976
      %v1350 = vsel %vm1349, %v1347, %v1344
      %v1351 = vsel %vm1349, %v1348, %v1346
      %vm1354 = vcmask 1044456
      %vm1355 = vcmask 105476
      %vm1356 = vmor %vm1355, %vm1354
      %1357 = vst.msk [vmem:[#allocation2 + $0x8] sm:$0xff] %vm1356, %v1350
      %1358 = vst.msk [vmem:[#allocation2 + $0x18] sm:$0xff] %vm1356, %v1351
      %v1359 = vrot.slane %v1132, 6
      %v1360 = vrot.slane %v1133, 5
      %v1361 = vsel %vm820, %v1360, %v1359
      %v1362 = vrot.slane %v1134, 4
      %v1363 = vsel %vm823, %v1362, %v1361
      %v1364 = vrot.slane %v1135, 3
      %v1365 = vsel %vm826, %v1364, %v1363
      %v1366 = vrot.slane %v1136, 2
      %v1367 = vsel %vm829, %v1366, %v1365
      %v1368 = vrot.slane %v1137, 1
      %v1369 = vsel %vm832, %v1368, %v1367
      %v1370 = vsel %vm835, %v1138, %v1369
      %v1371 = vrot.slane %v1139, 7
      %v1372 = vsel %vm838, %v1371, %v1370
      %v1373 = vrot.slane %v1140, 6
      %v1374 = vrot.slane %v1141, 5
      %v1375 = vsel %vm820, %v1374, %v1373
      %v1376 = vsel %vm823, %v1163, %v1375
      %v1377 = vsel %vm826, %v1165, %v1376
      %v1378 = vsel %vm829, %v1167, %v1377
      %v1379 = vsel %vm832, %v1169, %v1378
      %v1380 = vsel %vm835, %v1142, %v1379
      %v1381 = vsel %vm838, %v1198, %v1380
      %v1382 = vpack.c.b16 %v1372, %v1372
      %v1383 = vpack.c.b16 %v1381, %v1381
      %1384 = vrot.lane.b32.xlu0 %v1382, 15
      %v1385 = vpop.permute.xlu0 %1384
      %1386 = vrot.lane.b32.xlu0 %v1383, 15
      %v1387 = vpop.permute.xlu0 %1386
      %vm1390 = vcmask 248952
      %1391 = vst.msk [vmem:[#allocation2 + $0xc] sm:$0xf] %vm1390, %v1385
      %1392 = vst.msk [vmem:[#allocation2 + $0x1c] sm:$0xf] %vm1390, %v1387
      %v1393 = vrot.slane %v1132, 7
      %v1394 = vrot.slane %v1133, 6
      %v1395 = vsel %vm820, %v1394, %v1393
      %v1396 = vrot.slane %v1134, 5
      %v1397 = vsel %vm823, %v1396, %v1395
      %v1398 = vrot.slane %v1135, 4
      %v1399 = vsel %vm826, %v1398, %v1397
      %v1400 = vrot.slane %v1136, 3
      %v1401 = vsel %vm829, %v1400, %v1399
      %v1402 = vrot.slane %v1137, 2
      %v1403 = vsel %vm832, %v1402, %v1401
      %v1404 = vrot.slane %v1138, 1
      %v1405 = vsel %vm835, %v1404, %v1403
      %v1406 = vsel %vm838, %v1139, %v1405
      %v1407 = vrot.slane %v1140, 7
      %v1408 = vrot.slane %v1141, 6
      %v1409 = vsel %vm820, %v1408, %v1407
      %v1410 = vsel %vm823, %v1161, %v1409
      %v1411 = vsel %vm826, %v1163, %v1410
      %v1412 = vsel %vm829, %v1165, %v1411
      %v1413 = vsel %vm832, %v1167, %v1412
      %v1414 = vsel %vm835, %v1169, %v1413
      %v1415 = vsel %vm838, %v1142, %v1414
      %v1416 = vpack.c.b16 %v1406, %v1406
      %v1417 = vpack.c.b16 %v1415, %v1415
      %1418 = vrot.lane.b32.xlu0 %v1416, 33
      %v1419 = vpop.permute.xlu0 %1418
      %1420 = vrot.lane.b32.xlu0 %v1417, 33
      %v1421 = vpop.permute.xlu0 %1420
      %vm1424 = vcmask 396552
      %1425 = vst.msk [vmem:[#allocation2 + $0xc] sm:$0xf] %vm1424, %v1419
      %1426 = vst.msk [vmem:[#allocation2 + $0x1c] sm:$0xf] %vm1424, %v1421
      %v1427 = vld [vmem:[#allocation2] sm:$0xff]
      %v1428 = vld [vmem:[#allocation2 + $0x8] sm:$0xff]
      %v1429 = vld [vmem:[#allocation2 + $0x10] sm:$0xff]
      %v1430 = vld [vmem:[#allocation2 + $0x18] sm:$0xff]
      %v1431 = vld [vmem:[#allocation2 + $0x4] sm:$0xff]
      %v1432 = vld [vmem:[#allocation2 + $0xc] sm:$0xf]
      %v1433 = vld [vmem:[#allocation2 + $0x14] sm:$0xff]
      %v1434 = vld [vmem:[#allocation2 + $0x1c] sm:$0xf]
      %v1439 = vunpack.c.l.b16 %v1427
      %v1440 = vunpack.c.h.b16 %v1427
      %v1441 = vunpack.c.l.b16 %v1428
      %v1442 = vunpack.c.h.b16 %v1428
      %v1443 = vunpack.c.l.b16 %v1429
      %v1444 = vunpack.c.h.b16 %v1429
      %v1445 = vunpack.c.l.b16 %v1430
      %v1446 = vunpack.c.h.b16 %v1430
      %v1447 = vpack.c.b16 %v1443, %v1439
      %v1448 = vpack.c.b16 %v1444, %v1440
      %v1449 = vpack.c.b16 %v1445, %v1441
      %v1450 = vpack.c.b16 %v1446, %v1442
      %1451 = vrot.lane.b32.xlu0 %v1447, 127
      %v1452 = vpop.permute.xlu0 %1451
      %1453 = vrot.lane.b32.xlu0 %v1448, 127
      %v1454 = vpop.permute.xlu0 %1453
      %1455 = vrot.lane.b32.xlu0 %v1449, 127
      %v1456 = vpop.permute.xlu0 %1455
      %1457 = vrot.lane.b32.xlu0 %v1450, 127
      %v1458 = vpop.permute.xlu0 %1457
      %v1459 = vsel %vm1066, %v1452, %v1454
      %v1460 = vsel %vm1066, %v1454, %v1456
      %v1461 = vsel %vm1066, %v1456, %v1458
      %1462 = vrot.lane.b32.xlu0 %v1447, 126
      %v1463 = vpop.permute.xlu0 %1462
      %1464 = vrot.lane.b32.xlu0 %v1448, 126
      %v1465 = vpop.permute.xlu0 %1464
      %1466 = vrot.lane.b32.xlu0 %v1449, 126
      %v1467 = vpop.permute.xlu0 %1466
      %1468 = vrot.lane.b32.xlu0 %v1450, 126
      %v1469 = vpop.permute.xlu0 %1468
      %vm1470 = vcmask 1031168
      %v1471 = vsel %vm1470, %v1463, %v1465
      %v1472 = vsel %vm1470, %v1465, %v1467
      %v1473 = vsel %vm1470, %v1467, %v1469
      %1474 = vrot.lane.b32.xlu0 %v1447, 110
      %v1475 = vpop.permute.xlu0 %1474
      %1476 = vrot.lane.b32.xlu0 %v1448, 110
      %v1477 = vpop.permute.xlu0 %1476
      %1478 = vrot.lane.b32.xlu0 %v1449, 110
      %v1479 = vpop.permute.xlu0 %1478
      %1480 = vrot.lane.b32.xlu0 %v1450, 110
      %v1481 = vpop.permute.xlu0 %1480
      %vm1482 = vcmask 900096
      %v1483 = vsel %vm1482, %v1475, %v1477
      %v1484 = vsel %vm1482, %v1477, %v1479
      %v1485 = vsel %vm1482, %v1479, %v1481
      %v1490 = vunpack.c.l.b16 %v1431
      %v1491 = vunpack.c.h.b16 %v1431
      %v1492 = vunpack.c.l.b16 %v1432
      %v1493 = vunpack.c.l.b16 %v1433
      %v1494 = vunpack.c.h.b16 %v1433
      %v1495 = vunpack.c.l.b16 %v1434
      %v1496 = vpack.c.b16 %v1493, %v1490
      %v1497 = vpack.c.b16 %v1494, %v1491
      %v1498 = vpack.c.b16 %v1495, %v1492
      %1499 = vrot.lane.b32.xlu0 %v1496, 109
      %v1500 = vpop.permute.xlu0 %1499
      %1501 = vrot.lane.b32.xlu0 %v1497, 109
      %v1502 = vpop.permute.xlu0 %1501
      %1503 = vrot.lane.b32.xlu0 %v1498, 109
      %v1504 = vpop.permute.xlu0 %1503
      %vm1505 = vcmask 891904
      %v1506 = vsel %vm1505, %v1500, %v1502
      %v1507 = vsel %vm1505, %v1502, %v1504
      %1508 = vrot.lane.b32.xlu0 %v1496, 108
      %v1509 = vpop.permute.xlu0 %1508
      %1510 = vrot.lane.b32.xlu0 %v1497, 108
      %v1511 = vpop.permute.xlu0 %1510
      %1512 = vrot.lane.b32.xlu0 %v1498, 108
      %v1513 = vpop.permute.xlu0 %1512
      %vm1514 = vcmask 883712
      %v1515 = vsel %vm1514, %v1509, %v1511
      %v1516 = vsel %vm1514, %v1511, %v1513
      %1517 = vrot.lane.b32.xlu0 %v1496, 92
      %v1518 = vpop.permute.xlu0 %1517
      %1519 = vrot.lane.b32.xlu0 %v1497, 92
      %v1520 = vpop.permute.xlu0 %1519
      %1521 = vrot.lane.b32.xlu0 %v1498, 92
      %v1522 = vpop.permute.xlu0 %1521
      %vm1523 = vcmask 752640
      %v1524 = vsel %vm1523, %v1518, %v1520
      %v1525 = vsel %vm1523, %v1520, %v1522
      %1526 = vrot.lane.b32.xlu0 %v1496, 91
      %v1527 = vpop.permute.xlu0 %1526
      %1528 = vrot.lane.b32.xlu0 %v1497, 91
      %v1529 = vpop.permute.xlu0 %1528
      %1530 = vrot.lane.b32.xlu0 %v1498, 91
      %v1531 = vpop.permute.xlu0 %1530
      %vm1532 = vcmask 744448
      %v1533 = vsel %vm1532, %v1527, %v1529
      %v1534 = vsel %vm1532, %v1529, %v1531
      %1535 = vrot.lane.b32.xlu0 %v1496, 90
      %v1536 = vpop.permute.xlu0 %1535
      %1537 = vrot.lane.b32.xlu0 %v1497, 90
      %v1538 = vpop.permute.xlu0 %1537
      %1539 = vrot.lane.b32.xlu0 %v1498, 90
      %v1540 = vpop.permute.xlu0 %1539
      %vm1541 = vcmask 736256
      %v1542 = vsel %vm1541, %v1536, %v1538
      %v1543 = vsel %vm1541, %v1538, %v1540
      %v1544 = vld [vmem:[%s6] sm:$0xff]
      %v1545 = vld [vmem:[%s6 + $0x8] sm:$0xff]
      %v1546 = vld [vmem:[%s6 + $0x10] sm:$0xff]
      %v1547 = vld [vmem:[%s6 + $0x18] sm:$0xff]
      %v1548 = vld [vmem:[%s7] sm:$0xff]
      %v1549 = vld [vmem:[%s7 + $0x8] sm:$0xff]
      %v1550 = vld [vmem:[%s7 + $0x10] sm:$0xff]
      %v1551 = vld [vmem:[%s7 + $0x18] sm:$0xff]
      %1553 = vset.pattern.permute.xlu0 0
      %1554 = vperm.xlu0 %1553, %v1548
      %v1555 = vpop.permute.xlu0 %1554
      %1558 = vset.pattern.permute.xlu0 0
      %1559 = vperm.xlu0 %1558, %v1549
      %v1560 = vpop.permute.xlu0 %1559
      %1563 = vset.pattern.permute.xlu0 0
      %1564 = vperm.xlu0 %1563, %v1550
      %v1565 = vpop.permute.xlu0 %1564
      %1568 = vset.pattern.permute.xlu0 0
      %1569 = vperm.xlu0 %1568, %v1551
      %v1570 = vpop.permute.xlu0 %1569
      %v1576 = vunpack.c.l.b16 %v1544
      %v1577 = vunpack.c.h.b16 %v1544
      %v1578 = vunpack.c.l.b16 %v1545
      %v1579 = vunpack.c.h.b16 %v1545
      %v1580 = vunpack.c.l.b16 %v1546
      %v1581 = vunpack.c.h.b16 %v1546
      %v1582 = vunpack.c.l.b16 %v1547
      %v1583 = vunpack.c.h.b16 %v1547
      %v1584 = vpack.c.b16 %v1578, %v1576
      %v1585 = vpack.c.b16 %v1579, %v1577
      %v1586 = vpack.c.b16 %v1582, %v1580
      %v1587 = vpack.c.b16 %v1583, %v1581
      %1590 = vrot.lane.b32.xlu0 %v1447, 19
      %v1591 = vpop.permute.xlu0 %1590
      %1592 = vrot.lane.b32.xlu0 %v1448, 19
      %v1593 = vpop.permute.xlu0 %1592
      %1594 = vrot.lane.b32.xlu0 %v1449, 19
      %v1595 = vpop.permute.xlu0 %1594
      %1596 = vrot.lane.b32.xlu0 %v1450, 19
      %v1597 = vpop.permute.xlu0 %1596
      %1598 = vrot.lane.b32.xlu0 %v1459, 19
      %v1599 = vpop.permute.xlu0 %1598
      %1600 = vrot.lane.b32.xlu0 %v1460, 19
      %v1601 = vpop.permute.xlu0 %1600
      %1602 = vrot.lane.b32.xlu0 %v1461, 19
      %v1603 = vpop.permute.xlu0 %1602
      %1604 = vrot.lane.b32.xlu0 %v1458, 19
      %v1605 = vpop.permute.xlu0 %1604
      %1606 = vrot.lane.b32.xlu0 %v1471, 19
      %v1607 = vpop.permute.xlu0 %1606
      %1608 = vrot.lane.b32.xlu0 %v1472, 19
      %v1609 = vpop.permute.xlu0 %1608
      %1610 = vrot.lane.b32.xlu0 %v1473, 19
      %v1611 = vpop.permute.xlu0 %1610
      %1612 = vrot.lane.b32.xlu0 %v1469, 19
      %v1613 = vpop.permute.xlu0 %1612
      %1614 = vrot.lane.b32.xlu0 %v1483, 19
      %v1615 = vpop.permute.xlu0 %1614
      %1616 = vrot.lane.b32.xlu0 %v1484, 19
      %v1617 = vpop.permute.xlu0 %1616
      %1618 = vrot.lane.b32.xlu0 %v1485, 19
      %v1619 = vpop.permute.xlu0 %1618
      %1620 = vrot.lane.b32.xlu0 %v1481, 19
      %v1621 = vpop.permute.xlu0 %1620
      %1622 = vrot.lane.b32.xlu0 %v1500, 19
      %v1623 = vpop.permute.xlu0 %1622
      %1624 = vrot.lane.b32.xlu0 %v1506, 19
      %v1625 = vpop.permute.xlu0 %1624
      %1626 = vrot.lane.b32.xlu0 %v1507, 19
      %v1627 = vpop.permute.xlu0 %1626
      %1628 = vrot.lane.b32.xlu0 %v1504, 19
      %v1629 = vpop.permute.xlu0 %1628
      %1630 = vrot.lane.b32.xlu0 %v1509, 19
      %v1631 = vpop.permute.xlu0 %1630
      %1632 = vrot.lane.b32.xlu0 %v1515, 19
      %v1633 = vpop.permute.xlu0 %1632
      %1634 = vrot.lane.b32.xlu0 %v1516, 19
      %v1635 = vpop.permute.xlu0 %1634
      %1636 = vrot.lane.b32.xlu0 %v1513, 19
      %v1637 = vpop.permute.xlu0 %1636
      %1638 = vrot.lane.b32.xlu0 %v1518, 19
      %v1639 = vpop.permute.xlu0 %1638
      %1640 = vrot.lane.b32.xlu0 %v1524, 19
      %v1641 = vpop.permute.xlu0 %1640
      %1642 = vrot.lane.b32.xlu0 %v1525, 19
      %v1643 = vpop.permute.xlu0 %1642
      %1644 = vrot.lane.b32.xlu0 %v1522, 19
      %v1645 = vpop.permute.xlu0 %1644
      %1646 = vrot.lane.b32.xlu0 %v1527, 19
      %v1647 = vpop.permute.xlu0 %1646
      %1648 = vrot.lane.b32.xlu0 %v1533, 19
      %v1649 = vpop.permute.xlu0 %1648
      %1650 = vrot.lane.b32.xlu0 %v1534, 19
      %v1651 = vpop.permute.xlu0 %1650
      %1652 = vrot.lane.b32.xlu0 %v1531, 19
      %v1653 = vpop.permute.xlu0 %1652
      %1654 = vrot.lane.b32.xlu0 %v1536, 19
      %v1655 = vpop.permute.xlu0 %1654
      %1656 = vrot.lane.b32.xlu0 %v1542, 19
      %v1657 = vpop.permute.xlu0 %1656
      %1658 = vrot.lane.b32.xlu0 %v1543, 19
      %v1659 = vpop.permute.xlu0 %1658
      %1660 = vrot.lane.b32.xlu0 %v1540, 19
      %v1661 = vpop.permute.xlu0 %1660
      %vm1662 = vcmask 154624
      %v1663 = vsel %vm1662, %v1591, %v1593
      %v1664 = vsel %vm1662, %v1593, %v1595
      %v1665 = vsel %vm1662, %v1595, %v1597
      %v1666 = vsel %vm1662, %v1599, %v1601
      %v1667 = vsel %vm1662, %v1601, %v1603
      %v1668 = vsel %vm1662, %v1603, %v1605
      %v1669 = vsel %vm1662, %v1607, %v1609
      %v1670 = vsel %vm1662, %v1609, %v1611
      %v1671 = vsel %vm1662, %v1611, %v1613
      %v1672 = vsel %vm1662, %v1615, %v1617
      %v1673 = vsel %vm1662, %v1617, %v1619
      %v1674 = vsel %vm1662, %v1619, %v1621
      %v1675 = vsel %vm1662, %v1623, %v1625
      %v1676 = vsel %vm1662, %v1625, %v1627
      %v1677 = vsel %vm1662, %v1627, %v1629
      %v1678 = vsel %vm1662, %v1631, %v1633
      %v1679 = vsel %vm1662, %v1633, %v1635
      %v1680 = vsel %vm1662, %v1635, %v1637
      %v1681 = vsel %vm1662, %v1639, %v1641
      %v1682 = vsel %vm1662, %v1641, %v1643
      %v1683 = vsel %vm1662, %v1643, %v1645
      %v1684 = vsel %vm1662, %v1647, %v1649
      %v1685 = vsel %vm1662, %v1649, %v1651
      %v1686 = vsel %vm1662, %v1651, %v1653
      %v1687 = vsel %vm1662, %v1655, %v1657
      %v1688 = vsel %vm1662, %v1657, %v1659
      %v1689 = vsel %vm1662, %v1659, %v1661
      %v1718 = vsel %vm684, %v1585, 0
      %v1721 = vsel %vm684, %v1587, 0
      %1723 = vmatprep.subr.bf16.mxu0 %v1685
      %1724 = vmatpush1.bf16.msra.mxu0 %v1684
      %1725 = vmatprep.subr.bf16.mxu0 %v1682
      %1726 = vmatpush1.bf16.msra.mxu0 %v1681
      %1727 = vmatprep.subr.bf16.mxu0 %v1679
      %1728 = vmatpush1.bf16.msra.mxu0 %v1678
      %1729 = vmatprep.subr.bf16.mxu0 %v1676
      %1730 = vmatpush1.bf16.msra.mxu0 %v1675
      %1731 = vmatprep.subr.bf16.mxu0 %v1673
      %1732 = vmatpush1.bf16.msra.mxu0 %v1672
      %1733 = vmatprep.subr.bf16.mxu0 %v1670
      %1734 = vmatpush1.bf16.msra.mxu0 %v1669
      %1735 = vmatprep.subr.bf16.mxu0 %v1667
      %1736 = vmatpush1.bf16.msra.mxu0 %v1666
      %1737 = vmatprep.subr.bf16.mxu0 %v1664
      %1738 = vmatpush1.bf16.msra.mxu0 %v1663
      %1739 = vmatprep.subr.bf16.mxu0 0
      %1740 = vmatpush2.bf16.msra.mxu0 0
      %1741 = vmatprep.subr.bf16.mxu0 0
      %1742 = vmatpush2.bf16.msra.mxu0 0
      %1743 = vmatprep.subr.bf16.mxu0 0
      %1744 = vmatpush2.bf16.msra.mxu0 0
      %1745 = vmatprep.subr.bf16.mxu0 0
      %1746 = vmatpush2.bf16.msra.mxu0 0
      %1747 = vmatprep.subr.bf16.mxu0 0
      %1748 = vmatpush2.bf16.msra.mxu0 0
      %1749 = vmatprep.subr.bf16.mxu0 0
      %1750 = vmatpush2.bf16.msra.mxu0 0
      %1751 = vmatprep.subr.bf16.mxu0 0
      %1752 = vmatpush2.bf16.msra.mxu0 0
      %1753 = vmatprep.subr.bf16.mxu0 %v1688
      %1754 = vmatpush2.bf16.msra.mxu0 %v1687
      %1755 = vmatprep.mubr.bf16.mxu0 %v1718
      %1756 = vmatmul.mubr.bf16.gmra.mxu0 %v1584
      %v1757 = vpop.f32.mrf.mxu0
      %v1758 = vadd.f32 %v1555, %v1757
      %v1759 = vpop.f32.mrf.mxu0
      %v1760 = vadd.f32 %v1555, %v1759
      %v1761 = vpop.f32.mrf.mxu0
      %v1762 = vadd.f32 %v1560, %v1761
      %v1763 = vpop.f32.mrf.mxu0
      %v1764 = vadd.f32 %v1560, %v1763
      %1765 = vmatprep.mubr.bf16.mxu0 %v1721
      %1766 = vmatmul.mubr.bf16.gmra.mxu0 %v1586
      %v1767 = vpop.f32.mrf.mxu0
      %v1768 = vadd.f32 %v1565, %v1767
      %v1769 = vpop.f32.mrf.mxu0
      %v1770 = vadd.f32 %v1565, %v1769
      %v1771 = vpop.f32.mrf.mxu0
      %v1772 = vadd.f32 %v1570, %v1771
      %v1773 = vpop.f32.mrf.mxu0
      %v1774 = vadd.f32 %v1570, %v1773
      %1775 = vdwg.mxu0
      %1776 = vmatprep.subr.bf16.mxu0 0
      %1777 = vmatpush1.bf16.msra.mxu0 %v1686
      %1778 = vmatprep.subr.bf16.mxu0 0
      %1779 = vmatpush1.bf16.msra.mxu0 %v1683
      %1780 = vmatprep.subr.bf16.mxu0 0
      %1781 = vmatpush1.bf16.msra.mxu0 %v1680
      %1782 = vmatprep.subr.bf16.mxu0 0
      %1783 = vmatpush1.bf16.msra.mxu0 %v1677
      %1784 = vmatprep.subr.bf16.mxu0 0
      %1785 = vmatpush1.bf16.msra.mxu0 %v1674
      %1786 = vmatprep.subr.bf16.mxu0 0
      %1787 = vmatpush1.bf16.msra.mxu0 %v1671
      %1788 = vmatprep.subr.bf16.mxu0 0
      %1789 = vmatpush1.bf16.msra.mxu0 %v1668
      %1790 = vmatprep.subr.bf16.mxu0 0
      %1791 = vmatpush1.bf16.msra.mxu0 %v1665
      %1792 = vmatprep.subr.bf16.mxu0 0
      %1793 = vmatpush2.bf16.msra.mxu0 0
      %1794 = vmatprep.subr.bf16.mxu0 0
      %1795 = vmatpush2.bf16.msra.mxu0 0
      %1796 = vmatprep.subr.bf16.mxu0 0
      %1797 = vmatpush2.bf16.msra.mxu0 0
      %1798 = vmatprep.subr.bf16.mxu0 0
      %1799 = vmatpush2.bf16.msra.mxu0 0
      %1800 = vmatprep.subr.bf16.mxu0 0
      %1801 = vmatpush2.bf16.msra.mxu0 0
      %1802 = vmatprep.subr.bf16.mxu0 0
      %1803 = vmatpush2.bf16.msra.mxu0 0
      %1804 = vmatprep.subr.bf16.mxu0 0
      %1805 = vmatpush2.bf16.msra.mxu0 0
      %1806 = vmatprep.subr.bf16.mxu0 0
      %1807 = vmatpush2.bf16.msra.mxu0 %v1689
      %1808 = vmatprep.mubr.bf16.mxu0 %v1718
      %1809 = vmatmul.mubr.bf16.gmra.mxu0 %v1584
      %v1810 = vpop.f32.mrf.mxu0
      %v1811 = vadd.f32 %v1555, %v1810
      %v1812 = vpop.f32.mrf.mxu0
      %v1813 = vpop.f32.mrf.mxu0
      %v1814 = vadd.f32 %v1560, %v1813
      %v1815 = vpop.f32.mrf.mxu0
      %1816 = vmatprep.mubr.bf16.mxu0 %v1721
      %1817 = vmatmul.mubr.bf16.gmra.mxu0 %v1586
      %v1818 = vpop.f32.mrf.mxu0
      %v1819 = vadd.f32 %v1565, %v1818
      %v1820 = vpop.f32.mrf.mxu0
      %v1821 = vpop.f32.mrf.mxu0
      %v1822 = vadd.f32 %v1570, %v1821
      %v1823 = vpop.f32.mrf.mxu0
      %1824 = vdwg.mxu0
      %v1825 = vmax.f32 %v1758, 0.0
      %v1826 = vmax.f32 %v1760, 0.0
      %v1827 = vmax.f32 %v1811, 0.0
      %v1828 = vmax.f32 %v1762, 0.0
      %v1829 = vmax.f32 %v1764, 0.0
      %v1830 = vmax.f32 %v1814, 0.0
      %v1831 = vmax.f32 %v1768, 0.0
      %v1832 = vmax.f32 %v1770, 0.0
      %v1833 = vmax.f32 %v1819, 0.0
      %v1834 = vmax.f32 %v1772, 0.0
      %v1835 = vmax.f32 %v1774, 0.0
      %v1836 = vmax.f32 %v1822, 0.0
      %v1837 = vpack.c.bf16 %v1828, %v1825
      %v1838 = vpack.c.bf16 %v1829, %v1826
      %v1839 = vpack.c.bf16 %v1830, %v1827
      %v1840 = vpack.c.bf16 %v1834, %v1831
      %v1841 = vpack.c.bf16 %v1835, %v1832
      %v1842 = vpack.c.bf16 %v1836, %v1833
      %v1845 = vunpack.c.l.b16 %v1837
      %v1846 = vunpack.c.h.b16 %v1837
      %v1847 = vunpack.c.l.b16 %v1840
      %v1848 = vunpack.c.h.b16 %v1840
      %v1849 = vpack.c.b16 %v1845, %v1845
      %v1850 = vpack.c.b16 %v1846, %v1846
      %v1851 = vpack.c.b16 %v1847, %v1847
      %v1852 = vpack.c.b16 %v1848, %v1848
      %1857 = vst.msk [vmem:[#allocation3 + $0x4] sm:$0xf] %vm862, %v1849
      %1858 = vst.msk [vmem:[#allocation3 + $0x14] sm:$0xf] %vm862, %v1850
      %1859 = vst.msk [vmem:[#allocation3 + $0x24] sm:$0xf] %vm862, %v1851
      %1860 = vst.msk [vmem:[#allocation3 + $0x34] sm:$0xf] %vm862, %v1852
      %1861 = vst.msk [vmem:[#allocation3 + $0x4] sm:$0xf] %vm896, %v1849
      %1862 = vst.msk [vmem:[#allocation3 + $0x14] sm:$0xf] %vm896, %v1850
      %1863 = vst.msk [vmem:[#allocation3 + $0x24] sm:$0xf] %vm896, %v1851
      %1864 = vst.msk [vmem:[#allocation3 + $0x34] sm:$0xf] %vm896, %v1852
      %1865 = vst.msk [vmem:[#allocation3 + $0x4] sm:$0xf] %vm930, %v1849
      %1866 = vst.msk [vmem:[#allocation3 + $0x14] sm:$0xf] %vm930, %v1850
      %1867 = vst.msk [vmem:[#allocation3 + $0x24] sm:$0xf] %vm930, %v1851
      %1868 = vst.msk [vmem:[#allocation3 + $0x34] sm:$0xf] %vm930, %v1852
      %1869 = vst.msk [vmem:[#allocation3 + $0x4] sm:$0xf] %vm964, %v1849
      %1870 = vst.msk [vmem:[#allocation3 + $0x14] sm:$0xf] %vm964, %v1850
      %1871 = vst.msk [vmem:[#allocation3 + $0x24] sm:$0xf] %vm964, %v1851
      %1872 = vst.msk [vmem:[#allocation3 + $0x34] sm:$0xf] %vm964, %v1852
      %1873 = vst.msk [vmem:[#allocation3 + $0x4] sm:$0xf] %vm998, %v1849
      %1874 = vst.msk [vmem:[#allocation3 + $0x14] sm:$0xf] %vm998, %v1850
      %1875 = vst.msk [vmem:[#allocation3 + $0x24] sm:$0xf] %vm998, %v1851
      %1876 = vst.msk [vmem:[#allocation3 + $0x34] sm:$0xf] %vm998, %v1852
      %1877 = vst.msk [vmem:[#allocation3 + $0x4] sm:$0xf] %vm1032, %v1849
      %1878 = vst.msk [vmem:[#allocation3 + $0x14] sm:$0xf] %vm1032, %v1850
      %1879 = vst.msk [vmem:[#allocation3 + $0x24] sm:$0xf] %vm1032, %v1851
      %1880 = vst.msk [vmem:[#allocation3 + $0x34] sm:$0xf] %vm1032, %v1852
      %v1883 = vunpack.c.l.b16 %v1838
      %v1884 = vunpack.c.h.b16 %v1838
      %v1885 = vunpack.c.l.b16 %v1841
      %v1886 = vunpack.c.h.b16 %v1841
      %v1887 = vpack.c.b16 %v1883, %v1845
      %v1888 = vpack.c.b16 %v1884, %v1846
      %v1889 = vpack.c.b16 %v1885, %v1847
      %v1890 = vpack.c.b16 %v1886, %v1848
      %1895 = vst.msk [vmem:[#allocation3 + $0x4] sm:$0xff] %vm1073, %v1887
      %1896 = vst.msk [vmem:[#allocation3 + $0x14] sm:$0xff] %vm1073, %v1888
      %1897 = vst.msk [vmem:[#allocation3 + $0x24] sm:$0xff] %vm1073, %v1889
      %1898 = vst.msk [vmem:[#allocation3 + $0x34] sm:$0xff] %vm1073, %v1890
      %v1899 = vpack.c.b16 %v1883, %v1883
      %v1900 = vpack.c.b16 %v1884, %v1884
      %v1901 = vpack.c.b16 %v1885, %v1885
      %v1902 = vpack.c.b16 %v1886, %v1886
      %1907 = vst.msk [vmem:[#allocation3 + $0x8] sm:$0xf] %vm1107, %v1899
      %1908 = vst.msk [vmem:[#allocation3 + $0x18] sm:$0xf] %vm1107, %v1900
      %1909 = vst.msk [vmem:[#allocation3 + $0x28] sm:$0xf] %vm1107, %v1901
      %1910 = vst.msk [vmem:[#allocation3 + $0x38] sm:$0xf] %vm1107, %v1902
      %1911 = vst.msk [vmem:[#allocation3 + $0x8] sm:$0xf] %vm1179, %v1899
      %1912 = vst.msk [vmem:[#allocation3 + $0x18] sm:$0xf] %vm1179, %v1900
      %1913 = vst.msk [vmem:[#allocation3 + $0x28] sm:$0xf] %vm1179, %v1901
      %1914 = vst.msk [vmem:[#allocation3 + $0x38] sm:$0xf] %vm1179, %v1902
      %1915 = vst.msk [vmem:[#allocation3 + $0x8] sm:$0xf] %vm1213, %v1899
      %1916 = vst.msk [vmem:[#allocation3 + $0x18] sm:$0xf] %vm1213, %v1900
      %1917 = vst.msk [vmem:[#allocation3 + $0x28] sm:$0xf] %vm1213, %v1901
      %1918 = vst.msk [vmem:[#allocation3 + $0x38] sm:$0xf] %vm1213, %v1902
      %1919 = vst.msk [vmem:[#allocation3 + $0x8] sm:$0xf] %vm1247, %v1899
      %1920 = vst.msk [vmem:[#allocation3 + $0x18] sm:$0xf] %vm1247, %v1900
      %1921 = vst.msk [vmem:[#allocation3 + $0x28] sm:$0xf] %vm1247, %v1901
      %1922 = vst.msk [vmem:[#allocation3 + $0x38] sm:$0xf] %vm1247, %v1902
      %1923 = vst.msk [vmem:[#allocation3 + $0x8] sm:$0xf] %vm1281, %v1899
      %1924 = vst.msk [vmem:[#allocation3 + $0x18] sm:$0xf] %vm1281, %v1900
      %1925 = vst.msk [vmem:[#allocation3 + $0x28] sm:$0xf] %vm1281, %v1901
      %1926 = vst.msk [vmem:[#allocation3 + $0x38] sm:$0xf] %vm1281, %v1902
      %1927 = vst.msk [vmem:[#allocation3 + $0x8] sm:$0xf] %vm1315, %v1899
      %1928 = vst.msk [vmem:[#allocation3 + $0x18] sm:$0xf] %vm1315, %v1900
      %1929 = vst.msk [vmem:[#allocation3 + $0x28] sm:$0xf] %vm1315, %v1901
      %1930 = vst.msk [vmem:[#allocation3 + $0x38] sm:$0xf] %vm1315, %v1902
      %v1933 = vunpack.c.l.b16 %v1839
      %v1934 = vunpack.c.h.b16 %v1839
      %v1935 = vunpack.c.l.b16 %v1842
      %v1936 = vunpack.c.h.b16 %v1842
      %v1937 = vpack.c.b16 %v1933, %v1883
      %v1938 = vpack.c.b16 %v1934, %v1884
      %v1939 = vpack.c.b16 %v1935, %v1885
      %v1940 = vpack.c.b16 %v1936, %v1886
      %1945 = vst.msk [vmem:[#allocation3 + $0x8] sm:$0xff] %vm1356, %v1937
      %1946 = vst.msk [vmem:[#allocation3 + $0x18] sm:$0xff] %vm1356, %v1938
      %1947 = vst.msk [vmem:[#allocation3 + $0x28] sm:$0xff] %vm1356, %v1939
      %1948 = vst.msk [vmem:[#allocation3 + $0x38] sm:$0xff] %vm1356, %v1940
      %v1949 = vpack.c.b16 %v1933, %v1933
      %v1950 = vpack.c.b16 %v1934, %v1934
      %v1951 = vpack.c.b16 %v1935, %v1935
      %v1952 = vpack.c.b16 %v1936, %v1936
      %1957 = vst.msk [vmem:[#allocation3 + $0xc] sm:$0xf] %vm1390, %v1949
      %1958 = vst.msk [vmem:[#allocation3 + $0x1c] sm:$0xf] %vm1390, %v1950
      %1959 = vst.msk [vmem:[#allocation3 + $0x2c] sm:$0xf] %vm1390, %v1951
      %1960 = vst.msk [vmem:[#allocation3 + $0x3c] sm:$0xf] %vm1390, %v1952
      %1961 = vst.msk [vmem:[#allocation3 + $0xc] sm:$0xf] %vm1424, %v1949
      %1962 = vst.msk [vmem:[#allocation3 + $0x1c] sm:$0xf] %vm1424, %v1950
      %1963 = vst.msk [vmem:[#allocation3 + $0x2c] sm:$0xf] %vm1424, %v1951
      %1964 = vst.msk [vmem:[#allocation3 + $0x3c] sm:$0xf] %vm1424, %v1952
      %v1965 = vld [vmem:[#allocation3] sm:$0xff]
      %v1966 = vld [vmem:[#allocation3 + $0x8] sm:$0xff]
      %v1967 = vld [vmem:[#allocation3 + $0x10] sm:$0xff]
      %v1968 = vld [vmem:[#allocation3 + $0x18] sm:$0xff]
      %v1969 = vld [vmem:[#allocation3 + $0x20] sm:$0xff]
      %v1970 = vld [vmem:[#allocation3 + $0x28] sm:$0xff]
      %v1971 = vld [vmem:[#allocation3 + $0x30] sm:$0xff]
      %v1972 = vld [vmem:[#allocation3 + $0x38] sm:$0xff]
      %v1973 = vld [vmem:[#allocation3 + $0x4] sm:$0xff]
      %v1974 = vld [vmem:[#allocation3 + $0xc] sm:$0xf]
      %v1975 = vld [vmem:[#allocation3 + $0x14] sm:$0xff]
      %v1976 = vld [vmem:[#allocation3 + $0x1c] sm:$0xf]
      %v1977 = vld [vmem:[#allocation3 + $0x24] sm:$0xff]
      %v1978 = vld [vmem:[#allocation3 + $0x2c] sm:$0xf]
      %v1979 = vld [vmem:[#allocation3 + $0x34] sm:$0xff]
      %v1980 = vld [vmem:[#allocation3 + $0x3c] sm:$0xf]
      %v1989 = vunpack.c.l.b16 %v1965
      %v1990 = vunpack.c.h.b16 %v1965
      %v1991 = vunpack.c.l.b16 %v1966
      %v1992 = vunpack.c.h.b16 %v1966
      %v1993 = vunpack.c.l.b16 %v1967
      %v1994 = vunpack.c.h.b16 %v1967
      %v1995 = vunpack.c.l.b16 %v1968
      %v1996 = vunpack.c.h.b16 %v1968
      %v1997 = vunpack.c.l.b16 %v1969
      %v1998 = vunpack.c.h.b16 %v1969
      %v1999 = vunpack.c.l.b16 %v1970
      %v2000 = vunpack.c.h.b16 %v1970
      %v2001 = vunpack.c.l.b16 %v1971
      %v2002 = vunpack.c.h.b16 %v1971
      %v2003 = vunpack.c.l.b16 %v1972
      %v2004 = vunpack.c.h.b16 %v1972
      %v2005 = vpack.c.b16 %v1993, %v1989
      %v2006 = vpack.c.b16 %v1994, %v1990
      %v2007 = vpack.c.b16 %v1995, %v1991
      %v2008 = vpack.c.b16 %v1996, %v1992
      %v2009 = vpack.c.b16 %v2001, %v1997
      %v2010 = vpack.c.b16 %v2002, %v1998
      %v2011 = vpack.c.b16 %v2003, %v1999
      %v2012 = vpack.c.b16 %v2004, %v2000
      %2013 = vrot.lane.b32.xlu0 %v2005, 127
      %v2014 = vpop.permute.xlu0 %2013
      %2015 = vrot.lane.b32.xlu0 %v2006, 127
      %v2016 = vpop.permute.xlu0 %2015
      %2017 = vrot.lane.b32.xlu0 %v2007, 127
      %v2018 = vpop.permute.xlu0 %2017
      %2019 = vrot.lane.b32.xlu0 %v2008, 127
      %v2020 = vpop.permute.xlu0 %2019
      %2021 = vrot.lane.b32.xlu0 %v2009, 127
      %v2022 = vpop.permute.xlu0 %2021
      %2023 = vrot.lane.b32.xlu0 %v2010, 127
      %v2024 = vpop.permute.xlu0 %2023
      %2025 = vrot.lane.b32.xlu0 %v2011, 127
      %v2026 = vpop.permute.xlu0 %2025
      %2027 = vrot.lane.b32.xlu0 %v2012, 127
      %v2028 = vpop.permute.xlu0 %2027
      %v2029 = vsel %vm1066, %v2014, %v2016
      %v2030 = vsel %vm1066, %v2016, %v2018
      %v2031 = vsel %vm1066, %v2018, %v2020
      %v2032 = vsel %vm1066, %v2022, %v2024
      %v2033 = vsel %vm1066, %v2024, %v2026
      %v2034 = vsel %vm1066, %v2026, %v2028
      %2035 = vrot.lane.b32.xlu0 %v2005, 126
      %v2036 = vpop.permute.xlu0 %2035
      %2037 = vrot.lane.b32.xlu0 %v2006, 126
      %v2038 = vpop.permute.xlu0 %2037
      %2039 = vrot.lane.b32.xlu0 %v2007, 126
      %v2040 = vpop.permute.xlu0 %2039
      %2041 = vrot.lane.b32.xlu0 %v2008, 126
      %v2042 = vpop.permute.xlu0 %2041
      %2043 = vrot.lane.b32.xlu0 %v2009, 126
      %v2044 = vpop.permute.xlu0 %2043
      %2045 = vrot.lane.b32.xlu0 %v2010, 126
      %v2046 = vpop.permute.xlu0 %2045
      %2047 = vrot.lane.b32.xlu0 %v2011, 126
      %v2048 = vpop.permute.xlu0 %2047
      %2049 = vrot.lane.b32.xlu0 %v2012, 126
      %v2050 = vpop.permute.xlu0 %2049
      %v2051 = vsel %vm1470, %v2036, %v2038
      %v2052 = vsel %vm1470, %v2038, %v2040
      %v2053 = vsel %vm1470, %v2040, %v2042
      %v2054 = vsel %vm1470, %v2044, %v2046
      %v2055 = vsel %vm1470, %v2046, %v2048
      %v2056 = vsel %vm1470, %v2048, %v2050
      %2057 = vrot.lane.b32.xlu0 %v2005, 110
      %v2058 = vpop.permute.xlu0 %2057
      %2059 = vrot.lane.b32.xlu0 %v2006, 110
      %v2060 = vpop.permute.xlu0 %2059
      %2061 = vrot.lane.b32.xlu0 %v2007, 110
      %v2062 = vpop.permute.xlu0 %2061
      %2063 = vrot.lane.b32.xlu0 %v2008, 110
      %v2064 = vpop.permute.xlu0 %2063
      %2065 = vrot.lane.b32.xlu0 %v2009, 110
      %v2066 = vpop.permute.xlu0 %2065
      %2067 = vrot.lane.b32.xlu0 %v2010, 110
      %v2068 = vpop.permute.xlu0 %2067
      %2069 = vrot.lane.b32.xlu0 %v2011, 110
      %v2070 = vpop.permute.xlu0 %2069
      %2071 = vrot.lane.b32.xlu0 %v2012, 110
      %v2072 = vpop.permute.xlu0 %2071
      %v2073 = vsel %vm1482, %v2058, %v2060
      %v2074 = vsel %vm1482, %v2060, %v2062
      %v2075 = vsel %vm1482, %v2062, %v2064
      %v2076 = vsel %vm1482, %v2066, %v2068
      %v2077 = vsel %vm1482, %v2068, %v2070
      %v2078 = vsel %vm1482, %v2070, %v2072
      %v2087 = vunpack.c.l.b16 %v1973
      %v2088 = vunpack.c.h.b16 %v1973
      %v2089 = vunpack.c.l.b16 %v1974
      %v2090 = vunpack.c.l.b16 %v1975
      %v2091 = vunpack.c.h.b16 %v1975
      %v2092 = vunpack.c.l.b16 %v1976
      %v2093 = vunpack.c.l.b16 %v1977
      %v2094 = vunpack.c.h.b16 %v1977
      %v2095 = vunpack.c.l.b16 %v1978
      %v2096 = vunpack.c.l.b16 %v1979
      %v2097 = vunpack.c.h.b16 %v1979
      %v2098 = vunpack.c.l.b16 %v1980
      %v2099 = vpack.c.b16 %v2090, %v2087
      %v2100 = vpack.c.b16 %v2091, %v2088
      %v2101 = vpack.c.b16 %v2092, %v2089
      %v2102 = vpack.c.b16 %v2096, %v2093
      %v2103 = vpack.c.b16 %v2097, %v2094
      %v2104 = vpack.c.b16 %v2098, %v2095
      %2105 = vrot.lane.b32.xlu0 %v2099, 109
      %v2106 = vpop.permute.xlu0 %2105
      %2107 = vrot.lane.b32.xlu0 %v2100, 109
      %v2108 = vpop.permute.xlu0 %2107
      %2109 = vrot.lane.b32.xlu0 %v2101, 109
      %v2110 = vpop.permute.xlu0 %2109
      %2111 = vrot.lane.b32.xlu0 %v2102, 109
      %v2112 = vpop.permute.xlu0 %2111
      %2113 = vrot.lane.b32.xlu0 %v2103, 109
      %v2114 = vpop.permute.xlu0 %2113
      %2115 = vrot.lane.b32.xlu0 %v2104, 109
      %v2116 = vpop.permute.xlu0 %2115
      %v2117 = vsel %vm1505, %v2106, %v2108
      %v2118 = vsel %vm1505, %v2108, %v2110
      %v2119 = vsel %vm1505, %v2112, %v2114
      %v2120 = vsel %vm1505, %v2114, %v2116
      %2121 = vrot.lane.b32.xlu0 %v2099, 108
      %v2122 = vpop.permute.xlu0 %2121
      %2123 = vrot.lane.b32.xlu0 %v2100, 108
      %v2124 = vpop.permute.xlu0 %2123
      %2125 = vrot.lane.b32.xlu0 %v2101, 108
      %v2126 = vpop.permute.xlu0 %2125
      %2127 = vrot.lane.b32.xlu0 %v2102, 108
      %v2128 = vpop.permute.xlu0 %2127
      %2129 = vrot.lane.b32.xlu0 %v2103, 108
      %v2130 = vpop.permute.xlu0 %2129
      %2131 = vrot.lane.b32.xlu0 %v2104, 108
      %v2132 = vpop.permute.xlu0 %2131
      %v2133 = vsel %vm1514, %v2122, %v2124
      %v2134 = vsel %vm1514, %v2124, %v2126
      %v2135 = vsel %vm1514, %v2128, %v2130
      %v2136 = vsel %vm1514, %v2130, %v2132
      %2137 = vrot.lane.b32.xlu0 %v2099, 92
      %v2138 = vpop.permute.xlu0 %2137
      %2139 = vrot.lane.b32.xlu0 %v2100, 92
      %v2140 = vpop.permute.xlu0 %2139
      %2141 = vrot.lane.b32.xlu0 %v2101, 92
      %v2142 = vpop.permute.xlu0 %2141
      %2143 = vrot.lane.b32.xlu0 %v2102, 92
      %v2144 = vpop.permute.xlu0 %2143
      %2145 = vrot.lane.b32.xlu0 %v2103, 92
      %v2146 = vpop.permute.xlu0 %2145
      %2147 = vrot.lane.b32.xlu0 %v2104, 92
      %v2148 = vpop.permute.xlu0 %2147
      %v2149 = vsel %vm1523, %v2138, %v2140
      %v2150 = vsel %vm1523, %v2140, %v2142
      %v2151 = vsel %vm1523, %v2144, %v2146
      %v2152 = vsel %vm1523, %v2146, %v2148
      %2153 = vrot.lane.b32.xlu0 %v2099, 91
      %v2154 = vpop.permute.xlu0 %2153
      %2155 = vrot.lane.b32.xlu0 %v2100, 91
      %v2156 = vpop.permute.xlu0 %2155
      %2157 = vrot.lane.b32.xlu0 %v2101, 91
      %v2158 = vpop.permute.xlu0 %2157
      %2159 = vrot.lane.b32.xlu0 %v2102, 91
      %v2160 = vpop.permute.xlu0 %2159
      %2161 = vrot.lane.b32.xlu0 %v2103, 91
      %v2162 = vpop.permute.xlu0 %2161
      %2163 = vrot.lane.b32.xlu0 %v2104, 91
      %v2164 = vpop.permute.xlu0 %2163
      %v2165 = vsel %vm1532, %v2154, %v2156
      %v2166 = vsel %vm1532, %v2156, %v2158
      %v2167 = vsel %vm1532, %v2160, %v2162
      %v2168 = vsel %vm1532, %v2162, %v2164
      %2169 = vrot.lane.b32.xlu0 %v2099, 90
      %v2170 = vpop.permute.xlu0 %2169
      %2171 = vrot.lane.b32.xlu0 %v2100, 90
      %v2172 = vpop.permute.xlu0 %2171
      %2173 = vrot.lane.b32.xlu0 %v2101, 90
      %v2174 = vpop.permute.xlu0 %2173
      %2175 = vrot.lane.b32.xlu0 %v2102, 90
      %v2176 = vpop.permute.xlu0 %2175
      %2177 = vrot.lane.b32.xlu0 %v2103, 90
      %v2178 = vpop.permute.xlu0 %2177
      %2179 = vrot.lane.b32.xlu0 %v2104, 90
      %v2180 = vpop.permute.xlu0 %2179
      %v2181 = vsel %vm1541, %v2170, %v2172
      %v2182 = vsel %vm1541, %v2172, %v2174
      %v2183 = vsel %vm1541, %v2176, %v2178
      %v2184 = vsel %vm1541, %v2178, %v2180
      %v2185 = vld [vmem:[%s8] sm:$0xff]
      %v2186 = vld [vmem:[%s8 + $0x8] sm:$0xf]
      %v2187 = vld [vmem:[%s8 + $0xc] sm:$0xff]
      %v2188 = vld [vmem:[%s8 + $0x14] sm:$0xf]
      %v2189 = vld [vmem:[%s8 + $0x18] sm:$0xff]
      %v2190 = vld [vmem:[%s8 + $0x20] sm:$0xf]
      %v2191 = vld [vmem:[%s8 + $0x24] sm:$0xff]
      %v2192 = vld [vmem:[%s8 + $0x2c] sm:$0xf]
      %v2193 = vld [vmem:[%s9] sm:$0xff]
      %v2194 = vld [vmem:[%s9 + $0x8] sm:$0xff]
      %v2195 = vld [vmem:[%s9 + $0x10] sm:$0xff]
      %v2196 = vld [vmem:[%s9 + $0x18] sm:$0xff]
      %2198 = vset.pattern.permute.xlu0 0
      %2199 = vperm.xlu0 %2198, %v2193
      %v2200 = vpop.permute.xlu0 %2199
      %2203 = vset.pattern.permute.xlu0 0
      %2204 = vperm.xlu0 %2203, %v2194
      %v2205 = vpop.permute.xlu0 %2204
      %2208 = vset.pattern.permute.xlu0 0
      %2209 = vperm.xlu0 %2208, %v2195
      %v2210 = vpop.permute.xlu0 %2209
      %2213 = vset.pattern.permute.xlu0 0
      %2214 = vperm.xlu0 %2213, %v2196
      %v2215 = vpop.permute.xlu0 %2214
      %v2225 = vunpack.c.l.b16 %v2185
      %v2226 = vunpack.c.h.b16 %v2185
      %v2227 = vunpack.c.l.b16 %v2186
      %v2228 = vunpack.c.l.b16 %v2187
      %v2229 = vunpack.c.h.b16 %v2187
      %v2230 = vunpack.c.l.b16 %v2188
      %v2231 = vunpack.c.l.b16 %v2189
      %v2232 = vunpack.c.h.b16 %v2189
      %v2233 = vunpack.c.l.b16 %v2190
      %v2234 = vunpack.c.l.b16 %v2191
      %v2235 = vunpack.c.h.b16 %v2191
      %v2236 = vunpack.c.l.b16 %v2192
      %v2237 = vpack.c.b16 %v2228, %v2225
      %v2238 = vpack.c.b16 %v2229, %v2226
      %v2239 = vpack.c.b16 %v2230, %v2227
      %v2240 = vpack.c.b16 %v2234, %v2231
      %v2241 = vpack.c.b16 %v2235, %v2232
      %v2242 = vpack.c.b16 %v2236, %v2233
      %2247 = vrot.lane.b32.xlu0 %v2005, 19
      %v2248 = vpop.permute.xlu0 %2247
      %2249 = vrot.lane.b32.xlu0 %v2006, 19
      %v2250 = vpop.permute.xlu0 %2249
      %2251 = vrot.lane.b32.xlu0 %v2007, 19
      %v2252 = vpop.permute.xlu0 %2251
      %2253 = vrot.lane.b32.xlu0 %v2008, 19
      %v2254 = vpop.permute.xlu0 %2253
      %2255 = vrot.lane.b32.xlu0 %v2009, 19
      %v2256 = vpop.permute.xlu0 %2255
      %2257 = vrot.lane.b32.xlu0 %v2010, 19
      %v2258 = vpop.permute.xlu0 %2257
      %2259 = vrot.lane.b32.xlu0 %v2011, 19
      %v2260 = vpop.permute.xlu0 %2259
      %2261 = vrot.lane.b32.xlu0 %v2012, 19
      %v2262 = vpop.permute.xlu0 %2261
      %2263 = vrot.lane.b32.xlu0 %v2029, 19
      %v2264 = vpop.permute.xlu0 %2263
      %2265 = vrot.lane.b32.xlu0 %v2030, 19
      %v2266 = vpop.permute.xlu0 %2265
      %2267 = vrot.lane.b32.xlu0 %v2031, 19
      %v2268 = vpop.permute.xlu0 %2267
      %2269 = vrot.lane.b32.xlu0 %v2020, 19
      %v2270 = vpop.permute.xlu0 %2269
      %2271 = vrot.lane.b32.xlu0 %v2032, 19
      %v2272 = vpop.permute.xlu0 %2271
      %2273 = vrot.lane.b32.xlu0 %v2033, 19
      %v2274 = vpop.permute.xlu0 %2273
      %2275 = vrot.lane.b32.xlu0 %v2034, 19
      %v2276 = vpop.permute.xlu0 %2275
      %2277 = vrot.lane.b32.xlu0 %v2028, 19
      %v2278 = vpop.permute.xlu0 %2277
      %2279 = vrot.lane.b32.xlu0 %v2051, 19
      %v2280 = vpop.permute.xlu0 %2279
      %2281 = vrot.lane.b32.xlu0 %v2052, 19
      %v2282 = vpop.permute.xlu0 %2281
      %2283 = vrot.lane.b32.xlu0 %v2053, 19
      %v2284 = vpop.permute.xlu0 %2283
      %2285 = vrot.lane.b32.xlu0 %v2042, 19
      %v2286 = vpop.permute.xlu0 %2285
      %2287 = vrot.lane.b32.xlu0 %v2054, 19
      %v2288 = vpop.permute.xlu0 %2287
      %2289 = vrot.lane.b32.xlu0 %v2055, 19
      %v2290 = vpop.permute.xlu0 %2289
      %2291 = vrot.lane.b32.xlu0 %v2056, 19
      %v2292 = vpop.permute.xlu0 %2291
      %2293 = vrot.lane.b32.xlu0 %v2050, 19
      %v2294 = vpop.permute.xlu0 %2293
      %2295 = vrot.lane.b32.xlu0 %v2073, 19
      %v2296 = vpop.permute.xlu0 %2295
      %2297 = vrot.lane.b32.xlu0 %v2074, 19
      %v2298 = vpop.permute.xlu0 %2297
      %2299 = vrot.lane.b32.xlu0 %v2075, 19
      %v2300 = vpop.permute.xlu0 %2299
      %2301 = vrot.lane.b32.xlu0 %v2064, 19
      %v2302 = vpop.permute.xlu0 %2301
      %2303 = vrot.lane.b32.xlu0 %v2076, 19
      %v2304 = vpop.permute.xlu0 %2303
      %2305 = vrot.lane.b32.xlu0 %v2077, 19
      %v2306 = vpop.permute.xlu0 %2305
      %2307 = vrot.lane.b32.xlu0 %v2078, 19
      %v2308 = vpop.permute.xlu0 %2307
      %2309 = vrot.lane.b32.xlu0 %v2072, 19
      %v2310 = vpop.permute.xlu0 %2309
      %2311 = vrot.lane.b32.xlu0 %v2106, 19
      %v2312 = vpop.permute.xlu0 %2311
      %2313 = vrot.lane.b32.xlu0 %v2117, 19
      %v2314 = vpop.permute.xlu0 %2313
      %2315 = vrot.lane.b32.xlu0 %v2118, 19
      %v2316 = vpop.permute.xlu0 %2315
      %2317 = vrot.lane.b32.xlu0 %v2110, 19
      %v2318 = vpop.permute.xlu0 %2317
      %2319 = vrot.lane.b32.xlu0 %v2112, 19
      %v2320 = vpop.permute.xlu0 %2319
      %2321 = vrot.lane.b32.xlu0 %v2119, 19
      %v2322 = vpop.permute.xlu0 %2321
      %2323 = vrot.lane.b32.xlu0 %v2120, 19
      %v2324 = vpop.permute.xlu0 %2323
      %2325 = vrot.lane.b32.xlu0 %v2116, 19
      %v2326 = vpop.permute.xlu0 %2325
      %2327 = vrot.lane.b32.xlu0 %v2122, 19
      %v2328 = vpop.permute.xlu0 %2327
      %2329 = vrot.lane.b32.xlu0 %v2133, 19
      %v2330 = vpop.permute.xlu0 %2329
      %2331 = vrot.lane.b32.xlu0 %v2134, 19
      %v2332 = vpop.permute.xlu0 %2331
      %2333 = vrot.lane.b32.xlu0 %v2126, 19
      %v2334 = vpop.permute.xlu0 %2333
      %2335 = vrot.lane.b32.xlu0 %v2128, 19
      %v2336 = vpop.permute.xlu0 %2335
      %2337 = vrot.lane.b32.xlu0 %v2135, 19
      %v2338 = vpop.permute.xlu0 %2337
      %2339 = vrot.lane.b32.xlu0 %v2136, 19
      %v2340 = vpop.permute.xlu0 %2339
      %2341 = vrot.lane.b32.xlu0 %v2132, 19
      %v2342 = vpop.permute.xlu0 %2341
      %2343 = vrot.lane.b32.xlu0 %v2138, 19
      %v2344 = vpop.permute.xlu0 %2343
      %2345 = vrot.lane.b32.xlu0 %v2149, 19
      %v2346 = vpop.permute.xlu0 %2345
      %2347 = vrot.lane.b32.xlu0 %v2150, 19
      %v2348 = vpop.permute.xlu0 %2347
      %2349 = vrot.lane.b32.xlu0 %v2142, 19
      %v2350 = vpop.permute.xlu0 %2349
      %2351 = vrot.lane.b32.xlu0 %v2144, 19
      %v2352 = vpop.permute.xlu0 %2351
      %2353 = vrot.lane.b32.xlu0 %v2151, 19
      %v2354 = vpop.permute.xlu0 %2353
      %2355 = vrot.lane.b32.xlu0 %v2152, 19
      %v2356 = vpop.permute.xlu0 %2355
      %2357 = vrot.lane.b32.xlu0 %v2148, 19
      %v2358 = vpop.permute.xlu0 %2357
      %2359 = vrot.lane.b32.xlu0 %v2154, 19
      %v2360 = vpop.permute.xlu0 %2359
      %2361 = vrot.lane.b32.xlu0 %v2165, 19
      %v2362 = vpop.permute.xlu0 %2361
      %2363 = vrot.lane.b32.xlu0 %v2166, 19
      %v2364 = vpop.permute.xlu0 %2363
      %2365 = vrot.lane.b32.xlu0 %v2158, 19
      %v2366 = vpop.permute.xlu0 %2365
      %2367 = vrot.lane.b32.xlu0 %v2160, 19
      %v2368 = vpop.permute.xlu0 %2367
      %2369 = vrot.lane.b32.xlu0 %v2167, 19
      %v2370 = vpop.permute.xlu0 %2369
      %2371 = vrot.lane.b32.xlu0 %v2168, 19
      %v2372 = vpop.permute.xlu0 %2371
      %2373 = vrot.lane.b32.xlu0 %v2164, 19
      %v2374 = vpop.permute.xlu0 %2373
      %2375 = vrot.lane.b32.xlu0 %v2170, 19
      %v2376 = vpop.permute.xlu0 %2375
      %2377 = vrot.lane.b32.xlu0 %v2181, 19
      %v2378 = vpop.permute.xlu0 %2377
      %2379 = vrot.lane.b32.xlu0 %v2182, 19
      %v2380 = vpop.permute.xlu0 %2379
      %2381 = vrot.lane.b32.xlu0 %v2174, 19
      %v2382 = vpop.permute.xlu0 %2381
      %2383 = vrot.lane.b32.xlu0 %v2176, 19
      %v2384 = vpop.permute.xlu0 %2383
      %2385 = vrot.lane.b32.xlu0 %v2183, 19
      %v2386 = vpop.permute.xlu0 %2385
      %2387 = vrot.lane.b32.xlu0 %v2184, 19
      %v2388 = vpop.permute.xlu0 %2387
      %2389 = vrot.lane.b32.xlu0 %v2180, 19
      %v2390 = vpop.permute.xlu0 %2389
      %v2391 = vsel %vm1662, %v2248, %v2250
      %v2392 = vsel %vm1662, %v2250, %v2252
      %v2393 = vsel %vm1662, %v2252, %v2254
      %v2394 = vsel %vm1662, %v2256, %v2258
      %v2395 = vsel %vm1662, %v2258, %v2260
      %v2396 = vsel %vm1662, %v2260, %v2262
      %v2397 = vsel %vm1662, %v2264, %v2266
      %v2398 = vsel %vm1662, %v2266, %v2268
      %v2399 = vsel %vm1662, %v2268, %v2270
      %v2400 = vsel %vm1662, %v2272, %v2274
      %v2401 = vsel %vm1662, %v2274, %v2276
      %v2402 = vsel %vm1662, %v2276, %v2278
      %v2403 = vsel %vm1662, %v2280, %v2282
      %v2404 = vsel %vm1662, %v2282, %v2284
      %v2405 = vsel %vm1662, %v2284, %v2286
      %v2406 = vsel %vm1662, %v2288, %v2290
      %v2407 = vsel %vm1662, %v2290, %v2292
      %v2408 = vsel %vm1662, %v2292, %v2294
      %v2409 = vsel %vm1662, %v2296, %v2298
      %v2410 = vsel %vm1662, %v2298, %v2300
      %v2411 = vsel %vm1662, %v2300, %v2302
      %v2412 = vsel %vm1662, %v2304, %v2306
      %v2413 = vsel %vm1662, %v2306, %v2308
      %v2414 = vsel %vm1662, %v2308, %v2310
      %v2415 = vsel %vm1662, %v2312, %v2314
      %v2416 = vsel %vm1662, %v2314, %v2316
      %v2417 = vsel %vm1662, %v2316, %v2318
      %v2418 = vsel %vm1662, %v2320, %v2322
      %v2419 = vsel %vm1662, %v2322, %v2324
      %v2420 = vsel %vm1662, %v2324, %v2326
      %v2421 = vsel %vm1662, %v2328, %v2330
      %v2422 = vsel %vm1662, %v2330, %v2332
      %v2423 = vsel %vm1662, %v2332, %v2334
      %v2424 = vsel %vm1662, %v2336, %v2338
      %v2425 = vsel %vm1662, %v2338, %v2340
      %v2426 = vsel %vm1662, %v2340, %v2342
      %v2427 = vsel %vm1662, %v2344, %v2346
      %v2428 = vsel %vm1662, %v2346, %v2348
      %v2429 = vsel %vm1662, %v2348, %v2350
      %v2430 = vsel %vm1662, %v2352, %v2354
      %v2431 = vsel %vm1662, %v2354, %v2356
      %v2432 = vsel %vm1662, %v2356, %v2358
      %v2433 = vsel %vm1662, %v2360, %v2362
      %v2434 = vsel %vm1662, %v2362, %v2364
      %v2435 = vsel %vm1662, %v2364, %v2366
      %v2436 = vsel %vm1662, %v2368, %v2370
      %v2437 = vsel %vm1662, %v2370, %v2372
      %v2438 = vsel %vm1662, %v2372, %v2374
      %v2439 = vsel %vm1662, %v2376, %v2378
      %v2440 = vsel %vm1662, %v2378, %v2380
      %v2441 = vsel %vm1662, %v2380, %v2382
      %v2442 = vsel %vm1662, %v2384, %v2386
      %v2443 = vsel %vm1662, %v2386, %v2388
      %v2444 = vsel %vm1662, %v2388, %v2390
      %v2500 = vsel %vm484, %v2239, 0
      %v2503 = vsel %vm484, %v2242, 0
      %2505 = vmatprep.subr.bf16.mxu0 %v2413
      %2506 = vmatpush1.bf16.msra.mxu0 %v2412
      %2507 = vmatprep.subr.bf16.mxu0 %v2410
      %2508 = vmatpush1.bf16.msra.mxu0 %v2409
      %2509 = vmatprep.subr.bf16.mxu0 %v2407
      %2510 = vmatpush1.bf16.msra.mxu0 %v2406
      %2511 = vmatprep.subr.bf16.mxu0 %v2404
      %2512 = vmatpush1.bf16.msra.mxu0 %v2403
      %2513 = vmatprep.subr.bf16.mxu0 %v2401
      %2514 = vmatpush1.bf16.msra.mxu0 %v2400
      %2515 = vmatprep.subr.bf16.mxu0 %v2398
      %2516 = vmatpush1.bf16.msra.mxu0 %v2397
      %2517 = vmatprep.subr.bf16.mxu0 %v2395
      %2518 = vmatpush1.bf16.msra.mxu0 %v2394
      %2519 = vmatprep.subr.bf16.mxu0 %v2392
      %2520 = vmatpush1.bf16.msra.mxu0 %v2391
      %2521 = vmatprep.subr.bf16.mxu0 %v2437
      %2522 = vmatpush2.bf16.msra.mxu0 %v2436
      %2523 = vmatprep.subr.bf16.mxu0 %v2434
      %2524 = vmatpush2.bf16.msra.mxu0 %v2433
      %2525 = vmatprep.subr.bf16.mxu0 %v2431
      %2526 = vmatpush2.bf16.msra.mxu0 %v2430
      %2527 = vmatprep.subr.bf16.mxu0 %v2428
      %2528 = vmatpush2.bf16.msra.mxu0 %v2427
      %2529 = vmatprep.subr.bf16.mxu0 %v2425
      %2530 = vmatpush2.bf16.msra.mxu0 %v2424
      %2531 = vmatprep.subr.bf16.mxu0 %v2422
      %2532 = vmatpush2.bf16.msra.mxu0 %v2421
      %2533 = vmatprep.subr.bf16.mxu0 %v2419
      %2534 = vmatpush2.bf16.msra.mxu0 %v2418
      %2535 = vmatprep.subr.bf16.mxu0 %v2416
      %2536 = vmatpush2.bf16.msra.mxu0 %v2415
      %2537 = vmatprep.mubr.bf16.mxu0 %v2238
      %2538 = vmatmul.mubr.bf16.gmra.mxu0 %v2237
      %v2539 = vpop.f32.mrf.mxu0
      %v2540 = vadd.f32 %v2200, %v2539
      %v2541 = vpop.f32.mrf.mxu0
      %v2542 = vadd.f32 %v2200, %v2541
      %v2543 = vpop.f32.mrf.mxu0
      %v2544 = vadd.f32 %v2205, %v2543
      %v2545 = vpop.f32.mrf.mxu0
      %v2546 = vadd.f32 %v2205, %v2545
      %2547 = vmatprep.mubr.bf16.mxu0 %v2241
      %2548 = vmatmul.mubr.bf16.gmra.mxu0 %v2240
      %v2549 = vpop.f32.mrf.mxu0
      %v2550 = vadd.f32 %v2210, %v2549
      %v2551 = vpop.f32.mrf.mxu0
      %v2552 = vadd.f32 %v2210, %v2551
      %v2553 = vpop.f32.mrf.mxu0
      %v2554 = vadd.f32 %v2215, %v2553
      %v2555 = vpop.f32.mrf.mxu0
      %v2556 = vadd.f32 %v2215, %v2555
      %2557 = vdwg.mxu0
      %2558 = vmatprep.subr.bf16.mxu0 0
      %2559 = vmatpush1.bf16.msra.mxu0 0
      %2560 = vmatprep.subr.bf16.mxu0 0
      %2561 = vmatpush1.bf16.msra.mxu0 0
      %2562 = vmatprep.subr.bf16.mxu0 0
      %2563 = vmatpush1.bf16.msra.mxu0 0
      %2564 = vmatprep.subr.bf16.mxu0 0
      %2565 = vmatpush1.bf16.msra.mxu0 0
      %2566 = vmatprep.subr.bf16.mxu0 0
      %2567 = vmatpush1.bf16.msra.mxu0 0
      %2568 = vmatprep.subr.bf16.mxu0 0
      %2569 = vmatpush1.bf16.msra.mxu0 0
      %2570 = vmatprep.subr.bf16.mxu0 %v2443
      %2571 = vmatpush1.bf16.msra.mxu0 %v2442
      %2572 = vmatprep.subr.bf16.mxu0 %v2440
      %2573 = vmatpush1.bf16.msra.mxu0 %v2439
      %2574 = vmatprep.subr.bf16.mxu0 0
      %2575 = vmatpush2.bf16.msra.mxu0 0
      %2576 = vmatprep.subr.bf16.mxu0 0
      %2577 = vmatpush2.bf16.msra.mxu0 0
      %2578 = vmatprep.subr.bf16.mxu0 0
      %2579 = vmatpush2.bf16.msra.mxu0 0
      %2580 = vmatprep.subr.bf16.mxu0 0
      %2581 = vmatpush2.bf16.msra.mxu0 0
      %2582 = vmatprep.subr.bf16.mxu0 0
      %2583 = vmatpush2.bf16.msra.mxu0 0
      %2584 = vmatprep.subr.bf16.mxu0 0
      %2585 = vmatpush2.bf16.msra.mxu0 0
      %2586 = vmatprep.subr.bf16.mxu0 0
      %2587 = vmatpush2.bf16.msra.mxu0 0
      %2588 = vmatprep.subr.bf16.mxu0 0
      %2589 = vmatpush2.bf16.msra.mxu0 0
      %2590 = vmatprep.mubr.bf16.mxu0 0
      %2591 = vmatmul.mubr.bf16.gmra.mxu0 %v2500
      %v2592 = vpop.f32.mrf.mxu0
      %v2593 = vadd.f32 %v2540, %v2592
      %v2594 = vpop.f32.mrf.mxu0
      %v2595 = vadd.f32 %v2542, %v2594
      %v2596 = vpop.f32.mrf.mxu0
      %v2597 = vadd.f32 %v2544, %v2596
      %v2598 = vpop.f32.mrf.mxu0
      %v2599 = vadd.f32 %v2546, %v2598
      %2600 = vmatprep.mubr.bf16.mxu0 0
      %2601 = vmatmul.mubr.bf16.gmra.mxu0 %v2503
      %v2602 = vpop.f32.mrf.mxu0
      %v2603 = vadd.f32 %v2550, %v2602
      %v2604 = vpop.f32.mrf.mxu0
      %v2605 = vadd.f32 %v2552, %v2604
      %v2606 = vpop.f32.mrf.mxu0
      %v2607 = vadd.f32 %v2554, %v2606
      %v2608 = vpop.f32.mrf.mxu0
      %v2609 = vadd.f32 %v2556, %v2608
      %2610 = vdwg.mxu0
      %2611 = vmatprep.subr.bf16.mxu0 0
      %2612 = vmatpush1.bf16.msra.mxu0 %v2414
      %2613 = vmatprep.subr.bf16.mxu0 0
      %2614 = vmatpush1.bf16.msra.mxu0 %v2411
      %2615 = vmatprep.subr.bf16.mxu0 0
      %2616 = vmatpush1.bf16.msra.mxu0 %v2408
      %2617 = vmatprep.subr.bf16.mxu0 0
      %2618 = vmatpush1.bf16.msra.mxu0 %v2405
      %2619 = vmatprep.subr.bf16.mxu0 0
      %2620 = vmatpush1.bf16.msra.mxu0 %v2402
      %2621 = vmatprep.subr.bf16.mxu0 0
      %2622 = vmatpush1.bf16.msra.mxu0 %v2399
      %2623 = vmatprep.subr.bf16.mxu0 0
      %2624 = vmatpush1.bf16.msra.mxu0 %v2396
      %2625 = vmatprep.subr.bf16.mxu0 0
      %2626 = vmatpush1.bf16.msra.mxu0 %v2393
      %2627 = vmatprep.subr.bf16.mxu0 0
      %2628 = vmatpush2.bf16.msra.mxu0 %v2438
      %2629 = vmatprep.subr.bf16.mxu0 0
      %2630 = vmatpush2.bf16.msra.mxu0 %v2435
      %2631 = vmatprep.subr.bf16.mxu0 0
      %2632 = vmatpush2.bf16.msra.mxu0 %v2432
      %2633 = vmatprep.subr.bf16.mxu0 0
      %2634 = vmatpush2.bf16.msra.mxu0 %v2429
      %2635 = vmatprep.subr.bf16.mxu0 0
      %2636 = vmatpush2.bf16.msra.mxu0 %v2426
      %2637 = vmatprep.subr.bf16.mxu0 0
      %2638 = vmatpush2.bf16.msra.mxu0 %v2423
      %2639 = vmatprep.subr.bf16.mxu0 0
      %2640 = vmatpush2.bf16.msra.mxu0 %v2420
      %2641 = vmatprep.subr.bf16.mxu0 0
      %2642 = vmatpush2.bf16.msra.mxu0 %v2417
      %2643 = vmatprep.mubr.bf16.mxu0 %v2238
      %2644 = vmatmul.mubr.bf16.gmra.mxu0 %v2237
      %v2645 = vpop.f32.mrf.mxu0
      %v2646 = vadd.f32 %v2200, %v2645
      %v2647 = vpop.f32.mrf.mxu0
      %v2648 = vpop.f32.mrf.mxu0
      %v2649 = vadd.f32 %v2205, %v2648
      %v2650 = vpop.f32.mrf.mxu0
      %2651 = vmatprep.mubr.bf16.mxu0 %v2241
      %2652 = vmatmul.mubr.bf16.gmra.mxu0 %v2240
      %v2653 = vpop.f32.mrf.mxu0
      %v2654 = vadd.f32 %v2210, %v2653
      %v2655 = vpop.f32.mrf.mxu0
      %v2656 = vpop.f32.mrf.mxu0
      %v2657 = vadd.f32 %v2215, %v2656
      %v2658 = vpop.f32.mrf.mxu0
      %2659 = vdwg.mxu0
      %2660 = vmatprep.subr.bf16.mxu0 0
      %2661 = vmatpush1.bf16.msra.mxu0 0
      %2662 = vmatprep.subr.bf16.mxu0 0
      %2663 = vmatpush1.bf16.msra.mxu0 0
      %2664 = vmatprep.subr.bf16.mxu0 0
      %2665 = vmatpush1.bf16.msra.mxu0 0
      %2666 = vmatprep.subr.bf16.mxu0 0
      %2667 = vmatpush1.bf16.msra.mxu0 0
      %2668 = vmatprep.subr.bf16.mxu0 0
      %2669 = vmatpush1.bf16.msra.mxu0 0
      %2670 = vmatprep.subr.bf16.mxu0 0
      %2671 = vmatpush1.bf16.msra.mxu0 0
      %2672 = vmatprep.subr.bf16.mxu0 0
      %2673 = vmatpush1.bf16.msra.mxu0 %v2444
      %2674 = vmatprep.subr.bf16.mxu0 0
      %2675 = vmatpush1.bf16.msra.mxu0 %v2441
      %2676 = vmatprep.subr.bf16.mxu0 0
      %2677 = vmatpush2.bf16.msra.mxu0 0
      %2678 = vmatprep.subr.bf16.mxu0 0
      %2679 = vmatpush2.bf16.msra.mxu0 0
      %2680 = vmatprep.subr.bf16.mxu0 0
      %2681 = vmatpush2.bf16.msra.mxu0 0
      %2682 = vmatprep.subr.bf16.mxu0 0
      %2683 = vmatpush2.bf16.msra.mxu0 0
      %2684 = vmatprep.subr.bf16.mxu0 0
      %2685 = vmatpush2.bf16.msra.mxu0 0
      %2686 = vmatprep.subr.bf16.mxu0 0
      %2687 = vmatpush2.bf16.msra.mxu0 0
      %2688 = vmatprep.subr.bf16.mxu0 0
      %2689 = vmatpush2.bf16.msra.mxu0 0
      %2690 = vmatprep.subr.bf16.mxu0 0
      %2691 = vmatpush2.bf16.msra.mxu0 0
      %2692 = vmatprep.mubr.bf16.mxu0 0
      %2693 = vmatmul.mubr.bf16.gmra.mxu0 %v2500
      %v2694 = vpop.f32.mrf.mxu0
      %v2695 = vadd.f32 %v2646, %v2694
      %v2696 = vpop.f32.mrf.mxu0
      %v2697 = vpop.f32.mrf.mxu0
      %v2698 = vadd.f32 %v2649, %v2697
      %v2699 = vpop.f32.mrf.mxu0
      %2700 = vmatprep.mubr.bf16.mxu0 0
      %2701 = vmatmul.mubr.bf16.gmra.mxu0 %v2503
      %v2702 = vpop.f32.mrf.mxu0
      %v2703 = vadd.f32 %v2654, %v2702
      %v2704 = vpop.f32.mrf.mxu0
      %v2705 = vpop.f32.mrf.mxu0
      %v2706 = vadd.f32 %v2657, %v2705
      %v2707 = vpop.f32.mrf.mxu0
      %2708 = vdwg.mxu0
      %v2709 = vmax.f32 %v2593, 0.0
      %v2710 = vmax.f32 %v2595, 0.0
      %v2711 = vmax.f32 %v2695, 0.0
      %v2712 = vmax.f32 %v2597, 0.0
      %v2713 = vmax.f32 %v2599, 0.0
      %v2714 = vmax.f32 %v2698, 0.0
      %v2715 = vmax.f32 %v2603, 0.0
      %v2716 = vmax.f32 %v2605, 0.0
      %v2717 = vmax.f32 %v2703, 0.0
      %v2718 = vmax.f32 %v2607, 0.0
      %v2719 = vmax.f32 %v2609, 0.0
      %v2720 = vmax.f32 %v2706, 0.0
      %2725 = vrot.lane.b32.xlu0 %v2709, 109
      %v2726 = vpop.permute.xlu0 %2725
      %2727 = vrot.lane.b32.xlu0 %v2712, 109
      %v2728 = vpop.permute.xlu0 %2727
      %2729 = vrot.lane.b32.xlu0 %v2715, 109
      %v2730 = vpop.permute.xlu0 %2729
      %2731 = vrot.lane.b32.xlu0 %v2718, 109
      %v2732 = vpop.permute.xlu0 %2731
      %2737 = vrot.lane.b32.xlu0 %v2709, 107
      %v2738 = vpop.permute.xlu0 %2737
      %2739 = vrot.lane.b32.xlu0 %v2712, 107
      %v2740 = vpop.permute.xlu0 %2739
      %2741 = vrot.lane.b32.xlu0 %v2715, 107
      %v2742 = vpop.permute.xlu0 %2741
      %2743 = vrot.lane.b32.xlu0 %v2718, 107
      %v2744 = vpop.permute.xlu0 %2743
      %2749 = vrot.lane.b32.xlu0 %v2709, 105
      %v2750 = vpop.permute.xlu0 %2749
      %2751 = vrot.lane.b32.xlu0 %v2712, 105
      %v2752 = vpop.permute.xlu0 %2751
      %2753 = vrot.lane.b32.xlu0 %v2715, 105
      %v2754 = vpop.permute.xlu0 %2753
      %2755 = vrot.lane.b32.xlu0 %v2718, 105
      %v2756 = vpop.permute.xlu0 %2755
      %2761 = vrot.lane.b32.xlu0 %v2709, 103
      %v2762 = vpop.permute.xlu0 %2761
      %2763 = vrot.lane.b32.xlu0 %v2712, 103
      %v2764 = vpop.permute.xlu0 %2763
      %2765 = vrot.lane.b32.xlu0 %v2715, 103
      %v2766 = vpop.permute.xlu0 %2765
      %2767 = vrot.lane.b32.xlu0 %v2718, 103
      %v2768 = vpop.permute.xlu0 %2767
      %2773 = vrot.lane.b32.xlu0 %v2709, 101
      %v2774 = vpop.permute.xlu0 %2773
      %2775 = vrot.lane.b32.xlu0 %v2712, 101
      %v2776 = vpop.permute.xlu0 %2775
      %2777 = vrot.lane.b32.xlu0 %v2715, 101
      %v2778 = vpop.permute.xlu0 %2777
      %2779 = vrot.lane.b32.xlu0 %v2718, 101
      %v2780 = vpop.permute.xlu0 %2779
      %2785 = vrot.lane.b32.xlu0 %v2709, 99
      %v2786 = vpop.permute.xlu0 %2785
      %2787 = vrot.lane.b32.xlu0 %v2712, 99
      %v2788 = vpop.permute.xlu0 %2787
      %2789 = vrot.lane.b32.xlu0 %v2715, 99
      %v2790 = vpop.permute.xlu0 %2789
      %2791 = vrot.lane.b32.xlu0 %v2718, 99
      %v2792 = vpop.permute.xlu0 %2791
      %2801 = vrot.lane.b32.xlu0 %v2709, 97
      %v2802 = vpop.permute.xlu0 %2801
      %2803 = vrot.lane.b32.xlu0 %v2710, 97
      %v2804 = vpop.permute.xlu0 %2803
      %2805 = vrot.lane.b32.xlu0 %v2712, 97
      %v2806 = vpop.permute.xlu0 %2805
      %2807 = vrot.lane.b32.xlu0 %v2713, 97
      %v2808 = vpop.permute.xlu0 %2807
      %2809 = vrot.lane.b32.xlu0 %v2715, 97
      %v2810 = vpop.permute.xlu0 %2809
      %2811 = vrot.lane.b32.xlu0 %v2716, 97
      %v2812 = vpop.permute.xlu0 %2811
      %2813 = vrot.lane.b32.xlu0 %v2718, 97
      %v2814 = vpop.permute.xlu0 %2813
      %2815 = vrot.lane.b32.xlu0 %v2719, 97
      %v2816 = vpop.permute.xlu0 %2815
      %vm2817 = vcmask 793600
      %v2818 = vsel %vm2817, %v2802, %v2804
      %v2819 = vsel %vm2817, %v2806, %v2808
      %v2820 = vsel %vm2817, %v2810, %v2812
      %v2821 = vsel %vm2817, %v2814, %v2816
      %2826 = vrot.lane.b32.xlu0 %v2710, 95
      %v2827 = vpop.permute.xlu0 %2826
      %2828 = vrot.lane.b32.xlu0 %v2713, 95
      %v2829 = vpop.permute.xlu0 %2828
      %2830 = vrot.lane.b32.xlu0 %v2716, 95
      %v2831 = vpop.permute.xlu0 %2830
      %2832 = vrot.lane.b32.xlu0 %v2719, 95
      %v2833 = vpop.permute.xlu0 %2832
      %2838 = vrot.lane.b32.xlu0 %v2710, 93
      %v2839 = vpop.permute.xlu0 %2838
      %2840 = vrot.lane.b32.xlu0 %v2713, 93
      %v2841 = vpop.permute.xlu0 %2840
      %2842 = vrot.lane.b32.xlu0 %v2716, 93
      %v2843 = vpop.permute.xlu0 %2842
      %2844 = vrot.lane.b32.xlu0 %v2719, 93
      %v2845 = vpop.permute.xlu0 %2844
      %2850 = vrot.lane.b32.xlu0 %v2710, 91
      %v2851 = vpop.permute.xlu0 %2850
      %2852 = vrot.lane.b32.xlu0 %v2713, 91
      %v2853 = vpop.permute.xlu0 %2852
      %2854 = vrot.lane.b32.xlu0 %v2716, 91
      %v2855 = vpop.permute.xlu0 %2854
      %2856 = vrot.lane.b32.xlu0 %v2719, 91
      %v2857 = vpop.permute.xlu0 %2856
      %2862 = vrot.lane.b32.xlu0 %v2710, 89
      %v2863 = vpop.permute.xlu0 %2862
      %2864 = vrot.lane.b32.xlu0 %v2713, 89
      %v2865 = vpop.permute.xlu0 %2864
      %2866 = vrot.lane.b32.xlu0 %v2716, 89
      %v2867 = vpop.permute.xlu0 %2866
      %2868 = vrot.lane.b32.xlu0 %v2719, 89
      %v2869 = vpop.permute.xlu0 %2868
      %2874 = vrot.lane.b32.xlu0 %v2710, 87
      %v2875 = vpop.permute.xlu0 %2874
      %2876 = vrot.lane.b32.xlu0 %v2713, 87
      %v2877 = vpop.permute.xlu0 %2876
      %2878 = vrot.lane.b32.xlu0 %v2716, 87
      %v2879 = vpop.permute.xlu0 %2878
      %2880 = vrot.lane.b32.xlu0 %v2719, 87
      %v2881 = vpop.permute.xlu0 %2880
      %2886 = vrot.lane.b32.xlu0 %v2710, 85
      %v2887 = vpop.permute.xlu0 %2886
      %2888 = vrot.lane.b32.xlu0 %v2713, 85
      %v2889 = vpop.permute.xlu0 %2888
      %2890 = vrot.lane.b32.xlu0 %v2716, 85
      %v2891 = vpop.permute.xlu0 %2890
      %2892 = vrot.lane.b32.xlu0 %v2719, 85
      %v2893 = vpop.permute.xlu0 %2892
      %2902 = vrot.lane.b32.xlu0 %v2710, 83
      %v2903 = vpop.permute.xlu0 %2902
      %2904 = vrot.lane.b32.xlu0 %v2711, 83
      %v2905 = vpop.permute.xlu0 %2904
      %2906 = vrot.lane.b32.xlu0 %v2713, 83
      %v2907 = vpop.permute.xlu0 %2906
      %2908 = vrot.lane.b32.xlu0 %v2714, 83
      %v2909 = vpop.permute.xlu0 %2908
      %2910 = vrot.lane.b32.xlu0 %v2716, 83
      %v2911 = vpop.permute.xlu0 %2910
      %2912 = vrot.lane.b32.xlu0 %v2717, 83
      %v2913 = vpop.permute.xlu0 %2912
      %2914 = vrot.lane.b32.xlu0 %v2719, 83
      %v2915 = vpop.permute.xlu0 %2914
      %2916 = vrot.lane.b32.xlu0 %v2720, 83
      %v2917 = vpop.permute.xlu0 %2916
      %vm2918 = vcmask 678912
      %v2919 = vsel %vm2918, %v2903, %v2905
      %v2920 = vsel %vm2918, %v2907, %v2909
      %v2921 = vsel %vm2918, %v2911, %v2913
      %v2922 = vsel %vm2918, %v2915, %v2917
      %2927 = vrot.lane.b32.xlu0 %v2711, 81
      %v2928 = vpop.permute.xlu0 %2927
      %2929 = vrot.lane.b32.xlu0 %v2714, 81
      %v2930 = vpop.permute.xlu0 %2929
      %2931 = vrot.lane.b32.xlu0 %v2717, 81
      %v2932 = vpop.permute.xlu0 %2931
      %2933 = vrot.lane.b32.xlu0 %v2720, 81
      %v2934 = vpop.permute.xlu0 %2933
      %2939 = vrot.lane.b32.xlu0 %v2711, 79
      %v2940 = vpop.permute.xlu0 %2939
      %2941 = vrot.lane.b32.xlu0 %v2714, 79
      %v2942 = vpop.permute.xlu0 %2941
      %2943 = vrot.lane.b32.xlu0 %v2717, 79
      %v2944 = vpop.permute.xlu0 %2943
      %2945 = vrot.lane.b32.xlu0 %v2720, 79
      %v2946 = vpop.permute.xlu0 %2945
      %v2951 = vsel %vm684, %v2726, %v2738
      %v2952 = vsel %vm684, %v2728, %v2740
      %v2953 = vsel %vm684, %v2730, %v2742
      %v2954 = vsel %vm684, %v2732, %v2744
      %v2955 = vsel %vm484, %v2951, %v2750
      %v2956 = vsel %vm484, %v2952, %v2752
      %v2957 = vsel %vm484, %v2953, %v2754
      %v2958 = vsel %vm484, %v2954, %v2756
      %vm2959 = vcmask 392192
      %v2960 = vsel %vm2959, %v2955, %v2762
      %v2961 = vsel %vm2959, %v2956, %v2764
      %v2962 = vsel %vm2959, %v2957, %v2766
      %v2963 = vsel %vm2959, %v2958, %v2768
      %vm2964 = vcmask 523264
      %v2965 = vsel %vm2964, %v2960, %v2774
      %v2966 = vsel %vm2964, %v2961, %v2776
      %v2967 = vsel %vm2964, %v2962, %v2778
      %v2968 = vsel %vm2964, %v2963, %v2780
      %vm2969 = vcmask 654336
      %v2970 = vsel %vm2969, %v2965, %v2786
      %v2971 = vsel %vm2969, %v2966, %v2788
      %v2972 = vsel %vm2969, %v2967, %v2790
      %v2973 = vsel %vm2969, %v2968, %v2792
      %vm2974 = vcmask 785408
      %v2975 = vsel %vm2974, %v2970, %v2818
      %v2976 = vsel %vm2974, %v2971, %v2819
      %v2977 = vsel %vm2974, %v2972, %v2820
      %v2978 = vsel %vm2974, %v2973, %v2821
      %vm2979 = vcmask 916480
      %v2980 = vsel %vm2979, %v2975, %v2827
      %v2981 = vsel %vm2979, %v2976, %v2829
      %v2982 = vsel %vm2979, %v2977, %v2831
      %v2983 = vsel %vm2979, %v2978, %v2833
      %v2984 = vsel %vm684, %v2839, %v2851
      %v2985 = vsel %vm684, %v2841, %v2853
      %v2986 = vsel %vm684, %v2843, %v2855
      %v2987 = vsel %vm684, %v2845, %v2857
      %v2988 = vsel %vm484, %v2984, %v2863
      %v2989 = vsel %vm484, %v2985, %v2865
      %v2990 = vsel %vm484, %v2986, %v2867
      %v2991 = vsel %vm484, %v2987, %v2869
      %v2992 = vsel %vm2959, %v2988, %v2875
      %v2993 = vsel %vm2959, %v2989, %v2877
      %v2994 = vsel %vm2959, %v2990, %v2879
      %v2995 = vsel %vm2959, %v2991, %v2881
      %v2996 = vsel %vm2964, %v2992, %v2887
      %v2997 = vsel %vm2964, %v2993, %v2889
      %v2998 = vsel %vm2964, %v2994, %v2891
      %v2999 = vsel %vm2964, %v2995, %v2893
      %v3000 = vsel %vm2969, %v2996, %v2919
      %v3001 = vsel %vm2969, %v2997, %v2920
      %v3002 = vsel %vm2969, %v2998, %v2921
      %v3003 = vsel %vm2969, %v2999, %v2922
      %v3004 = vsel %vm2974, %v3000, %v2928
      %v3005 = vsel %vm2974, %v3001, %v2930
      %v3006 = vsel %vm2974, %v3002, %v2932
      %v3007 = vsel %vm2974, %v3003, %v2934
      %v3008 = vsel %vm2979, %v3004, %v2940
      %v3009 = vsel %vm2979, %v3005, %v2942
      %v3010 = vsel %vm2979, %v3006, %v2944
      %v3011 = vsel %vm2979, %v3007, %v2946
      %3012 = vst [vmem:[%s399] sm:$0xff] %v2980
      %3013 = vst [vmem:[%s399 + $0x8] sm:$0xff] %v3008
      %3014 = vst [vmem:[%s399 + $0x10] sm:$0xff] %v2981
      %3015 = vst [vmem:[%s399 + $0x18] sm:$0xff] %v3009
      %3016 = vst [vmem:[%s399 + $0x20] sm:$0xff] %v2982
      %3017 = vst [vmem:[%s399 + $0x28] sm:$0xff] %v3010
      %3018 = vst [vmem:[%s399 + $0x30] sm:$0xff] %v2983
      %3019 = vst [vmem:[%s399 + $0x38] sm:$0xff] %v3011
      %p3020 = scmp.lt.s32.totalorder %s21, 1
      %s3021 = scalar_select %p3020, %s21, 1
      %s3022 = smul.addr %s3021, 8
      %s3023 = smul.addr %s3022, 8
      %s3024 = scalar_lea.vmem %s10, %s3023
      // Predicated region
      $region61: #{single_head_forward.1} parent=59 // pred_check
        %p3025 = pneg %p264
      $region62: #{single_head_forward.1} parent=59 // pred_check_branch
        %3027 = sbr.rel (%p3025) target = $region64
      $region63: #{single_head_forward.1} parent=59 // pred_region
        _
      $region64: #{single_head_forward.1} parent=59 // pred_fallthru
        _
    $region60: #{single_head_forward.1} parent=5 // pred_fallthru
      _
    %p3028 = scmp.le.s32.totalorder 2, %s16
    // Predicated region
    $region65: #{single_head_forward.1} parent=5 // pred_check
      %p3029 = pneg %p3028
    $region66: #{single_head_forward.1} parent=5 // pred_check_branch
      %3031 = sbr.rel (%p3029) target = $region68
    $region67: #{single_head_forward.1} parent=5 // pred_region
      %s3032 = ssub.s32 %s16, 2
      // Predicated region
      $region69: #{single_head_forward.1} parent=67 // pred_check
        %p3033 = pneg %p270
      $region70: #{single_head_forward.1} parent=67 // pred_check_branch
        %3035 = sbr.rel (%p3033) target = $region72
      $region71: #{single_head_forward.1} parent=67 // pred_region
        %p3036 = scmp.lt.s32.totalorder %s22, 1
        %s3037 = scalar_select %p3036, %s22, 1
        %s3038 = smul.addr %s3037, 8
        %s3039 = smul.addr %s3038, 8
        %s3040 = scalar_lea.vmem %s10, %s3039
      $region72: #{single_head_forward.1} parent=67 // pred_fallthru
        _
    $region68: #{single_head_forward.1} parent=5 // pred_fallthru
      _
  $region6: #{single_head_forward.1} parent=0 // loop_footer
    %s20 = sadd.s32 1, %s16
  $region7: #{single_head_forward.1} parent=0 // loop_footer_branch
    %15 = sbr.rel target = $region3
  $region8: #{single_head_forward.1} parent=0 // loop_exit
    _

</llo_original>
